<compile_context>
chip_gen: v7x
topology: tpu7x:2x2x1
jax: 0.10.0
libtpu: 0.0.40
codegen_flags: <defaults>
</compile_context>

<pallas_src>
import jax
import jax.numpy as jnp
from jax import lax
from jax.experimental import pallas as pl
from jax.experimental.pallas import tpu as pltpu


# ---------------------------------------------------------------------------
# Fused kernel
# ---------------------------------------------------------------------------

def _encoder2_kernel(patch2_ref, w2_ref, b2_ref, w3_ref, b3_ref,
                     w4_ref, b4_ref, o_ref, p2, p3):
    # patch2_ref: (1, H*W, 27) bf16   im2col of the raw input (conv1 folded in w2)
    # w2_ref: (27, C2) bf16           b2_ref: (1, C2) f32
    # w3_ref: (3, 3*C2, C3) bf16      b3_ref: (1, C3) f32   (taps grouped by dy)
    # w4_ref: (3, 3*C3, C4) bf16      b4_ref: (1, C4) f32
    # o_ref : (1, Ho, Wo, C4) f32
    # p2    : (H+2,  W+2,  C2) f32  scratch: reflection-padded conv2 output
    # p3    : (Ho+2, Wo+2, C3) f32  scratch: reflection-padded pooled conv3 output
    H, W = p2.shape[0] - 2, p2.shape[1] - 2
    Ho, Wo = o_ref.shape[1], o_ref.shape[2]
    C2, C3, C4 = p2.shape[2], p3.shape[2], o_ref.shape[3]
    RB = 4 if H % 4 == 0 else 2           # conv3 output rows per chunk (M = RB*W)

    # ---- conv2 (with conv1 folded): one K=27 matmul over the whole image -----
    p27 = patch2_ref[0]                                     # (H*W, 27) bf16
    y2 = jnp.dot(p27, w2_ref[...], preferred_element_type=jnp.float32)
    y2 = jnp.maximum(y2 + b2_ref[...], 0.0)                 # (H*W, C2) f32
    y2r = y2.reshape(H, W, C2)                              # leading split: no-op
    # Left/right reflection columns appended at the value level -> one wide
    # store; top/bottom reflection rows are two full-width ref copies.
    body2 = jnp.concatenate([y2r[:, 1:2, :], y2r, y2r[:, W - 2:W - 1, :]], axis=1)
    p2[1:H + 1, :, :] = body2
    p2[0:1, :, :] = p2[2:3, :, :]
    p2[H + 1:H + 2, :, :] = p2[H - 1:H, :, :]

    # ---- conv3 + ReLU + 2x2/2 maxpool ---------------------------------------
    # Row-band chunked (bounds vreg pressure); taps packed by dy so each band
    # does 3 matmuls of K = 3*C2 instead of 9 of K = C2.
    K3 = 3 * C2
    hpooled = []                                            # per-band H-pooled rows
    for r0 in range(0, H, RB):
        acc = jnp.zeros((RB * W, C3), jnp.float32)
        for dy in range(3):
            band = p2[r0 + dy:r0 + dy + RB, :, :]           # (RB, W+2, C2)
            pk = jnp.concatenate(
                [band[:, dx:dx + W, :] for dx in range(3)], axis=-1)
            pk = pk.reshape(RB * W, K3).astype(jnp.bfloat16)
            acc = acc + jnp.dot(pk, w3_ref[dy],
                                preferred_element_type=jnp.float32)
        y3 = jnp.maximum(acc + b3_ref[...], 0.0)            # (RB*W, C3) f32
        y3r = y3.reshape(RB // 2, 2, W, C3)                 # leading split: no-op
        hpooled.append(jnp.maximum(y3r[:, 0], y3r[:, 1]))   # (RB//2, W, C3)
    rows = jnp.concatenate(hpooled, axis=0)                 # (Ho, W, C3)
    # W-direction pool, done once for the whole image: even/odd column split +
    # one max (replaces the old per-column masked-store loop).
    ev = jnp.concatenate([rows[:, 2 * j:2 * j + 1, :] for j in range(Wo)], axis=1)
    od = jnp.concatenate([rows[:, 2 * j + 1:2 * j + 2, :] for j in range(Wo)], axis=1)
    pooled = jnp.maximum(ev, od)                            # (Ho, Wo, C3)
    # TODO(synk): MaxPool2d(return_indices=True) pooling indices are not
    # produced; the PyTorch forward discards them anyway.
    body3 = jnp.concatenate(
        [pooled[:, 1:2, :], pooled, pooled[:, Wo - 2:Wo - 1, :]], axis=1)
    p3[1:Ho + 1, :, :] = body3
    p3[0:1, :, :] = p3[2:3, :, :]
    p3[Ho + 1:Ho + 2, :, :] = p3[Ho - 1:Ho, :, :]

    # ---- conv4 + ReLU: 3 matmuls of K = 3*C3, single lane-dense store --------
    K4 = 3 * C3
    acc4 = jnp.zeros((Ho * Wo, C4), jnp.float32)
    for dy in range(3):
        band = p3[dy:dy + Ho, :, :]                         # (Ho, Wo+2, C3)
        pk = jnp.concatenate(
            [band[:, dx:dx + Wo, :] for dx in range(3)], axis=-1)
        pk = pk.reshape(Ho * Wo, K4).astype(jnp.bfloat16)
        acc4 = acc4 + jnp.dot(pk, w4_ref[dy],
                              preferred_element_type=jnp.float32)
    y4 = jnp.maximum(acc4 + b4_ref[...], 0.0)               # (Ho*Wo, C4) f32
    o_ref[...] = y4.reshape(1, Ho, Wo, C4).astype(o_ref.dtype)


# ---------------------------------------------------------------------------
# Wrapper: fold conv1 into conv2, pack taps, im2col the 3-channel input,
# one fused pallas_call over the batch.
# ---------------------------------------------------------------------------

def encoder2_forward(x_nhwc, params):
    """x_nhwc: (N, H, W, 3) f32; params as built in __main__."""
    w1, b1, w2, b2, w3, b3, w4, b4 = params
    N, H, W, Cin = x_nhwc.shape
    assert H % 2 == 0 and W % 2 == 0 and H >= 4 and W >= 4, (H, W)
    Ho, Wo = H // 2, W // 2
    c2, c3, c4 = w2.shape[-1], w3.shape[-1], w4.shape[-1]

    hp = lax.Precision.HIGHEST
    # Fold the 1x1 conv (pointwise linear commutes with reflection padding)
    # into conv2: exact algebra, done once outside the kernel.  NOTE: this
    # changes intermediate rounding vs. PyTorch (conv1's output is never
    # materialized) -- fine at the 2e-2 test tolerance.
    w2f = jnp.einsum("ij,tjk->tik", w1, w2, precision=hp)         # (9, Cin, c2)
    b2f = b2 + jnp.dot(b1, jnp.sum(w2, axis=0), precision=hp)     # (1, c2)
    w2f = w2f.reshape(9 * Cin, c2).astype(jnp.bfloat16)           # (27, c2)

    # Tap packing by dy: (9, C, Cout) -> (3, 3*C, Cout); each 3x3 conv becomes
    # 3 MXU matmuls of K = 3*C (bf16 inputs, f32 accumulation).
    w3g = w3.reshape(3, 3 * c2, c3).astype(jnp.bfloat16)
    w4g = w4.reshape(3, 3 * c3, c4).astype(jnp.bfloat16)

    # im2col of the raw 3-channel input (reflection pad + 9 shifted windows):
    # pure data movement done in XLA, so the 3-lane-wide tensor never has to be
    # relaid out inside the kernel (3 channels would waste 125/128 lanes).
    xp = jnp.pad(x_nhwc, ((0, 0), (1, 1), (1, 1), (0, 0)), mode="reflect")
    patch2 = jnp.concatenate(
        [xp[:, dy:dy + H, dx:dx + W, :] for dy in range(3) for dx in range(3)],
        axis=-1).reshape(N, H * W, 9 * Cin).astype(jnp.bfloat16)

    return pl.pallas_call(
        _encoder2_kernel,
        out_shape=jax.ShapeDtypeStruct((N, Ho, Wo, c4), jnp.float32),
        grid=(N,),
        in_specs=[
            pl.BlockSpec((1, H * W, 9 * Cin), lambda n: (n, 0, 0)),
            pl.BlockSpec((9 * Cin, c2), lambda n: (0, 0)),
            pl.BlockSpec((1, c2), lambda n: (0, 0)),
            pl.BlockSpec((3, 3 * c2, c3), lambda n: (0, 0, 0)),
            pl.BlockSpec((1, c3), lambda n: (0, 0)),
            pl.BlockSpec((3, 3 * c3, c4), lambda n: (0, 0, 0)),
            pl.BlockSpec((1, c4), lambda n: (0, 0)),
        ],
        out_specs=pl.BlockSpec((1, Ho, Wo, c4), lambda n: (n, 0, 0, 0)),
        scratch_shapes=[
            pltpu.VMEM((H + 2, W + 2, c2), jnp.float32),    # padded conv2 out
            pltpu.VMEM((Ho + 2, Wo + 2, c3), jnp.float32),  # padded pooled out
        ],
        compiler_params=pltpu.CompilerParams(
            dimension_semantics=("parallel",)),
    )(patch2, w2f, b2f, w3g, b3, w4g, b4)


# ---------------------------------------------------------------------------
# Pure-JAX f32 reference (unfused, unfolded) for the correctness check
# ---------------------------------------------------------------------------

def _reflect_pad_hw(x):
    return jnp.pad(x, ((0, 0), (1, 1), (1, 1), (0, 0)), mode="reflect")


def _ref_forward(x, params):
    w1, b1, w2, b2, w3, b3, w4, b4 = params

    def conv(x, w_hwio, b):
        y = lax.conv_general_dilated(
            x, w_hwio, (1, 1), "VALID",
            dimension_numbers=("NHWC", "HWIO", "NHWC"),
            precision=lax.Precision.HIGHEST)
        return y + b.reshape(1, 1, 1, -1)

    x = conv(x, w1.reshape(1, 1, *w1.shape), b1)
    x = jax.nn.relu(conv(_reflect_pad_hw(x), w2.reshape(3, 3, *w2.shape[1:]), b2))
    x = jax.nn.relu(conv(_reflect_pad_hw(x), w3.reshape(3, 3, *w3.shape[1:]), b3))
    x = lax.reduce_window(x, -jnp.inf, lax.max, (1, 2, 2, 1), (1, 2, 2, 1), "VALID")
    x = jax.nn.relu(conv(_reflect_pad_hw(x), w4.reshape(3, 3, *w4.shape[1:]), b4))
    return x


# ---------------------------------------------------------------------------
# Main
# ---------------------------------------------------------------------------

if __name__ == "__main__":
    key = jax.random.PRNGKey(0)
    keys = jax.random.split(key, 9)

    N, H, W = 2, 16, 16
    x_nchw = jax.random.normal(keys[0], (N, 3, H, W), jnp.float32)

    def uinit(k, shape, fan_in):
        bound = 1.0 / float(fan_in) ** 0.5
        return jax.random.uniform(k, shape, jnp.float32, -bound, bound)

    # conv1: 1x1 3->3 ; conv2: 3x3 3->64 ; conv3: 3x3 64->64 ; conv4: 3x3 64->128
    w1 = uinit(keys[1], (3, 3), 3 * 1 * 1)                             # (Cin, Cout)
    b1 = uinit(keys[2], (1, 3), 3 * 1 * 1)
    w2 = uinit(keys[3], (3, 3, 3, 64), 3 * 3 * 3).reshape(9, 3, 64)    # HWIO -> taps
    b2 = uinit(keys[4], (1, 64), 3 * 3 * 3)
    w3 = uinit(keys[5], (3, 3, 64, 64), 64 * 3 * 3).reshape(9, 64, 64)
    b3 = uinit(keys[6], (1, 64), 64 * 3 * 3)
    w4 = uinit(keys[7], (3, 3, 64, 128), 64 * 3 * 3).reshape(9, 64, 128)
    b4 = uinit(keys[8], (1, 128), 64 * 3 * 3)
    params = (w1, b1, w2, b2, w3, b3, w4, b4)

    x_nhwc = jnp.transpose(x_nchw, (0, 2, 3, 1))            # NCHW -> NHWC
    out_nhwc = encoder2_forward(x_nhwc, params)
    out_nchw = jnp.transpose(out_nhwc, (0, 3, 1, 2))        # back to NCHW
    jax.block_until_ready(out_nchw)

    assert out_nchw.shape == (N, 128, H // 2, W // 2), out_nchw.shape

    ref = jnp.transpose(_ref_forward(x_nhwc, params), (0, 3, 1, 2))
    if not bool(jnp.allclose(out_nchw, ref, rtol=2e-2, atol=2e-2)):
        err = float(jnp.max(jnp.abs(out_nchw - ref)))
        raise AssertionError(
            f"Pallas encoder2 mismatch vs JAX reference (max abs err {err})")

    print("KERNEL_OK")
</pallas_src>

<mosaic_0001>
module attributes {stable_mosaic.version = 11 : i64} {
  func.func @_encoder2_kernel(%arg0: i32, %arg1: memref<1x256x27xbf16, #tpu.memory_space<vmem>>, %arg2: memref<27x64xbf16, #tpu.memory_space<vmem>>, %arg3: memref<1x64xf32, #tpu.memory_space<vmem>>, %arg4: memref<3x192x64xbf16, #tpu.memory_space<vmem>>, %arg5: memref<1x64xf32, #tpu.memory_space<vmem>>, %arg6: memref<3x192x128xbf16, #tpu.memory_space<vmem>>, %arg7: memref<1x128xf32, #tpu.memory_space<vmem>>, %arg8: memref<1x8x8x128xf32, #tpu.memory_space<vmem>>, %arg9: memref<18x18x64xf32, #tpu.memory_space<vmem>>, %arg10: memref<10x10x64xf32, #tpu.memory_space<vmem>>) attributes {dimension_semantics = [#tpu.dimension_semantics<parallel>], iteration_bounds = array<i64: 2>, scalar_prefetch = 0 : i64, scratch_operands = 2 : i64, tpu.core_type = #tpu.core_type<tc>, window_params = [{transform_indices = @transform_0, window_bounds = array<i64: 1, 256, 27>}, {pipeline_mode = #tpu.pipeline_mode<synchronous>, transform_indices = @transform_1, window_bounds = array<i64: 27, 64>}, {pipeline_mode = #tpu.pipeline_mode<synchronous>, transform_indices = @transform_2, window_bounds = array<i64: 1, 64>}, {pipeline_mode = #tpu.pipeline_mode<synchronous>, transform_indices = @transform_3, window_bounds = array<i64: 3, 192, 64>}, {pipeline_mode = #tpu.pipeline_mode<synchronous>, transform_indices = @transform_4, window_bounds = array<i64: 1, 64>}, {pipeline_mode = #tpu.pipeline_mode<synchronous>, transform_indices = @transform_5, window_bounds = array<i64: 3, 192, 128>}, {pipeline_mode = #tpu.pipeline_mode<synchronous>, transform_indices = @transform_6, window_bounds = array<i64: 1, 128>}, {transform_indices = @transform_7, window_bounds = array<i64: 1, 8, 8, 128>}]} {
    %c0 = arith.constant 0 : index
    %c0_0 = arith.constant 0 : index
    %c0_1 = arith.constant 0 : index
    %0 = vector.load %arg1[%c0, %c0_0, %c0_1] : memref<1x256x27xbf16, #tpu.memory_space<vmem>>, vector<1x256x27xbf16>
    %1 = vector.shape_cast %0 : vector<1x256x27xbf16> to vector<256x27xbf16>
    %c0_2 = arith.constant 0 : index
    %c0_3 = arith.constant 0 : index
    %2 = vector.load %arg2[%c0_2, %c0_3] : memref<27x64xbf16, #tpu.memory_space<vmem>>, vector<27x64xbf16>
    %cst = arith.constant dense<0.000000e+00> : vector<256x64xf32>
    %3 = tpu.matmul %1, %2, %cst {dimension_numbers = #tpu.dot_dimension_numbers<[1], [0], [0], [1], [0, 0, 1, 1], [], []>} : vector<256x27xbf16>, vector<27x64xbf16>, vector<256x64xf32> -> vector<256x64xf32>
    %c0_4 = arith.constant 0 : index
    %c0_5 = arith.constant 0 : index
    %4 = vector.load %arg3[%c0_4, %c0_5] : memref<1x64xf32, #tpu.memory_space<vmem>>, vector<1x64xf32>
    %5 = vector.broadcast %4 : vector<1x64xf32> to vector<256x64xf32>
    %6 = arith.addf %3, %5 : vector<256x64xf32>
    %cst_6 = arith.constant 0.000000e+00 : f32
    %7 = vector.broadcast %cst_6 : f32 to vector<256x64xf32>
    %8 = arith.maximumf %6, %7 : vector<256x64xf32>
    %9 = vector.shape_cast %8 : vector<256x64xf32> to vector<16x16x64xf32>
    %10 = vector.extract_strided_slice %9 {offsets = [0, 1, 0], sizes = [16, 1, 64], strides = [1, 1, 1]} : vector<16x16x64xf32> to vector<16x1x64xf32>
    %11 = vector.extract_strided_slice %9 {offsets = [0, 14, 0], sizes = [16, 1, 64], strides = [1, 1, 1]} : vector<16x16x64xf32> to vector<16x1x64xf32>
    %12 = tpu.concatenate %10, %9, %11 in 1 : vector<16x1x64xf32>, vector<16x16x64xf32>, vector<16x1x64xf32> -> vector<16x18x64xf32>
    %c1 = arith.constant 1 : index
    %c0_7 = arith.constant 0 : index
    %c0_8 = arith.constant 0 : index
    %13 = vector.load %arg9[%c1, %c0_7, %c0_8] : memref<18x18x64xf32, #tpu.memory_space<vmem>>, vector<16x18x64xf32>
    tpu.vector_store %arg9[%c1, %c0_7, %c0_8], %12 {strides = array<i32>} : memref<18x18x64xf32, #tpu.memory_space<vmem>>, vector<16x18x64xf32>,
    %c2 = arith.constant 2 : index
    %c0_9 = arith.constant 0 : index
    %c0_10 = arith.constant 0 : index
    %14 = vector.load %arg9[%c2, %c0_9, %c0_10] : memref<18x18x64xf32, #tpu.memory_space<vmem>>, vector<1x18x64xf32>
    %c0_11 = arith.constant 0 : index
    %c0_12 = arith.constant 0 : index
    %c0_13 = arith.constant 0 : index
    %15 = vector.load %arg9[%c0_11, %c0_12, %c0_13] : memref<18x18x64xf32, #tpu.memory_space<vmem>>, vector<1x18x64xf32>
    tpu.vector_store %arg9[%c0_11, %c0_12, %c0_13], %14 {strides = array<i32>} : memref<18x18x64xf32, #tpu.memory_space<vmem>>, vector<1x18x64xf32>,
    %c15 = arith.constant 15 : index
    %c0_14 = arith.constant 0 : index
    %c0_15 = arith.constant 0 : index
    %16 = vector.load %arg9[%c15, %c0_14, %c0_15] : memref<18x18x64xf32, #tpu.memory_space<vmem>>, vector<1x18x64xf32>
    %c17 = arith.constant 17 : index
    %c0_16 = arith.constant 0 : index
    %c0_17 = arith.constant 0 : index
    %17 = vector.load %arg9[%c17, %c0_16, %c0_17] : memref<18x18x64xf32, #tpu.memory_space<vmem>>, vector<1x18x64xf32>
    tpu.vector_store %arg9[%c17, %c0_16, %c0_17], %16 {strides = array<i32>} : memref<18x18x64xf32, #tpu.memory_space<vmem>>, vector<1x18x64xf32>,
    %cst_18 = arith.constant 0.000000e+00 : f32
    %18 = vector.broadcast %cst_18 : f32 to vector<64x64xf32>
    %c0_19 = arith.constant 0 : index
    %c0_20 = arith.constant 0 : index
    %c0_21 = arith.constant 0 : index
    %19 = vector.load %arg9[%c0_19, %c0_20, %c0_21] : memref<18x18x64xf32, #tpu.memory_space<vmem>>, vector<4x18x64xf32>
    %20 = vector.extract_strided_slice %19 {offsets = [0, 0, 0], sizes = [4, 16, 64], strides = [1, 1, 1]} : vector<4x18x64xf32> to vector<4x16x64xf32>
    %21 = vector.extract_strided_slice %19 {offsets = [0, 1, 0], sizes = [4, 16, 64], strides = [1, 1, 1]} : vector<4x18x64xf32> to vector<4x16x64xf32>
    %22 = vector.extract_strided_slice %19 {offsets = [0, 2, 0], sizes = [4, 16, 64], strides = [1, 1, 1]} : vector<4x18x64xf32> to vector<4x16x64xf32>
    %23 = tpu.concatenate %20, %21, %22 in 2 : vector<4x16x64xf32>, vector<4x16x64xf32>, vector<4x16x64xf32> -> vector<4x16x192xf32>
    %24 = vector.shape_cast %23 : vector<4x16x192xf32> to vector<64x192xf32>
    %25 = arith.truncf %24 : vector<64x192xf32> to vector<64x192xbf16>
    %c0_22 = arith.constant 0 : index
    %c0_23 = arith.constant 0 : index
    %c0_24 = arith.constant 0 : index
    %26 = vector.load %arg4[%c0_22, %c0_23, %c0_24] : memref<3x192x64xbf16, #tpu.memory_space<vmem>>, vector<1x192x64xbf16>
    %27 = vector.shape_cast %26 : vector<1x192x64xbf16> to vector<192x64xbf16>
    %cst_25 = arith.constant dense<0.000000e+00> : vector<64x64xf32>
    %28 = tpu.matmul %25, %27, %cst_25 {dimension_numbers = #tpu.dot_dimension_numbers<[1], [0], [0], [1], [0, 0, 1, 1], [], []>} : vector<64x192xbf16>, vector<192x64xbf16>, vector<64x64xf32> -> vector<64x64xf32>
    %29 = arith.addf %18, %28 : vector<64x64xf32>
    %c1_26 = arith.constant 1 : index
    %c0_27 = arith.constant 0 : index
    %c0_28 = arith.constant 0 : index
    %30 = vector.load %arg9[%c1_26, %c0_27, %c0_28] : memref<18x18x64xf32, #tpu.memory_space<vmem>>, vector<4x18x64xf32>
    %31 = vector.extract_strided_slice %30 {offsets = [0, 0, 0], sizes = [4, 16, 64], strides = [1, 1, 1]} : vector<4x18x64xf32> to vector<4x16x64xf32>
    %32 = vector.extract_strided_slice %30 {offsets = [0, 1, 0], sizes = [4, 16, 64], strides = [1, 1, 1]} : vector<4x18x64xf32> to vector<4x16x64xf32>
    %33 = vector.extract_strided_slice %30 {offsets = [0, 2, 0], sizes = [4, 16, 64], strides = [1, 1, 1]} : vector<4x18x64xf32> to vector<4x16x64xf32>
    %34 = tpu.concatenate %31, %32, %33 in 2 : vector<4x16x64xf32>, vector<4x16x64xf32>, vector<4x16x64xf32> -> vector<4x16x192xf32>
    %35 = vector.shape_cast %34 : vector<4x16x192xf32> to vector<64x192xf32>
    %36 = arith.truncf %35 : vector<64x192xf32> to vector<64x192xbf16>
    %c1_29 = arith.constant 1 : index
    %c0_30 = arith.constant 0 : index
    %c0_31 = arith.constant 0 : index
    %37 = vector.load %arg4[%c1_29, %c0_30, %c0_31] : memref<3x192x64xbf16, #tpu.memory_space<vmem>>, vector<1x192x64xbf16>
    %38 = vector.shape_cast %37 : vector<1x192x64xbf16> to vector<192x64xbf16>
    %cst_32 = arith.constant dense<0.000000e+00> : vector<64x64xf32>
    %39 = tpu.matmul %36, %38, %cst_32 {dimension_numbers = #tpu.dot_dimension_numbers<[1], [0], [0], [1], [0, 0, 1, 1], [], []>} : vector<64x192xbf16>, vector<192x64xbf16>, vector<64x64xf32> -> vector<64x64xf32>
    %40 = arith.addf %29, %39 : vector<64x64xf32>
    %c2_33 = arith.constant 2 : index
    %c0_34 = arith.constant 0 : index
    %c0_35 = arith.constant 0 : index
    %41 = vector.load %arg9[%c2_33, %c0_34, %c0_35] : memref<18x18x64xf32, #tpu.memory_space<vmem>>, vector<4x18x64xf32>
    %42 = vector.extract_strided_slice %41 {offsets = [0, 0, 0], sizes = [4, 16, 64], strides = [1, 1, 1]} : vector<4x18x64xf32> to vector<4x16x64xf32>
    %43 = vector.extract_strided_slice %41 {offsets = [0, 1, 0], sizes = [4, 16, 64], strides = [1, 1, 1]} : vector<4x18x64xf32> to vector<4x16x64xf32>
    %44 = vector.extract_strided_slice %41 {offsets = [0, 2, 0], sizes = [4, 16, 64], strides = [1, 1, 1]} : vector<4x18x64xf32> to vector<4x16x64xf32>
    %45 = tpu.concatenate %42, %43, %44 in 2 : vector<4x16x64xf32>, vector<4x16x64xf32>, vector<4x16x64xf32> -> vector<4x16x192xf32>
    %46 = vector.shape_cast %45 : vector<4x16x192xf32> to vector<64x192xf32>
    %47 = arith.truncf %46 : vector<64x192xf32> to vector<64x192xbf16>
    %c2_36 = arith.constant 2 : index
    %c0_37 = arith.constant 0 : index
    %c0_38 = arith.constant 0 : index
    %48 = vector.load %arg4[%c2_36, %c0_37, %c0_38] : memref<3x192x64xbf16, #tpu.memory_space<vmem>>, vector<1x192x64xbf16>
    %49 = vector.shape_cast %48 : vector<1x192x64xbf16> to vector<192x64xbf16>
    %cst_39 = arith.constant dense<0.000000e+00> : vector<64x64xf32>
    %50 = tpu.matmul %47, %49, %cst_39 {dimension_numbers = #tpu.dot_dimension_numbers<[1], [0], [0], [1], [0, 0, 1, 1], [], []>} : vector<64x192xbf16>, vector<192x64xbf16>, vector<64x64xf32> -> vector<64x64xf32>
    %51 = arith.addf %40, %50 : vector<64x64xf32>
    %c0_40 = arith.constant 0 : index
    %c0_41 = arith.constant 0 : index
    %52 = vector.load %arg5[%c0_40, %c0_41] : memref<1x64xf32, #tpu.memory_space<vmem>>, vector<1x64xf32>
    %53 = vector.broadcast %52 : vector<1x64xf32> to vector<64x64xf32>
    %54 = arith.addf %51, %53 : vector<64x64xf32>
    %cst_42 = arith.constant 0.000000e+00 : f32
    %55 = vector.broadcast %cst_42 : f32 to vector<64x64xf32>
    %56 = arith.maximumf %54, %55 : vector<64x64xf32>
    %57 = vector.shape_cast %56 : vector<64x64xf32> to vector<2x2x16x64xf32>
    %58 = vector.extract_strided_slice %57 {offsets = [0, 0, 0, 0], sizes = [2, 1, 16, 64], strides = [1, 1, 1, 1]} : vector<2x2x16x64xf32> to vector<2x1x16x64xf32>
    %59 = vector.shape_cast %58 : vector<2x1x16x64xf32> to vector<2x16x64xf32>
    %60 = vector.extract_strided_slice %57 {offsets = [0, 1, 0, 0], sizes = [2, 1, 16, 64], strides = [1, 1, 1, 1]} : vector<2x2x16x64xf32> to vector<2x1x16x64xf32>
    %61 = vector.shape_cast %60 : vector<2x1x16x64xf32> to vector<2x16x64xf32>
    %62 = arith.maximumf %59, %61 : vector<2x16x64xf32>
    %cst_43 = arith.constant 0.000000e+00 : f32
    %63 = vector.broadcast %cst_43 : f32 to vector<64x64xf32>
    %c4 = arith.constant 4 : index
    %c0_44 = arith.constant 0 : index
    %c0_45 = arith.constant 0 : index
    %64 = vector.load %arg9[%c4, %c0_44, %c0_45] : memref<18x18x64xf32, #tpu.memory_space<vmem>>, vector<4x18x64xf32>
    %65 = vector.extract_strided_slice %64 {offsets = [0, 0, 0], sizes = [4, 16, 64], strides = [1, 1, 1]} : vector<4x18x64xf32> to vector<4x16x64xf32>
    %66 = vector.extract_strided_slice %64 {offsets = [0, 1, 0], sizes = [4, 16, 64], strides = [1, 1, 1]} : vector<4x18x64xf32> to vector<4x16x64xf32>
    %67 = vector.extract_strided_slice %64 {offsets = [0, 2, 0], sizes = [4, 16, 64], strides = [1, 1, 1]} : vector<4x18x64xf32> to vector<4x16x64xf32>
    %68 = tpu.concatenate %65, %66, %67 in 2 : vector<4x16x64xf32>, vector<4x16x64xf32>, vector<4x16x64xf32> -> vector<4x16x192xf32>
    %69 = vector.shape_cast %68 : vector<4x16x192xf32> to vector<64x192xf32>
    %70 = arith.truncf %69 : vector<64x192xf32> to vector<64x192xbf16>
    %c0_46 = arith.constant 0 : index
    %c0_47 = arith.constant 0 : index
    %c0_48 = arith.constant 0 : index
    %71 = vector.load %arg4[%c0_46, %c0_47, %c0_48] : memref<3x192x64xbf16, #tpu.memory_space<vmem>>, vector<1x192x64xbf16>
    %72 = vector.shape_cast %71 : vector<1x192x64xbf16> to vector<192x64xbf16>
    %cst_49 = arith.constant dense<0.000000e+00> : vector<64x64xf32>
    %73 = tpu.matmul %70, %72, %cst_49 {dimension_numbers = #tpu.dot_dimension_numbers<[1], [0], [0], [1], [0, 0, 1, 1], [], []>} : vector<64x192xbf16>, vector<192x64xbf16>, vector<64x64xf32> -> vector<64x64xf32>
    %74 = arith.addf %63, %73 : vector<64x64xf32>
    %c5 = arith.constant 5 : index
    %c0_50 = arith.constant 0 : index
    %c0_51 = arith.constant 0 : index
    %75 = vector.load %arg9[%c5, %c0_50, %c0_51] : memref<18x18x64xf32, #tpu.memory_space<vmem>>, vector<4x18x64xf32>
    %76 = vector.extract_strided_slice %75 {offsets = [0, 0, 0], sizes = [4, 16, 64], strides = [1, 1, 1]} : vector<4x18x64xf32> to vector<4x16x64xf32>
    %77 = vector.extract_strided_slice %75 {offsets = [0, 1, 0], sizes = [4, 16, 64], strides = [1, 1, 1]} : vector<4x18x64xf32> to vector<4x16x64xf32>
    %78 = vector.extract_strided_slice %75 {offsets = [0, 2, 0], sizes = [4, 16, 64], strides = [1, 1, 1]} : vector<4x18x64xf32> to vector<4x16x64xf32>
    %79 = tpu.concatenate %76, %77, %78 in 2 : vector<4x16x64xf32>, vector<4x16x64xf32>, vector<4x16x64xf32> -> vector<4x16x192xf32>
    %80 = vector.shape_cast %79 : vector<4x16x192xf32> to vector<64x192xf32>
    %81 = arith.truncf %80 : vector<64x192xf32> to vector<64x192xbf16>
    %c1_52 = arith.constant 1 : index
    %c0_53 = arith.constant 0 : index
    %c0_54 = arith.constant 0 : index
    %82 = vector.load %arg4[%c1_52, %c0_53, %c0_54] : memref<3x192x64xbf16, #tpu.memory_space<vmem>>, vector<1x192x64xbf16>
    %83 = vector.shape_cast %82 : vector<1x192x64xbf16> to vector<192x64xbf16>
    %cst_55 = arith.constant dense<0.000000e+00> : vector<64x64xf32>
    %84 = tpu.matmul %81, %83, %cst_55 {dimension_numbers = #tpu.dot_dimension_numbers<[1], [0], [0], [1], [0, 0, 1, 1], [], []>} : vector<64x192xbf16>, vector<192x64xbf16>, vector<64x64xf32> -> vector<64x64xf32>
    %85 = arith.addf %74, %84 : vector<64x64xf32>
    %c6 = arith.constant 6 : index
    %c0_56 = arith.constant 0 : index
    %c0_57 = arith.constant 0 : index
    %86 = vector.load %arg9[%c6, %c0_56, %c0_57] : memref<18x18x64xf32, #tpu.memory_space<vmem>>, vector<4x18x64xf32>
    %87 = vector.extract_strided_slice %86 {offsets = [0, 0, 0], sizes = [4, 16, 64], strides = [1, 1, 1]} : vector<4x18x64xf32> to vector<4x16x64xf32>
    %88 = vector.extract_strided_slice %86 {offsets = [0, 1, 0], sizes = [4, 16, 64], strides = [1, 1, 1]} : vector<4x18x64xf32> to vector<4x16x64xf32>
    %89 = vector.extract_strided_slice %86 {offsets = [0, 2, 0], sizes = [4, 16, 64], strides = [1, 1, 1]} : vector<4x18x64xf32> to vector<4x16x64xf32>
    %90 = tpu.concatenate %87, %88, %89 in 2 : vector<4x16x64xf32>, vector<4x16x64xf32>, vector<4x16x64xf32> -> vector<4x16x192xf32>
    %91 = vector.shape_cast %90 : vector<4x16x192xf32> to vector<64x192xf32>
    %92 = arith.truncf %91 : vector<64x192xf32> to vector<64x192xbf16>
    %c2_58 = arith.constant 2 : index
    %c0_59 = arith.constant 0 : index
    %c0_60 = arith.constant 0 : index
    %93 = vector.load %arg4[%c2_58, %c0_59, %c0_60] : memref<3x192x64xbf16, #tpu.memory_space<vmem>>, vector<1x192x64xbf16>
    %94 = vector.shape_cast %93 : vector<1x192x64xbf16> to vector<192x64xbf16>
    %cst_61 = arith.constant dense<0.000000e+00> : vector<64x64xf32>
    %95 = tpu.matmul %92, %94, %cst_61 {dimension_numbers = #tpu.dot_dimension_numbers<[1], [0], [0], [1], [0, 0, 1, 1], [], []>} : vector<64x192xbf16>, vector<192x64xbf16>, vector<64x64xf32> -> vector<64x64xf32>
    %96 = arith.addf %85, %95 : vector<64x64xf32>
    %c0_62 = arith.constant 0 : index
    %c0_63 = arith.constant 0 : index
    %97 = vector.load %arg5[%c0_62, %c0_63] : memref<1x64xf32, #tpu.memory_space<vmem>>, vector<1x64xf32>
    %98 = vector.broadcast %97 : vector<1x64xf32> to vector<64x64xf32>
    %99 = arith.addf %96, %98 : vector<64x64xf32>
    %cst_64 = arith.constant 0.000000e+00 : f32
    %100 = vector.broadcast %cst_64 : f32 to vector<64x64xf32>
    %101 = arith.maximumf %99, %100 : vector<64x64xf32>
    %102 = vector.shape_cast %101 : vector<64x64xf32> to vector<2x2x16x64xf32>
    %103 = vector.extract_strided_slice %102 {offsets = [0, 0, 0, 0], sizes = [2, 1, 16, 64], strides = [1, 1, 1, 1]} : vector<2x2x16x64xf32> to vector<2x1x16x64xf32>
    %104 = vector.shape_cast %103 : vector<2x1x16x64xf32> to vector<2x16x64xf32>
    %105 = vector.extract_strided_slice %102 {offsets = [0, 1, 0, 0], sizes = [2, 1, 16, 64], strides = [1, 1, 1, 1]} : vector<2x2x16x64xf32> to vector<2x1x16x64xf32>
    %106 = vector.shape_cast %105 : vector<2x1x16x64xf32> to vector<2x16x64xf32>
    %107 = arith.maximumf %104, %106 : vector<2x16x64xf32>
    %cst_65 = arith.constant 0.000000e+00 : f32
    %108 = vector.broadcast %cst_65 : f32 to vector<64x64xf32>
    %c8 = arith.constant 8 : index
    %c0_66 = arith.constant 0 : index
    %c0_67 = arith.constant 0 : index
    %109 = vector.load %arg9[%c8, %c0_66, %c0_67] : memref<18x18x64xf32, #tpu.memory_space<vmem>>, vector<4x18x64xf32>
    %110 = vector.extract_strided_slice %109 {offsets = [0, 0, 0], sizes = [4, 16, 64], strides = [1, 1, 1]} : vector<4x18x64xf32> to vector<4x16x64xf32>
    %111 = vector.extract_strided_slice %109 {offsets = [0, 1, 0], sizes = [4, 16, 64], strides = [1, 1, 1]} : vector<4x18x64xf32> to vector<4x16x64xf32>
    %112 = vector.extract_strided_slice %109 {offsets = [0, 2, 0], sizes = [4, 16, 64], strides = [1, 1, 1]} : vector<4x18x64xf32> to vector<4x16x64xf32>
    %113 = tpu.concatenate %110, %111, %112 in 2 : vector<4x16x64xf32>, vector<4x16x64xf32>, vector<4x16x64xf32> -> vector<4x16x192xf32>
    %114 = vector.shape_cast %113 : vector<4x16x192xf32> to vector<64x192xf32>
    %115 = arith.truncf %114 : vector<64x192xf32> to vector<64x192xbf16>
    %c0_68 = arith.constant 0 : index
    %c0_69 = arith.constant 0 : index
    %c0_70 = arith.constant 0 : index
    %116 = vector.load %arg4[%c0_68, %c0_69, %c0_70] : memref<3x192x64xbf16, #tpu.memory_space<vmem>>, vector<1x192x64xbf16>
    %117 = vector.shape_cast %116 : vector<1x192x64xbf16> to vector<192x64xbf16>
    %cst_71 = arith.constant dense<0.000000e+00> : vector<64x64xf32>
    %118 = tpu.matmul %115, %117, %cst_71 {dimension_numbers = #tpu.dot_dimension_numbers<[1], [0], [0], [1], [0, 0, 1, 1], [], []>} : vector<64x192xbf16>, vector<192x64xbf16>, vector<64x64xf32> -> vector<64x64xf32>
    %119 = arith.addf %108, %118 : vector<64x64xf32>
    %c9 = arith.constant 9 : index
    %c0_72 = arith.constant 0 : index
    %c0_73 = arith.constant 0 : index
    %120 = vector.load %arg9[%c9, %c0_72, %c0_73] : memref<18x18x64xf32, #tpu.memory_space<vmem>>, vector<4x18x64xf32>
    %121 = vector.extract_strided_slice %120 {offsets = [0, 0, 0], sizes = [4, 16, 64], strides = [1, 1, 1]} : vector<4x18x64xf32> to vector<4x16x64xf32>
    %122 = vector.extract_strided_slice %120 {offsets = [0, 1, 0], sizes = [4, 16, 64], strides = [1, 1, 1]} : vector<4x18x64xf32> to vector<4x16x64xf32>
    %123 = vector.extract_strided_slice %120 {offsets = [0, 2, 0], sizes = [4, 16, 64], strides = [1, 1, 1]} : vector<4x18x64xf32> to vector<4x16x64xf32>
    %124 = tpu.concatenate %121, %122, %123 in 2 : vector<4x16x64xf32>, vector<4x16x64xf32>, vector<4x16x64xf32> -> vector<4x16x192xf32>
    %125 = vector.shape_cast %124 : vector<4x16x192xf32> to vector<64x192xf32>
    %126 = arith.truncf %125 : vector<64x192xf32> to vector<64x192xbf16>
    %c1_74 = arith.constant 1 : index
    %c0_75 = arith.constant 0 : index
    %c0_76 = arith.constant 0 : index
    %127 = vector.load %arg4[%c1_74, %c0_75, %c0_76] : memref<3x192x64xbf16, #tpu.memory_space<vmem>>, vector<1x192x64xbf16>
    %128 = vector.shape_cast %127 : vector<1x192x64xbf16> to vector<192x64xbf16>
    %cst_77 = arith.constant dense<0.000000e+00> : vector<64x64xf32>
    %129 = tpu.matmul %126, %128, %cst_77 {dimension_numbers = #tpu.dot_dimension_numbers<[1], [0], [0], [1], [0, 0, 1, 1], [], []>} : vector<64x192xbf16>, vector<192x64xbf16>, vector<64x64xf32> -> vector<64x64xf32>
    %130 = arith.addf %119, %129 : vector<64x64xf32>
    %c10 = arith.constant 10 : index
    %c0_78 = arith.constant 0 : index
    %c0_79 = arith.constant 0 : index
    %131 = vector.load %arg9[%c10, %c0_78, %c0_79] : memref<18x18x64xf32, #tpu.memory_space<vmem>>, vector<4x18x64xf32>
    %132 = vector.extract_strided_slice %131 {offsets = [0, 0, 0], sizes = [4, 16, 64], strides = [1, 1, 1]} : vector<4x18x64xf32> to vector<4x16x64xf32>
    %133 = vector.extract_strided_slice %131 {offsets = [0, 1, 0], sizes = [4, 16, 64], strides = [1, 1, 1]} : vector<4x18x64xf32> to vector<4x16x64xf32>
    %134 = vector.extract_strided_slice %131 {offsets = [0, 2, 0], sizes = [4, 16, 64], strides = [1, 1, 1]} : vector<4x18x64xf32> to vector<4x16x64xf32>
    %135 = tpu.concatenate %132, %133, %134 in 2 : vector<4x16x64xf32>, vector<4x16x64xf32>, vector<4x16x64xf32> -> vector<4x16x192xf32>
    %136 = vector.shape_cast %135 : vector<4x16x192xf32> to vector<64x192xf32>
    %137 = arith.truncf %136 : vector<64x192xf32> to vector<64x192xbf16>
    %c2_80 = arith.constant 2 : index
    %c0_81 = arith.constant 0 : index
    %c0_82 = arith.constant 0 : index
    %138 = vector.load %arg4[%c2_80, %c0_81, %c0_82] : memref<3x192x64xbf16, #tpu.memory_space<vmem>>, vector<1x192x64xbf16>
    %139 = vector.shape_cast %138 : vector<1x192x64xbf16> to vector<192x64xbf16>
    %cst_83 = arith.constant dense<0.000000e+00> : vector<64x64xf32>
    %140 = tpu.matmul %137, %139, %cst_83 {dimension_numbers = #tpu.dot_dimension_numbers<[1], [0], [0], [1], [0, 0, 1, 1], [], []>} : vector<64x192xbf16>, vector<192x64xbf16>, vector<64x64xf32> -> vector<64x64xf32>
    %141 = arith.addf %130, %140 : vector<64x64xf32>
    %c0_84 = arith.constant 0 : index
    %c0_85 = arith.constant 0 : index
    %142 = vector.load %arg5[%c0_84, %c0_85] : memref<1x64xf32, #tpu.memory_space<vmem>>, vector<1x64xf32>
    %143 = vector.broadcast %142 : vector<1x64xf32> to vector<64x64xf32>
    %144 = arith.addf %141, %143 : vector<64x64xf32>
    %cst_86 = arith.constant 0.000000e+00 : f32
    %145 = vector.broadcast %cst_86 : f32 to vector<64x64xf32>
    %146 = arith.maximumf %144, %145 : vector<64x64xf32>
    %147 = vector.shape_cast %146 : vector<64x64xf32> to vector<2x2x16x64xf32>
    %148 = vector.extract_strided_slice %147 {offsets = [0, 0, 0, 0], sizes = [2, 1, 16, 64], strides = [1, 1, 1, 1]} : vector<2x2x16x64xf32> to vector<2x1x16x64xf32>
    %149 = vector.shape_cast %148 : vector<2x1x16x64xf32> to vector<2x16x64xf32>
    %150 = vector.extract_strided_slice %147 {offsets = [0, 1, 0, 0], sizes = [2, 1, 16, 64], strides = [1, 1, 1, 1]} : vector<2x2x16x64xf32> to vector<2x1x16x64xf32>
    %151 = vector.shape_cast %150 : vector<2x1x16x64xf32> to vector<2x16x64xf32>
    %152 = arith.maximumf %149, %151 : vector<2x16x64xf32>
    %cst_87 = arith.constant 0.000000e+00 : f32
    %153 = vector.broadcast %cst_87 : f32 to vector<64x64xf32>
    %c12 = arith.constant 12 : index
    %c0_88 = arith.constant 0 : index
    %c0_89 = arith.constant 0 : index
    %154 = vector.load %arg9[%c12, %c0_88, %c0_89] : memref<18x18x64xf32, #tpu.memory_space<vmem>>, vector<4x18x64xf32>
    %155 = vector.extract_strided_slice %154 {offsets = [0, 0, 0], sizes = [4, 16, 64], strides = [1, 1, 1]} : vector<4x18x64xf32> to vector<4x16x64xf32>
    %156 = vector.extract_strided_slice %154 {offsets = [0, 1, 0], sizes = [4, 16, 64], strides = [1, 1, 1]} : vector<4x18x64xf32> to vector<4x16x64xf32>
    %157 = vector.extract_strided_slice %154 {offsets = [0, 2, 0], sizes = [4, 16, 64], strides = [1, 1, 1]} : vector<4x18x64xf32> to vector<4x16x64xf32>
    %158 = tpu.concatenate %155, %156, %157 in 2 : vector<4x16x64xf32>, vector<4x16x64xf32>, vector<4x16x64xf32> -> vector<4x16x192xf32>
    %159 = vector.shape_cast %158 : vector<4x16x192xf32> to vector<64x192xf32>
    %160 = arith.truncf %159 : vector<64x192xf32> to vector<64x192xbf16>
    %c0_90 = arith.constant 0 : index
    %c0_91 = arith.constant 0 : index
    %c0_92 = arith.constant 0 : index
    %161 = vector.load %arg4[%c0_90, %c0_91, %c0_92] : memref<3x192x64xbf16, #tpu.memory_space<vmem>>, vector<1x192x64xbf16>
    %162 = vector.shape_cast %161 : vector<1x192x64xbf16> to vector<192x64xbf16>
    %cst_93 = arith.constant dense<0.000000e+00> : vector<64x64xf32>
    %163 = tpu.matmul %160, %162, %cst_93 {dimension_numbers = #tpu.dot_dimension_numbers<[1], [0], [0], [1], [0, 0, 1, 1], [], []>} : vector<64x192xbf16>, vector<192x64xbf16>, vector<64x64xf32> -> vector<64x64xf32>
    %164 = arith.addf %153, %163 : vector<64x64xf32>
    %c13 = arith.constant 13 : index
    %c0_94 = arith.constant 0 : index
    %c0_95 = arith.constant 0 : index
    %165 = vector.load %arg9[%c13, %c0_94, %c0_95] : memref<18x18x64xf32, #tpu.memory_space<vmem>>, vector<4x18x64xf32>
    %166 = vector.extract_strided_slice %165 {offsets = [0, 0, 0], sizes = [4, 16, 64], strides = [1, 1, 1]} : vector<4x18x64xf32> to vector<4x16x64xf32>
    %167 = vector.extract_strided_slice %165 {offsets = [0, 1, 0], sizes = [4, 16, 64], strides = [1, 1, 1]} : vector<4x18x64xf32> to vector<4x16x64xf32>
    %168 = vector.extract_strided_slice %165 {offsets = [0, 2, 0], sizes = [4, 16, 64], strides = [1, 1, 1]} : vector<4x18x64xf32> to vector<4x16x64xf32>
    %169 = tpu.concatenate %166, %167, %168 in 2 : vector<4x16x64xf32>, vector<4x16x64xf32>, vector<4x16x64xf32> -> vector<4x16x192xf32>
    %170 = vector.shape_cast %169 : vector<4x16x192xf32> to vector<64x192xf32>
    %171 = arith.truncf %170 : vector<64x192xf32> to vector<64x192xbf16>
    %c1_96 = arith.constant 1 : index
    %c0_97 = arith.constant 0 : index
    %c0_98 = arith.constant 0 : index
    %172 = vector.load %arg4[%c1_96, %c0_97, %c0_98] : memref<3x192x64xbf16, #tpu.memory_space<vmem>>, vector<1x192x64xbf16>
    %173 = vector.shape_cast %172 : vector<1x192x64xbf16> to vector<192x64xbf16>
    %cst_99 = arith.constant dense<0.000000e+00> : vector<64x64xf32>
    %174 = tpu.matmul %171, %173, %cst_99 {dimension_numbers = #tpu.dot_dimension_numbers<[1], [0], [0], [1], [0, 0, 1, 1], [], []>} : vector<64x192xbf16>, vector<192x64xbf16>, vector<64x64xf32> -> vector<64x64xf32>
    %175 = arith.addf %164, %174 : vector<64x64xf32>
    %c14 = arith.constant 14 : index
    %c0_100 = arith.constant 0 : index
    %c0_101 = arith.constant 0 : index
    %176 = vector.load %arg9[%c14, %c0_100, %c0_101] : memref<18x18x64xf32, #tpu.memory_space<vmem>>, vector<4x18x64xf32>
    %177 = vector.extract_strided_slice %176 {offsets = [0, 0, 0], sizes = [4, 16, 64], strides = [1, 1, 1]} : vector<4x18x64xf32> to vector<4x16x64xf32>
    %178 = vector.extract_strided_slice %176 {offsets = [0, 1, 0], sizes = [4, 16, 64], strides = [1, 1, 1]} : vector<4x18x64xf32> to vector<4x16x64xf32>
    %179 = vector.extract_strided_slice %176 {offsets = [0, 2, 0], sizes = [4, 16, 64], strides = [1, 1, 1]} : vector<4x18x64xf32> to vector<4x16x64xf32>
    %180 = tpu.concatenate %177, %178, %179 in 2 : vector<4x16x64xf32>, vector<4x16x64xf32>, vector<4x16x64xf32> -> vector<4x16x192xf32>
    %181 = vector.shape_cast %180 : vector<4x16x192xf32> to vector<64x192xf32>
    %182 = arith.truncf %181 : vector<64x192xf32> to vector<64x192xbf16>
    %c2_102 = arith.constant 2 : index
    %c0_103 = arith.constant 0 : index
    %c0_104 = arith.constant 0 : index
    %183 = vector.load %arg4[%c2_102, %c0_103, %c0_104] : memref<3x192x64xbf16, #tpu.memory_space<vmem>>, vector<1x192x64xbf16>
    %184 = vector.shape_cast %183 : vector<1x192x64xbf16> to vector<192x64xbf16>
    %cst_105 = arith.constant dense<0.000000e+00> : vector<64x64xf32>
    %185 = tpu.matmul %182, %184, %cst_105 {dimension_numbers = #tpu.dot_dimension_numbers<[1], [0], [0], [1], [0, 0, 1, 1], [], []>} : vector<64x192xbf16>, vector<192x64xbf16>, vector<64x64xf32> -> vector<64x64xf32>
    %186 = arith.addf %175, %185 : vector<64x64xf32>
    %c0_106 = arith.constant 0 : index
    %c0_107 = arith.constant 0 : index
    %187 = vector.load %arg5[%c0_106, %c0_107] : memref<1x64xf32, #tpu.memory_space<vmem>>, vector<1x64xf32>
    %188 = vector.broadcast %187 : vector<1x64xf32> to vector<64x64xf32>
    %189 = arith.addf %186, %188 : vector<64x64xf32>
    %cst_108 = arith.constant 0.000000e+00 : f32
    %190 = vector.broadcast %cst_108 : f32 to vector<64x64xf32>
    %191 = arith.maximumf %189, %190 : vector<64x64xf32>
    %192 = vector.shape_cast %191 : vector<64x64xf32> to vector<2x2x16x64xf32>
    %193 = vector.extract_strided_slice %192 {offsets = [0, 0, 0, 0], sizes = [2, 1, 16, 64], strides = [1, 1, 1, 1]} : vector<2x2x16x64xf32> to vector<2x1x16x64xf32>
    %194 = vector.shape_cast %193 : vector<2x1x16x64xf32> to vector<2x16x64xf32>
    %195 = vector.extract_strided_slice %192 {offsets = [0, 1, 0, 0], sizes = [2, 1, 16, 64], strides = [1, 1, 1, 1]} : vector<2x2x16x64xf32> to vector<2x1x16x64xf32>
    %196 = vector.shape_cast %195 : vector<2x1x16x64xf32> to vector<2x16x64xf32>
    %197 = arith.maximumf %194, %196 : vector<2x16x64xf32>
    %198 = tpu.concatenate %62, %107, %152, %197 in 0 : vector<2x16x64xf32>, vector<2x16x64xf32>, vector<2x16x64xf32>, vector<2x16x64xf32> -> vector<8x16x64xf32>
    %199 = vector.extract_strided_slice %198 {offsets = [0, 0, 0], sizes = [8, 1, 64], strides = [1, 1, 1]} : vector<8x16x64xf32> to vector<8x1x64xf32>
    %200 = vector.extract_strided_slice %198 {offsets = [0, 2, 0], sizes = [8, 1, 64], strides = [1, 1, 1]} : vector<8x16x64xf32> to vector<8x1x64xf32>
    %201 = vector.extract_strided_slice %198 {offsets = [0, 4, 0], sizes = [8, 1, 64], strides = [1, 1, 1]} : vector<8x16x64xf32> to vector<8x1x64xf32>
    %202 = vector.extract_strided_slice %198 {offsets = [0, 6, 0], sizes = [8, 1, 64], strides = [1, 1, 1]} : vector<8x16x64xf32> to vector<8x1x64xf32>
    %203 = vector.extract_strided_slice %198 {offsets = [0, 8, 0], sizes = [8, 1, 64], strides = [1, 1, 1]} : vector<8x16x64xf32> to vector<8x1x64xf32>
    %204 = vector.extract_strided_slice %198 {offsets = [0, 10, 0], sizes = [8, 1, 64], strides = [1, 1, 1]} : vector<8x16x64xf32> to vector<8x1x64xf32>
    %205 = vector.extract_strided_slice %198 {offsets = [0, 12, 0], sizes = [8, 1, 64], strides = [1, 1, 1]} : vector<8x16x64xf32> to vector<8x1x64xf32>
    %206 = vector.extract_strided_slice %198 {offsets = [0, 14, 0], sizes = [8, 1, 64], strides = [1, 1, 1]} : vector<8x16x64xf32> to vector<8x1x64xf32>
    %207 = tpu.concatenate %199, %200, %201, %202, %203, %204, %205, %206 in 1 : vector<8x1x64xf32>, vector<8x1x64xf32>, vector<8x1x64xf32>, vector<8x1x64xf32>, vector<8x1x64xf32>, vector<8x1x64xf32>, vector<8x1x64xf32>, vector<8x1x64xf32> -> vector<8x8x64xf32>
    %208 = vector.extract_strided_slice %198 {offsets = [0, 1, 0], sizes = [8, 1, 64], strides = [1, 1, 1]} : vector<8x16x64xf32> to vector<8x1x64xf32>
    %209 = vector.extract_strided_slice %198 {offsets = [0, 3, 0], sizes = [8, 1, 64], strides = [1, 1, 1]} : vector<8x16x64xf32> to vector<8x1x64xf32>
    %210 = vector.extract_strided_slice %198 {offsets = [0, 5, 0], sizes = [8, 1, 64], strides = [1, 1, 1]} : vector<8x16x64xf32> to vector<8x1x64xf32>
    %211 = vector.extract_strided_slice %198 {offsets = [0, 7, 0], sizes = [8, 1, 64], strides = [1, 1, 1]} : vector<8x16x64xf32> to vector<8x1x64xf32>
    %212 = vector.extract_strided_slice %198 {offsets = [0, 9, 0], sizes = [8, 1, 64], strides = [1, 1, 1]} : vector<8x16x64xf32> to vector<8x1x64xf32>
    %213 = vector.extract_strided_slice %198 {offsets = [0, 11, 0], sizes = [8, 1, 64], strides = [1, 1, 1]} : vector<8x16x64xf32> to vector<8x1x64xf32>
    %214 = vector.extract_strided_slice %198 {offsets = [0, 13, 0], sizes = [8, 1, 64], strides = [1, 1, 1]} : vector<8x16x64xf32> to vector<8x1x64xf32>
    %215 = vector.extract_strided_slice %198 {offsets = [0, 15, 0], sizes = [8, 1, 64], strides = [1, 1, 1]} : vector<8x16x64xf32> to vector<8x1x64xf32>
    %216 = tpu.concatenate %208, %209, %210, %211, %212, %213, %214, %215 in 1 : vector<8x1x64xf32>, vector<8x1x64xf32>, vector<8x1x64xf32>, vector<8x1x64xf32>, vector<8x1x64xf32>, vector<8x1x64xf32>, vector<8x1x64xf32>, vector<8x1x64xf32> -> vector<8x8x64xf32>
    %217 = arith.maximumf %207, %216 : vector<8x8x64xf32>
    %218 = vector.extract_strided_slice %217 {offsets = [0, 1, 0], sizes = [8, 1, 64], strides = [1, 1, 1]} : vector<8x8x64xf32> to vector<8x1x64xf32>
    %219 = vector.extract_strided_slice %217 {offsets = [0, 6, 0], sizes = [8, 1, 64], strides = [1, 1, 1]} : vector<8x8x64xf32> to vector<8x1x64xf32>
    %220 = tpu.concatenate %218, %217, %219 in 1 : vector<8x1x64xf32>, vector<8x8x64xf32>, vector<8x1x64xf32> -> vector<8x10x64xf32>
    %c1_109 = arith.constant 1 : index
    %c0_110 = arith.constant 0 : index
    %c0_111 = arith.constant 0 : index
    %221 = vector.load %arg10[%c1_109, %c0_110, %c0_111] : memref<10x10x64xf32, #tpu.memory_space<vmem>>, vector<8x10x64xf32>
    tpu.vector_store %arg10[%c1_109, %c0_110, %c0_111], %220 {strides = array<i32>} : memref<10x10x64xf32, #tpu.memory_space<vmem>>, vector<8x10x64xf32>,
    %c2_112 = arith.constant 2 : index
    %c0_113 = arith.constant 0 : index
    %c0_114 = arith.constant 0 : index
    %222 = vector.load %arg10[%c2_112, %c0_113, %c0_114] : memref<10x10x64xf32, #tpu.memory_space<vmem>>, vector<1x10x64xf32>
    %c0_115 = arith.constant 0 : index
    %c0_116 = arith.constant 0 : index
    %c0_117 = arith.constant 0 : index
    %223 = vector.load %arg10[%c0_115, %c0_116, %c0_117] : memref<10x10x64xf32, #tpu.memory_space<vmem>>, vector<1x10x64xf32>
    tpu.vector_store %arg10[%c0_115, %c0_116, %c0_117], %222 {strides = array<i32>} : memref<10x10x64xf32, #tpu.memory_space<vmem>>, vector<1x10x64xf32>,
    %c7 = arith.constant 7 : index
    %c0_118 = arith.constant 0 : index
    %c0_119 = arith.constant 0 : index
    %224 = vector.load %arg10[%c7, %c0_118, %c0_119] : memref<10x10x64xf32, #tpu.memory_space<vmem>>, vector<1x10x64xf32>
    %c9_120 = arith.constant 9 : index
    %c0_121 = arith.constant 0 : index
    %c0_122 = arith.constant 0 : index
    %225 = vector.load %arg10[%c9_120, %c0_121, %c0_122] : memref<10x10x64xf32, #tpu.memory_space<vmem>>, vector<1x10x64xf32>
    tpu.vector_store %arg10[%c9_120, %c0_121, %c0_122], %224 {strides = array<i32>} : memref<10x10x64xf32, #tpu.memory_space<vmem>>, vector<1x10x64xf32>,
    %cst_123 = arith.constant 0.000000e+00 : f32
    %226 = vector.broadcast %cst_123 : f32 to vector<64x128xf32>
    %c0_124 = arith.constant 0 : index
    %c0_125 = arith.constant 0 : index
    %c0_126 = arith.constant 0 : index
    %227 = vector.load %arg10[%c0_124, %c0_125, %c0_126] : memref<10x10x64xf32, #tpu.memory_space<vmem>>, vector<8x10x64xf32>
    %228 = vector.extract_strided_slice %227 {offsets = [0, 0, 0], sizes = [8, 8, 64], strides = [1, 1, 1]} : vector<8x10x64xf32> to vector<8x8x64xf32>
    %229 = vector.extract_strided_slice %227 {offsets = [0, 1, 0], sizes = [8, 8, 64], strides = [1, 1, 1]} : vector<8x10x64xf32> to vector<8x8x64xf32>
    %230 = vector.extract_strided_slice %227 {offsets = [0, 2, 0], sizes = [8, 8, 64], strides = [1, 1, 1]} : vector<8x10x64xf32> to vector<8x8x64xf32>
    %231 = tpu.concatenate %228, %229, %230 in 2 : vector<8x8x64xf32>, vector<8x8x64xf32>, vector<8x8x64xf32> -> vector<8x8x192xf32>
    %232 = vector.shape_cast %231 : vector<8x8x192xf32> to vector<64x192xf32>
    %233 = arith.truncf %232 : vector<64x192xf32> to vector<64x192xbf16>
    %c0_127 = arith.constant 0 : index
    %c0_128 = arith.constant 0 : index
    %c0_129 = arith.constant 0 : index
    %234 = vector.load %arg6[%c0_127, %c0_128, %c0_129] : memref<3x192x128xbf16, #tpu.memory_space<vmem>>, vector<1x192x128xbf16>
    %235 = vector.shape_cast %234 : vector<1x192x128xbf16> to vector<192x128xbf16>
    %cst_130 = arith.constant dense<0.000000e+00> : vector<64x128xf32>
    %236 = tpu.matmul %233, %235, %cst_130 {dimension_numbers = #tpu.dot_dimension_numbers<[1], [0], [0], [1], [0, 0, 1, 1], [], []>} : vector<64x192xbf16>, vector<192x128xbf16>, vector<64x128xf32> -> vector<64x128xf32>
    %237 = arith.addf %226, %236 : vector<64x128xf32>
    %c1_131 = arith.constant 1 : index
    %c0_132 = arith.constant 0 : index
    %c0_133 = arith.constant 0 : index
    %238 = vector.load %arg10[%c1_131, %c0_132, %c0_133] : memref<10x10x64xf32, #tpu.memory_space<vmem>>, vector<8x10x64xf32>
    %239 = vector.extract_strided_slice %238 {offsets = [0, 0, 0], sizes = [8, 8, 64], strides = [1, 1, 1]} : vector<8x10x64xf32> to vector<8x8x64xf32>
    %240 = vector.extract_strided_slice %238 {offsets = [0, 1, 0], sizes = [8, 8, 64], strides = [1, 1, 1]} : vector<8x10x64xf32> to vector<8x8x64xf32>
    %241 = vector.extract_strided_slice %238 {offsets = [0, 2, 0], sizes = [8, 8, 64], strides = [1, 1, 1]} : vector<8x10x64xf32> to vector<8x8x64xf32>
    %242 = tpu.concatenate %239, %240, %241 in 2 : vector<8x8x64xf32>, vector<8x8x64xf32>, vector<8x8x64xf32> -> vector<8x8x192xf32>
    %243 = vector.shape_cast %242 : vector<8x8x192xf32> to vector<64x192xf32>
    %244 = arith.truncf %243 : vector<64x192xf32> to vector<64x192xbf16>
    %c1_134 = arith.constant 1 : index
    %c0_135 = arith.constant 0 : index
    %c0_136 = arith.constant 0 : index
    %245 = vector.load %arg6[%c1_134, %c0_135, %c0_136] : memref<3x192x128xbf16, #tpu.memory_space<vmem>>, vector<1x192x128xbf16>
    %246 = vector.shape_cast %245 : vector<1x192x128xbf16> to vector<192x128xbf16>
    %cst_137 = arith.constant dense<0.000000e+00> : vector<64x128xf32>
    %247 = tpu.matmul %244, %246, %cst_137 {dimension_numbers = #tpu.dot_dimension_numbers<[1], [0], [0], [1], [0, 0, 1, 1], [], []>} : vector<64x192xbf16>, vector<192x128xbf16>, vector<64x128xf32> -> vector<64x128xf32>
    %248 = arith.addf %237, %247 : vector<64x128xf32>
    %c2_138 = arith.constant 2 : index
    %c0_139 = arith.constant 0 : index
    %c0_140 = arith.constant 0 : index
    %249 = vector.load %arg10[%c2_138, %c0_139, %c0_140] : memref<10x10x64xf32, #tpu.memory_space<vmem>>, vector<8x10x64xf32>
    %250 = vector.extract_strided_slice %249 {offsets = [0, 0, 0], sizes = [8, 8, 64], strides = [1, 1, 1]} : vector<8x10x64xf32> to vector<8x8x64xf32>
    %251 = vector.extract_strided_slice %249 {offsets = [0, 1, 0], sizes = [8, 8, 64], strides = [1, 1, 1]} : vector<8x10x64xf32> to vector<8x8x64xf32>
    %252 = vector.extract_strided_slice %249 {offsets = [0, 2, 0], sizes = [8, 8, 64], strides = [1, 1, 1]} : vector<8x10x64xf32> to vector<8x8x64xf32>
    %253 = tpu.concatenate %250, %251, %252 in 2 : vector<8x8x64xf32>, vector<8x8x64xf32>, vector<8x8x64xf32> -> vector<8x8x192xf32>
    %254 = vector.shape_cast %253 : vector<8x8x192xf32> to vector<64x192xf32>
    %255 = arith.truncf %254 : vector<64x192xf32> to vector<64x192xbf16>
    %c2_141 = arith.constant 2 : index
    %c0_142 = arith.constant 0 : index
    %c0_143 = arith.constant 0 : index
    %256 = vector.load %arg6[%c2_141, %c0_142, %c0_143] : memref<3x192x128xbf16, #tpu.memory_space<vmem>>, vector<1x192x128xbf16>
    %257 = vector.shape_cast %256 : vector<1x192x128xbf16> to vector<192x128xbf16>
    %cst_144 = arith.constant dense<0.000000e+00> : vector<64x128xf32>
    %258 = tpu.matmul %255, %257, %cst_144 {dimension_numbers = #tpu.dot_dimension_numbers<[1], [0], [0], [1], [0, 0, 1, 1], [], []>} : vector<64x192xbf16>, vector<192x128xbf16>, vector<64x128xf32> -> vector<64x128xf32>
    %259 = arith.addf %248, %258 : vector<64x128xf32>
    %c0_145 = arith.constant 0 : index
    %c0_146 = arith.constant 0 : index
    %260 = vector.load %arg7[%c0_145, %c0_146] : memref<1x128xf32, #tpu.memory_space<vmem>>, vector<1x128xf32>
    %261 = vector.broadcast %260 : vector<1x128xf32> to vector<64x128xf32>
    %262 = arith.addf %259, %261 : vector<64x128xf32>
    %cst_147 = arith.constant 0.000000e+00 : f32
    %263 = vector.broadcast %cst_147 : f32 to vector<64x128xf32>
    %264 = arith.maximumf %262, %263 : vector<64x128xf32>
    %265 = vector.shape_cast %264 : vector<64x128xf32> to vector<1x8x8x128xf32>
    %c0_148 = arith.constant 0 : index
    %c0_149 = arith.constant 0 : index
    %c0_150 = arith.constant 0 : index
    %c0_151 = arith.constant 0 : index
    %266 = vector.load %arg8[%c0_148, %c0_149, %c0_150, %c0_151] : memref<1x8x8x128xf32, #tpu.memory_space<vmem>>, vector<1x8x8x128xf32>
    tpu.vector_store %arg8[%c0_148, %c0_149, %c0_150, %c0_151], %265 {strides = array<i32>} : memref<1x8x8x128xf32, #tpu.memory_space<vmem>>, vector<1x8x8x128xf32>,
    return
  }
  func.func @transform_0(%arg0: i32) -> (i32, i32, i32) {
    %c0_i32 = arith.constant 0 : i32
    %c0_i32_0 = arith.constant 0 : i32
    %c0_i32_1 = arith.constant 0 : i32
    return %arg0, %c0_i32, %c0_i32_0 : i32, i32, i32
  }
  func.func @transform_1(%arg0: i32) -> (i32, i32) {
    %c0_i32 = arith.constant 0 : i32
    %c0_i32_0 = arith.constant 0 : i32
    %c0_i32_1 = arith.constant 0 : i32
    return %c0_i32, %c0_i32_0 : i32, i32
  }
  func.func @transform_2(%arg0: i32) -> (i32, i32) {
    %c0_i32 = arith.constant 0 : i32
    %c0_i32_0 = arith.constant 0 : i32
    %c0_i32_1 = arith.constant 0 : i32
    return %c0_i32, %c0_i32_0 : i32, i32
  }
  func.func @transform_3(%arg0: i32) -> (i32, i32, i32) {
    %c0_i32 = arith.constant 0 : i32
    %c0_i32_0 = arith.constant 0 : i32
    %c0_i32_1 = arith.constant 0 : i32
    %c0_i32_2 = arith.constant 0 : i32
    return %c0_i32, %c0_i32_0, %c0_i32_1 : i32, i32, i32
  }
  func.func @transform_4(%arg0: i32) -> (i32, i32) {
    %c0_i32 = arith.constant 0 : i32
    %c0_i32_0 = arith.constant 0 : i32
    %c0_i32_1 = arith.constant 0 : i32
    return %c0_i32, %c0_i32_0 : i32, i32
  }
  func.func @transform_5(%arg0: i32) -> (i32, i32, i32) {
    %c0_i32 = arith.constant 0 : i32
    %c0_i32_0 = arith.constant 0 : i32
    %c0_i32_1 = arith.constant 0 : i32
    %c0_i32_2 = arith.constant 0 : i32
    return %c0_i32, %c0_i32_0, %c0_i32_1 : i32, i32, i32
  }
  func.func @transform_6(%arg0: i32) -> (i32, i32) {
    %c0_i32 = arith.constant 0 : i32
    %c0_i32_0 = arith.constant 0 : i32
    %c0_i32_1 = arith.constant 0 : i32
    return %c0_i32, %c0_i32_0 : i32, i32
  }
  func.func @transform_7(%arg0: i32) -> (i32, i32, i32, i32) {
    %c0_i32 = arith.constant 0 : i32
    %c0_i32_0 = arith.constant 0 : i32
    %c0_i32_1 = arith.constant 0 : i32
    %c0_i32_2 = arith.constant 0 : i32
    return %arg0, %c0_i32, %c0_i32_0, %c0_i32_1 : i32, i32, i32, i32
  }
}

</mosaic_0001>

<llo_original>
// kernel: tpu_custom_call.1
$region0: #{tpu_custom_call.1}
  #allocation0 [shape = 'u32[]', space=smem, size = 0x4, offset = 0x4, fixed_abs, tag = 'smem constant byte address 0x4 - core index']
  #allocation1 [shape = 'u32[144,128]{1,0:T(1,128)}', space=vmem, size = 0x12000, scoped, tag = 'internal scratch']
  #allocation2 [shape = 'f32[18,18,64]{2,1,0:T(8,128)}', space=vmem, size = 0x36000, scoped, tag = 'scratch operand']
  #allocation3 [shape = 'f32[10,10,64]{2,1,0:T(8,128)}', space=vmem, size = 0x14000, scoped, tag = 'scratch operand']
  %s0 = inlined_call_operand.vmem [shape: bf16[2,256,27], index: 0, kind: input, shape index: {}]
  %s1 = inlined_call_operand.vmem [shape: bf16[27,64], index: 1, kind: input, shape index: {}]
  %s2 = inlined_call_operand.vmem [shape: f32[1,64], index: 2, kind: input, shape index: {}]
  %s3 = inlined_call_operand.vmem [shape: bf16[3,192,64], index: 3, kind: input, shape index: {}]
  %s4 = inlined_call_operand.vmem [shape: f32[1,64], index: 4, kind: input, shape index: {}]
  %s5 = inlined_call_operand.vmem [shape: bf16[3,192,128], index: 5, kind: input, shape index: {}]
  %s6 = inlined_call_operand.vmem [shape: f32[1,128], index: 6, kind: input, shape index: {}]
  %s7 = inlined_call_operand.hbm [shape: f32[2,8,8,128], index: 7, kind: output, shape index: {}]
  %s8 = sld [smem:[#allocation0]]
  $region61: #{tpu_custom_call.1} parent=0
    _
  %s10 = ssub.s32 1, %s8
  %s11 = scalar_select 0, %s10, %s8
  $region1: #{tpu_custom_call.1} parent=0
    #allocation4 [shape = 'u8[65536]{0}', space=vmem, size = 0x10000, scoped, tag = 'output window, operand 0']
    #allocation5 [shape = 's32[2]{0}', space=sflag, size = 0x8, scoped, tag = 'scoped memory for tpu_custom_call.1']
    %12 = vsyncpa [#allocation5], 0
    %s13 = scalar_lea.sflag [#allocation5], 1
    %14 = vsyncpa %s13, 0
    loop: start=0, step=1, limit=4
    $region2: #{tpu_custom_call.1} parent=1 // loop_pre_header
      _
    $region3: #{tpu_custom_call.1} parent=1 // loop_header
      %s16 = sphi 0, %s20
      %p17 = scmp.ge.s32.totalorder %s16, 4
      %s26 = sphi 0, %s28
      %s29 = sphi 0, %s26
      %s30 = sphi 0, %s29
      %s46 = sphi 0, %s30
      %s50 = sphi 0, %s50
      %s52 = sphi 0, %s50
      %s53 = sphi 0, %s52
      %s67 = sphi 0, %s53
      %s71 = sphi 0, %s71
      %s73 = sphi 0, %s71
      %s74 = sphi 0, %s73
      %s88 = sphi 0, %s74
      %s92 = sphi 0, %s92
      %s94 = sphi 0, %s92
      %s95 = sphi 0, %s94
      %s109 = sphi 0, %s95
      %s113 = sphi 0, %s113
      %s115 = sphi 0, %s113
      %s116 = sphi 0, %s115
      %s130 = sphi 0, %s116
      %s134 = sphi 0, %s134
      %s136 = sphi 0, %s134
      %s137 = sphi 0, %s136
      %s151 = sphi 0, %s137
      %s155 = sphi 0, %s155
      %s157 = sphi 0, %s155
      %s158 = sphi 0, %s157
      %s172 = sphi 0, %s158
      %s178 = sphi 0, %s180
      %s181 = sphi 0, %s178
      %s182 = sphi 0, %s181
      %s198 = sphi 0, %s182
    $region4: #{tpu_custom_call.1} parent=1 // loop_header_branch
      %19 = sbr.rel (%p17) target = $region8
    $region5: #{tpu_custom_call.1} parent=1 // loop_body
      %s21 = ssub.s32 %s16, 1
      %s22 = ssub.s32 %s16, 2
      %s23 = sadd.s32 %s16, 1
      %s24 = ssub.s32 %s16, %s23
      %p25 = scmp.eq.s32.totalorder %s24, 0
      %s27 = sadd.s32 %s26, 1
      %s28 = scalar_select %p25, %s26, %s27
      %p31 = pneg %p25
      %p32 = scmp.eq.s32.totalorder %s16, 1
      %p33 = por %p31, %p32
      %p34 = scmp.ne.s32.totalorder %s26, %s29
      %p35 = scmp.eq.s32.totalorder %s16, 0
      %p36 = por %p34, %p35
      %p37 = scmp.ne.s32.totalorder %s26, %s29
      %p38 = scmp.eq.s32.totalorder %s21, 1
      %p39 = por %p37, %p38
      %p40 = scmp.ne.s32.totalorder %s29, %s30
      %p41 = scmp.eq.s32.totalorder %s21, 0
      %p42 = por %p40, %p41
      %p43 = scmp.ne.s32.totalorder %s29, %s30
      %p44 = scmp.eq.s32.totalorder %s22, 1
      %p45 = por %p43, %p44
      %p47 = scmp.ne.s32.totalorder %s30, %s46
      %p48 = scmp.eq.s32.totalorder %s22, 0
      %p49 = por %p47, %p48
      %s51 = sadd.s32 %s50, 1
      %p54 = scmp.eq.s32.totalorder %s16, 1
      %p55 = scmp.ne.s32.totalorder %s50, %s52
      %p56 = scmp.eq.s32.totalorder %s16, 0
      %p57 = por %p55, %p56
      %p58 = scmp.ne.s32.totalorder %s50, %s52
      %p59 = scmp.eq.s32.totalorder %s21, 1
      %p60 = por %p58, %p59
      %p61 = scmp.ne.s32.totalorder %s52, %s53
      %p62 = scmp.eq.s32.totalorder %s21, 0
      %p63 = por %p61, %p62
      %p64 = scmp.ne.s32.totalorder %s52, %s53
      %p65 = scmp.eq.s32.totalorder %s22, 1
      %p66 = por %p64, %p65
      %p68 = scmp.ne.s32.totalorder %s53, %s67
      %p69 = scmp.eq.s32.totalorder %s22, 0
      %p70 = por %p68, %p69
      %s72 = sadd.s32 %s71, 1
      %p75 = scmp.eq.s32.totalorder %s16, 1
      %p76 = scmp.ne.s32.totalorder %s71, %s73
      %p77 = scmp.eq.s32.totalorder %s16, 0
      %p78 = por %p76, %p77
      %p79 = scmp.ne.s32.totalorder %s71, %s73
      %p80 = scmp.eq.s32.totalorder %s21, 1
      %p81 = por %p79, %p80
      %p82 = scmp.ne.s32.totalorder %s73, %s74
      %p83 = scmp.eq.s32.totalorder %s21, 0
      %p84 = por %p82, %p83
      %p85 = scmp.ne.s32.totalorder %s73, %s74
      %p86 = scmp.eq.s32.totalorder %s22, 1
      %p87 = por %p85, %p86
      %p89 = scmp.ne.s32.totalorder %s74, %s88
      %p90 = scmp.eq.s32.totalorder %s22, 0
      %p91 = por %p89, %p90
      %s93 = sadd.s32 %s92, 1
      %p96 = scmp.eq.s32.totalorder %s16, 1
      %p97 = scmp.ne.s32.totalorder %s92, %s94
      %p98 = scmp.eq.s32.totalorder %s16, 0
      %p99 = por %p97, %p98
      %p100 = scmp.ne.s32.totalorder %s92, %s94
      %p101 = scmp.eq.s32.totalorder %s21, 1
      %p102 = por %p100, %p101
      %p103 = scmp.ne.s32.totalorder %s94, %s95
      %p104 = scmp.eq.s32.totalorder %s21, 0
      %p105 = por %p103, %p104
      %p106 = scmp.ne.s32.totalorder %s94, %s95
      %p107 = scmp.eq.s32.totalorder %s22, 1
      %p108 = por %p106, %p107
      %p110 = scmp.ne.s32.totalorder %s95, %s109
      %p111 = scmp.eq.s32.totalorder %s22, 0
      %p112 = por %p110, %p111
      %s114 = sadd.s32 %s113, 1
      %p117 = scmp.eq.s32.totalorder %s16, 1
      %p118 = scmp.ne.s32.totalorder %s113, %s115
      %p119 = scmp.eq.s32.totalorder %s16, 0
      %p120 = por %p118, %p119
      %p121 = scmp.ne.s32.totalorder %s113, %s115
      %p122 = scmp.eq.s32.totalorder %s21, 1
      %p123 = por %p121, %p122
      %p124 = scmp.ne.s32.totalorder %s115, %s116
      %p125 = scmp.eq.s32.totalorder %s21, 0
      %p126 = por %p124, %p125
      %p127 = scmp.ne.s32.totalorder %s115, %s116
      %p128 = scmp.eq.s32.totalorder %s22, 1
      %p129 = por %p127, %p128
      %p131 = scmp.ne.s32.totalorder %s116, %s130
      %p132 = scmp.eq.s32.totalorder %s22, 0
      %p133 = por %p131, %p132
      %s135 = sadd.s32 %s134, 1
      %p138 = scmp.eq.s32.totalorder %s16, 1
      %p139 = scmp.ne.s32.totalorder %s134, %s136
      %p140 = scmp.eq.s32.totalorder %s16, 0
      %p141 = por %p139, %p140
      %p142 = scmp.ne.s32.totalorder %s134, %s136
      %p143 = scmp.eq.s32.totalorder %s21, 1
      %p144 = por %p142, %p143
      %p145 = scmp.ne.s32.totalorder %s136, %s137
      %p146 = scmp.eq.s32.totalorder %s21, 0
      %p147 = por %p145, %p146
      %p148 = scmp.ne.s32.totalorder %s136, %s137
      %p149 = scmp.eq.s32.totalorder %s22, 1
      %p150 = por %p148, %p149
      %p152 = scmp.ne.s32.totalorder %s137, %s151
      %p153 = scmp.eq.s32.totalorder %s22, 0
      %p154 = por %p152, %p153
      %s156 = sadd.s32 %s155, 1
      %p159 = scmp.eq.s32.totalorder %s16, 1
      %p160 = scmp.ne.s32.totalorder %s155, %s157
      %p161 = scmp.eq.s32.totalorder %s16, 0
      %p162 = por %p160, %p161
      %p163 = scmp.ne.s32.totalorder %s155, %s157
      %p164 = scmp.eq.s32.totalorder %s21, 1
      %p165 = por %p163, %p164
      %p166 = scmp.ne.s32.totalorder %s157, %s158
      %p167 = scmp.eq.s32.totalorder %s21, 0
      %p168 = por %p166, %p167
      %p169 = scmp.ne.s32.totalorder %s157, %s158
      %p170 = scmp.eq.s32.totalorder %s22, 1
      %p171 = por %p169, %p170
      %p173 = scmp.ne.s32.totalorder %s158, %s172
      %p174 = scmp.eq.s32.totalorder %s22, 0
      %p175 = por %p173, %p174
      %s176 = ssub.s32 %s16, %s23
      %p177 = scmp.eq.s32.totalorder %s176, 0
      %s179 = sadd.s32 %s178, 1
      %s180 = scalar_select %p177, %s178, %s179
      %p183 = pneg %p177
      %p184 = scmp.eq.s32.totalorder %s16, 1
      %p185 = por %p183, %p184
      %p186 = scmp.ne.s32.totalorder %s178, %s181
      %p187 = scmp.eq.s32.totalorder %s16, 0
      %p188 = por %p186, %p187
      %p189 = scmp.ne.s32.totalorder %s178, %s181
      %p190 = scmp.eq.s32.totalorder %s21, 1
      %p191 = por %p189, %p190
      %p192 = scmp.ne.s32.totalorder %s181, %s182
      %p193 = scmp.eq.s32.totalorder %s21, 0
      %p194 = por %p192, %p193
      %p195 = scmp.ne.s32.totalorder %s181, %s182
      %p196 = scmp.eq.s32.totalorder %s22, 1
      %p197 = por %p195, %p196
      %p199 = scmp.ne.s32.totalorder %s182, %s198
      %p200 = scmp.eq.s32.totalorder %s22, 0
      %p201 = por %p199, %p200
      %p202 = scmp.le.s32.totalorder 1, %s16
      %p203 = scmp.lt.s32.totalorder %s16, 3
      %p204 = pnand %p202, %p203
      %p205 = pneg %p204
      // Predicated region
      $region9: #{tpu_custom_call.1} parent=5 // pred_check
        _
      $region10: #{tpu_custom_call.1} parent=5 // pred_check_branch
        %207 = sbr.rel (%p204) target = $region12
      $region11: #{tpu_custom_call.1} parent=5 // pred_region
        %s208 = ssub.s32 %s16, 1
        // Predicated region
        $region13: #{tpu_custom_call.1} parent=11 // pred_check
          %p209 = pneg %p63
        $region14: #{tpu_custom_call.1} parent=11 // pred_check_branch
          %211 = sbr.rel (%p209) target = $region16
        $region15: #{tpu_custom_call.1} parent=11 // pred_region
          _
        $region16: #{tpu_custom_call.1} parent=11 // pred_fallthru
          _
        // Predicated region
        $region17: #{tpu_custom_call.1} parent=11 // pred_check
          %p212 = pneg %p84
        $region18: #{tpu_custom_call.1} parent=11 // pred_check_branch
          %214 = sbr.rel (%p212) target = $region20
        $region19: #{tpu_custom_call.1} parent=11 // pred_region
          _
        $region20: #{tpu_custom_call.1} parent=11 // pred_fallthru
          _
        // Predicated region
        $region21: #{tpu_custom_call.1} parent=11 // pred_check
          %p215 = pneg %p105
        $region22: #{tpu_custom_call.1} parent=11 // pred_check_branch
          %217 = sbr.rel (%p215) target = $region24
        $region23: #{tpu_custom_call.1} parent=11 // pred_region
          _
        $region24: #{tpu_custom_call.1} parent=11 // pred_fallthru
          _
        // Predicated region
        $region25: #{tpu_custom_call.1} parent=11 // pred_check
          %p218 = pneg %p126
        $region26: #{tpu_custom_call.1} parent=11 // pred_check_branch
          %220 = sbr.rel (%p218) target = $region28
        $region27: #{tpu_custom_call.1} parent=11 // pred_region
          _
        $region28: #{tpu_custom_call.1} parent=11 // pred_fallthru
          _
        // Predicated region
        $region29: #{tpu_custom_call.1} parent=11 // pred_check
          %p221 = pneg %p147
        $region30: #{tpu_custom_call.1} parent=11 // pred_check_branch
          %223 = sbr.rel (%p221) target = $region32
        $region31: #{tpu_custom_call.1} parent=11 // pred_region
          _
        $region32: #{tpu_custom_call.1} parent=11 // pred_fallthru
          _
        // Predicated region
        $region33: #{tpu_custom_call.1} parent=11 // pred_check
          %p224 = pneg %p168
        $region34: #{tpu_custom_call.1} parent=11 // pred_check_branch
          %226 = sbr.rel (%p224) target = $region36
        $region35: #{tpu_custom_call.1} parent=11 // pred_region
          _
        $region36: #{tpu_custom_call.1} parent=11 // pred_fallthru
          _
      $region12: #{tpu_custom_call.1} parent=5 // pred_fallthru
        _
      %p227 = scmp.lt.s32.totalorder %s16, 2
      // Predicated region
      $region37: #{tpu_custom_call.1} parent=5 // pred_check
        %p228 = pneg %p227
      $region38: #{tpu_custom_call.1} parent=5 // pred_check_branch
        %230 = sbr.rel (%p228) target = $region40
      $region39: #{tpu_custom_call.1} parent=5 // pred_region
        // Predicated region
        $region41: #{tpu_custom_call.1} parent=39 // pred_check
          %p231 = pneg %p36
        $region42: #{tpu_custom_call.1} parent=39 // pred_check_branch
          %233 = sbr.rel (%p231) target = $region44
        $region43: #{tpu_custom_call.1} parent=39 // pred_region
          %p234 = scmp.lt.s32.totalorder %s16, 1
          %s235 = scalar_select %p234, %s16, 1
          %s236 = smul.addr %s235, 32
          %s237 = smul.addr %s236, 4
          %s238 = scalar_lea.vmem %s0, %s237
        $region44: #{tpu_custom_call.1} parent=39 // pred_fallthru
          _
      $region40: #{tpu_custom_call.1} parent=5 // pred_fallthru
        _
      %p239 = scmp.le.s32.totalorder 1, %s16
      %p240 = scmp.lt.s32.totalorder %s16, 3
      %p241 = pnand %p239, %p240
      %p242 = pneg %p241
      // Predicated region
      $region45: #{tpu_custom_call.1} parent=5 // pred_check
        _
      $region46: #{tpu_custom_call.1} parent=5 // pred_check_branch
        %244 = sbr.rel (%p241) target = $region48
      $region47: #{tpu_custom_call.1} parent=5 // pred_region
        %s245 = ssub.s32 %s16, 1
        %p246 = scmp.lt.s32.totalorder %s21, 1
        %s247 = scalar_select %p246, %s21, 1
        %s248 = smul.addr %s247, 32
        %s249 = smul.addr %s248, 4
        %s250 = scalar_lea.vmem %s0, %s249
        %p251 = pneg %p42
        %p252 = pneg %p39
        %p253 = pneg %p63
        %p254 = pneg %p60
        %p255 = pneg %p84
        %p256 = pneg %p81
        %p257 = pneg %p105
        %p258 = pneg %p102
        %p259 = pneg %p126
        %p260 = pneg %p123
        %p261 = pneg %p147
        %p262 = pneg %p144
        %p263 = pneg %p168
        %p264 = pneg %p165
        %p265 = pneg %p194
        %p266 = pneg %p191
        %s267 = sand.u32 %s181, 1
        %s268 = scalar_lea.sflag [#allocation5], %s267
        %s269 = sand.u32 %s181, 1
        %s270 = smul.addr %s269, 64
        %s271 = scalar_lea.vmem [#allocation4], %s270
        %p272 = scmp.lt.s32.totalorder %s21, 1
        %s273 = scalar_select %p272, %s21, 1
        %s274 = smul.addr %s273, 32
        %s275 = smul.addr %s274, 4
        %s276 = scalar_lea.vmem %s0, %s275
        %v278 = vld [vmem:[%s276] sm:$0xf]
        %v279 = vld [vmem:[%s276 + $0x4] sm:$0xf]
        %v280 = vld [vmem:[%s276 + $0x8] sm:$0xf]
        %v281 = vld [vmem:[%s276 + $0xc] sm:$0xf]
        %v282 = vld [vmem:[%s276 + $0x10] sm:$0xf]
        %v283 = vld [vmem:[%s276 + $0x14] sm:$0xf]
        %v284 = vld [vmem:[%s276 + $0x18] sm:$0xf]
        %v285 = vld [vmem:[%s276 + $0x1c] sm:$0xf]
        %v286 = vld [vmem:[%s276 + $0x20] sm:$0xf]
        %v287 = vld [vmem:[%s276 + $0x24] sm:$0xf]
        %v288 = vld [vmem:[%s276 + $0x28] sm:$0xf]
        %v289 = vld [vmem:[%s276 + $0x2c] sm:$0xf]
        %v290 = vld [vmem:[%s276 + $0x30] sm:$0xf]
        %v291 = vld [vmem:[%s276 + $0x34] sm:$0xf]
        %v292 = vld [vmem:[%s276 + $0x38] sm:$0xf]
        %v293 = vld [vmem:[%s276 + $0x3c] sm:$0xf]
        %v294 = vld [vmem:[%s276 + $0x40] sm:$0xf]
        %v295 = vld [vmem:[%s276 + $0x44] sm:$0xf]
        %v296 = vld [vmem:[%s276 + $0x48] sm:$0xf]
        %v297 = vld [vmem:[%s276 + $0x4c] sm:$0xf]
        %v298 = vld [vmem:[%s276 + $0x50] sm:$0xf]
        %v299 = vld [vmem:[%s276 + $0x54] sm:$0xf]
        %v300 = vld [vmem:[%s276 + $0x58] sm:$0xf]
        %v301 = vld [vmem:[%s276 + $0x5c] sm:$0xf]
        %v302 = vld [vmem:[%s276 + $0x60] sm:$0xf]
        %v303 = vld [vmem:[%s276 + $0x64] sm:$0xf]
        %v304 = vld [vmem:[%s276 + $0x68] sm:$0xf]
        %v305 = vld [vmem:[%s276 + $0x6c] sm:$0xf]
        %v306 = vld [vmem:[%s276 + $0x70] sm:$0xf]
        %v307 = vld [vmem:[%s276 + $0x74] sm:$0xf]
        %v308 = vld [vmem:[%s276 + $0x78] sm:$0xf]
        %v309 = vld [vmem:[%s276 + $0x7c] sm:$0xf]
        %v310 = vld [vmem:[%s1] sm:$0xf]
        %v311 = vld [vmem:[%s1 + $0x4] sm:$0xf]
        %v312 = vld [vmem:[%s1 + $0x8] sm:$0xf]
        %v313 = vld [vmem:[%s1 + $0xc] sm:$0x3]
        %v314 = vld [vmem:[%s2] sm:$0x1]
        %v316 = vlaneseq
        %v317 = vshrl.u32 %v316, 7
        %v318 = vsub.s32 0, %v317
        %v319 = vrot.slane %v314, %v318
        %v353 = vunpack.c.l.b16 %v278
        %v354 = vunpack.c.l.b16 %v279
        %v355 = vunpack.c.l.b16 %v280
        %v356 = vunpack.c.l.b16 %v281
        %v357 = vunpack.c.l.b16 %v282
        %v358 = vunpack.c.l.b16 %v283
        %v359 = vunpack.c.l.b16 %v284
        %v360 = vunpack.c.l.b16 %v285
        %v361 = vunpack.c.l.b16 %v286
        %v362 = vunpack.c.l.b16 %v287
        %v363 = vunpack.c.l.b16 %v288
        %v364 = vunpack.c.l.b16 %v289
        %v365 = vunpack.c.l.b16 %v290
        %v366 = vunpack.c.l.b16 %v291
        %v367 = vunpack.c.l.b16 %v292
        %v368 = vunpack.c.l.b16 %v293
        %v369 = vunpack.c.l.b16 %v294
        %v370 = vunpack.c.l.b16 %v295
        %v371 = vunpack.c.l.b16 %v296
        %v372 = vunpack.c.l.b16 %v297
        %v373 = vunpack.c.l.b16 %v298
        %v374 = vunpack.c.l.b16 %v299
        %v375 = vunpack.c.l.b16 %v300
        %v376 = vunpack.c.l.b16 %v301
        %v377 = vunpack.c.l.b16 %v302
        %v378 = vunpack.c.l.b16 %v303
        %v379 = vunpack.c.l.b16 %v304
        %v380 = vunpack.c.l.b16 %v305
        %v381 = vunpack.c.l.b16 %v306
        %v382 = vunpack.c.l.b16 %v307
        %v383 = vunpack.c.l.b16 %v308
        %v384 = vunpack.c.l.b16 %v309
        %v385 = vpack.c.b16 %v354, %v353
        %v386 = vpack.c.b16 %v356, %v355
        %v387 = vpack.c.b16 %v358, %v357
        %v388 = vpack.c.b16 %v360, %v359
        %v389 = vpack.c.b16 %v362, %v361
        %v390 = vpack.c.b16 %v364, %v363
        %v391 = vpack.c.b16 %v366, %v365
        %v392 = vpack.c.b16 %v368, %v367
        %v393 = vpack.c.b16 %v370, %v369
        %v394 = vpack.c.b16 %v372, %v371
        %v395 = vpack.c.b16 %v374, %v373
        %v396 = vpack.c.b16 %v376, %v375
        %v397 = vpack.c.b16 %v378, %v377
        %v398 = vpack.c.b16 %v380, %v379
        %v399 = vpack.c.b16 %v382, %v381
        %v400 = vpack.c.b16 %v384, %v383
        %v405 = vunpack.c.l.b16 %v310
        %v406 = vunpack.c.l.b16 %v311
        %v407 = vunpack.c.l.b16 %v312
        %v408 = vunpack.c.l.b16 %v313
        %v409 = vpack.c.b16 %v406, %v405
        %v410 = vpack.c.b16 %v408, %v407
        %vm412 = vcmask 220160
        %v414 = vsel %vm412, %v385, 0
        %v417 = vsel %vm412, %v386, 0
        %v420 = vsel %vm412, %v387, 0
        %v423 = vsel %vm412, %v388, 0
        %v426 = vsel %vm412, %v389, 0
        %v429 = vsel %vm412, %v390, 0
        %v432 = vsel %vm412, %v391, 0
        %v435 = vsel %vm412, %v392, 0
        %v438 = vsel %vm412, %v393, 0
        %v441 = vsel %vm412, %v394, 0
        %v444 = vsel %vm412, %v395, 0
        %v447 = vsel %vm412, %v396, 0
        %v450 = vsel %vm412, %v397, 0
        %v453 = vsel %vm412, %v398, 0
        %v456 = vsel %vm412, %v399, 0
        %v459 = vsel %vm412, %v400, 0
        %vm461 = vcmask 1044480
        %vm462 = vcmask 1045504
        %v463 = vsel %vm461, 4294967295, 65535
        %v464 = vsel %vm462, %v463, 0
        %v466 = vand.u32 %v410, %v464
        %468 = vmatprep.subr.bf16.mxu0 0
        %469 = vmatpush1.bf16.msra.mxu0 %v409
        %470 = vmatprep.subr.bf16.mxu0 0
        %471 = vmatpush1.bf16.msra.mxu0 %v466
        %472 = vmatprep.subr.bf16.mxu0 0
        %473 = vmatpush1.bf16.msra.mxu0 0
        %474 = vmatprep.subr.bf16.mxu0 0
        %475 = vmatpush1.bf16.msra.mxu0 0
        %476 = vmatprep.subr.bf16.mxu0 0
        %477 = vmatpush1.bf16.msra.mxu0 0
        %478 = vmatprep.subr.bf16.mxu0 0
        %479 = vmatpush1.bf16.msra.mxu0 0
        %480 = vmatprep.subr.bf16.mxu0 0
        %481 = vmatpush1.bf16.msra.mxu0 0
        %482 = vmatprep.subr.bf16.mxu0 0
        %483 = vmatpush1.bf16.msra.mxu0 0
        %484 = vmatprep.subr.bf16.mxu0 0
        %485 = vmatpush1.bf16.msra.mxu0 0
        %486 = vmatprep.subr.bf16.mxu0 0
        %487 = vmatpush1.bf16.msra.mxu0 0
        %488 = vmatprep.subr.bf16.mxu0 0
        %489 = vmatpush1.bf16.msra.mxu0 0
        %490 = vmatprep.subr.bf16.mxu0 0
        %491 = vmatpush1.bf16.msra.mxu0 0
        %492 = vmatprep.subr.bf16.mxu0 0
        %493 = vmatpush1.bf16.msra.mxu0 0
        %494 = vmatprep.subr.bf16.mxu0 0
        %495 = vmatpush1.bf16.msra.mxu0 0
        %496 = vmatprep.subr.bf16.mxu0 0
        %497 = vmatpush1.bf16.msra.mxu0 0
        %498 = vmatprep.subr.bf16.mxu0 0
        %499 = vmatpush1.bf16.msra.mxu0 0
        %500 = vmatprep.mubr.bf16.mxu0 0
        %501 = vmatmul.mubr.bf16.gmra.mrb[0].mxu0 %v414
        %v502 = vpop.f32.mrb[0].mxu0
        %v503 = vadd.f32 %v319, %v502
        %v504 = vpop.f32.mrb[0].mxu0
        %v505 = vpop.f32.mrb[0].mxu0
        %v506 = vadd.f32 %v319, %v505
        %v507 = vpop.f32.mrb[0].mxu0
        %508 = vmatprep.mubr.bf16.mxu0 0
        %509 = vmatmul.mubr.bf16.gmra.mrb[0].mxu0 %v417
        %v510 = vpop.f32.mrb[0].mxu0
        %v511 = vadd.f32 %v319, %v510
        %v512 = vpop.f32.mrb[0].mxu0
        %v513 = vpop.f32.mrb[0].mxu0
        %v514 = vadd.f32 %v319, %v513
        %v515 = vpop.f32.mrb[0].mxu0
        %516 = vmatprep.mubr.bf16.mxu0 0
        %517 = vmatmul.mubr.bf16.gmra.mrb[0].mxu0 %v420
        %v518 = vpop.f32.mrb[0].mxu0
        %v519 = vadd.f32 %v319, %v518
        %v520 = vpop.f32.mrb[0].mxu0
        %v521 = vpop.f32.mrb[0].mxu0
        %v522 = vadd.f32 %v319, %v521
        %v523 = vpop.f32.mrb[0].mxu0
        %524 = vmatprep.mubr.bf16.mxu0 0
        %525 = vmatmul.mubr.bf16.gmra.mrb[0].mxu0 %v423
        %v526 = vpop.f32.mrb[0].mxu0
        %v527 = vadd.f32 %v319, %v526
        %v528 = vpop.f32.mrb[0].mxu0
        %v529 = vpop.f32.mrb[0].mxu0
        %v530 = vadd.f32 %v319, %v529
        %v531 = vpop.f32.mrb[0].mxu0
        %532 = vmatprep.mubr.bf16.mxu0 0
        %533 = vmatmul.mubr.bf16.gmra.mrb[0].mxu0 %v426
        %v534 = vpop.f32.mrb[0].mxu0
        %v535 = vadd.f32 %v319, %v534
        %v536 = vpop.f32.mrb[0].mxu0
        %v537 = vpop.f32.mrb[0].mxu0
        %v538 = vadd.f32 %v319, %v537
        %v539 = vpop.f32.mrb[0].mxu0
        %540 = vmatprep.mubr.bf16.mxu0 0
        %541 = vmatmul.mubr.bf16.gmra.mrb[0].mxu0 %v429
        %v542 = vpop.f32.mrb[0].mxu0
        %v543 = vadd.f32 %v319, %v542
        %v544 = vpop.f32.mrb[0].mxu0
        %v545 = vpop.f32.mrb[0].mxu0
        %v546 = vadd.f32 %v319, %v545
        %v547 = vpop.f32.mrb[0].mxu0
        %548 = vmatprep.mubr.bf16.mxu0 0
        %549 = vmatmul.mubr.bf16.gmra.mrb[0].mxu0 %v432
        %v550 = vpop.f32.mrb[0].mxu0
        %v551 = vadd.f32 %v319, %v550
        %v552 = vpop.f32.mrb[0].mxu0
        %v553 = vpop.f32.mrb[0].mxu0
        %v554 = vadd.f32 %v319, %v553
        %v555 = vpop.f32.mrb[0].mxu0
        %556 = vmatprep.mubr.bf16.mxu0 0
        %557 = vmatmul.mubr.bf16.gmra.mrb[0].mxu0 %v435
        %v558 = vpop.f32.mrb[0].mxu0
        %v559 = vadd.f32 %v319, %v558
        %v560 = vpop.f32.mrb[0].mxu0
        %v561 = vpop.f32.mrb[0].mxu0
        %v562 = vadd.f32 %v319, %v561
        %v563 = vpop.f32.mrb[0].mxu0
        %564 = vmatprep.mubr.bf16.mxu0 0
        %565 = vmatmul.mubr.bf16.gmra.mrb[0].mxu0 %v438
        %v566 = vpop.f32.mrb[0].mxu0
        %v567 = vadd.f32 %v319, %v566
        %v568 = vpop.f32.mrb[0].mxu0
        %v569 = vpop.f32.mrb[0].mxu0
        %v570 = vadd.f32 %v319, %v569
        %v571 = vpop.f32.mrb[0].mxu0
        %572 = vmatprep.mubr.bf16.mxu0 0
        %573 = vmatmul.mubr.bf16.gmra.mrb[0].mxu0 %v441
        %v574 = vpop.f32.mrb[0].mxu0
        %v575 = vadd.f32 %v319, %v574
        %v576 = vpop.f32.mrb[0].mxu0
        %v577 = vpop.f32.mrb[0].mxu0
        %v578 = vadd.f32 %v319, %v577
        %v579 = vpop.f32.mrb[0].mxu0
        %580 = vmatprep.mubr.bf16.mxu0 0
        %581 = vmatmul.mubr.bf16.gmra.mrb[0].mxu0 %v444
        %v582 = vpop.f32.mrb[0].mxu0
        %v583 = vadd.f32 %v319, %v582
        %v584 = vpop.f32.mrb[0].mxu0
        %v585 = vpop.f32.mrb[0].mxu0
        %v586 = vadd.f32 %v319, %v585
        %v587 = vpop.f32.mrb[0].mxu0
        %588 = vmatprep.mubr.bf16.mxu0 0
        %589 = vmatmul.mubr.bf16.gmra.mrb[0].mxu0 %v447
        %v590 = vpop.f32.mrb[0].mxu0
        %v591 = vadd.f32 %v319, %v590
        %v592 = vpop.f32.mrb[0].mxu0
        %v593 = vpop.f32.mrb[0].mxu0
        %v594 = vadd.f32 %v319, %v593
        %v595 = vpop.f32.mrb[0].mxu0
        %596 = vmatprep.mubr.bf16.mxu0 0
        %597 = vmatmul.mubr.bf16.gmra.mrb[0].mxu0 %v450
        %v598 = vpop.f32.mrb[0].mxu0
        %v599 = vadd.f32 %v319, %v598
        %v600 = vpop.f32.mrb[0].mxu0
        %v601 = vpop.f32.mrb[0].mxu0
        %v602 = vadd.f32 %v319, %v601
        %v603 = vpop.f32.mrb[0].mxu0
        %604 = vmatprep.mubr.bf16.mxu0 0
        %605 = vmatmul.mubr.bf16.gmra.mrb[0].mxu0 %v453
        %v606 = vpop.f32.mrb[0].mxu0
        %v607 = vadd.f32 %v319, %v606
        %v608 = vpop.f32.mrb[0].mxu0
        %v609 = vpop.f32.mrb[0].mxu0
        %v610 = vadd.f32 %v319, %v609
        %v611 = vpop.f32.mrb[0].mxu0
        %612 = vmatprep.mubr.bf16.mxu0 0
        %613 = vmatmul.mubr.bf16.gmra.mrb[0].mxu0 %v456
        %v614 = vpop.f32.mrb[0].mxu0
        %v615 = vadd.f32 %v319, %v614
        %v616 = vpop.f32.mrb[0].mxu0
        %v617 = vpop.f32.mrb[0].mxu0
        %v618 = vadd.f32 %v319, %v617
        %v619 = vpop.f32.mrb[0].mxu0
        %620 = vmatprep.mubr.bf16.mxu0 0
        %621 = vmatmul.mubr.bf16.gmra.mrb[0].mxu0 %v459
        %v622 = vpop.f32.mrb[0].mxu0
        %v623 = vadd.f32 %v319, %v622
        %v624 = vpop.f32.mrb[0].mxu0
        %v625 = vpop.f32.mrb[0].mxu0
        %v626 = vadd.f32 %v319, %v625
        %v627 = vpop.f32.mrb[0].mxu0
        %628 = vdwg.mxu0
        %v629 = vmax.f32 %v503, 0.0
        %v630 = vmax.f32 %v506, 0.0
        %v631 = vmax.f32 %v511, 0.0
        %v632 = vmax.f32 %v514, 0.0
        %v633 = vmax.f32 %v519, 0.0
        %v634 = vmax.f32 %v522, 0.0
        %v635 = vmax.f32 %v527, 0.0
        %v636 = vmax.f32 %v530, 0.0
        %v637 = vmax.f32 %v535, 0.0
        %v638 = vmax.f32 %v538, 0.0
        %v639 = vmax.f32 %v543, 0.0
        %v640 = vmax.f32 %v546, 0.0
        %v641 = vmax.f32 %v551, 0.0
        %v642 = vmax.f32 %v554, 0.0
        %v643 = vmax.f32 %v559, 0.0
        %v644 = vmax.f32 %v562, 0.0
        %v645 = vmax.f32 %v567, 0.0
        %v646 = vmax.f32 %v570, 0.0
        %v647 = vmax.f32 %v575, 0.0
        %v648 = vmax.f32 %v578, 0.0
        %v649 = vmax.f32 %v583, 0.0
        %v650 = vmax.f32 %v586, 0.0
        %v651 = vmax.f32 %v591, 0.0
        %v652 = vmax.f32 %v594, 0.0
        %v653 = vmax.f32 %v599, 0.0
        %v654 = vmax.f32 %v602, 0.0
        %v655 = vmax.f32 %v607, 0.0
        %v656 = vmax.f32 %v610, 0.0
        %v657 = vmax.f32 %v615, 0.0
        %v658 = vmax.f32 %v618, 0.0
        %v659 = vmax.f32 %v623, 0.0
        %v660 = vmax.f32 %v626, 0.0
        %v677 = vrot.slane %v629, 1
        %v678 = vrot.slane %v631, 1
        %v679 = vrot.slane %v633, 1
        %v680 = vrot.slane %v635, 1
        %v681 = vrot.slane %v637, 1
        %v682 = vrot.slane %v639, 1
        %v683 = vrot.slane %v641, 1
        %v684 = vrot.slane %v643, 1
        %v685 = vrot.slane %v645, 1
        %v686 = vrot.slane %v647, 1
        %v687 = vrot.slane %v649, 1
        %v688 = vrot.slane %v651, 1
        %v689 = vrot.slane %v653, 1
        %v690 = vrot.slane %v655, 1
        %v691 = vrot.slane %v657, 1
        %v692 = vrot.slane %v659, 1
        %vm725 = vcmask 1040384
        %v726 = vrot.slane %v629, 7
        %v727 = vrot.slane %v630, 7
        %v728 = vsel %vm725, %v726, %v727
        %v729 = vrot.slane %v631, 7
        %v730 = vrot.slane %v632, 7
        %v731 = vsel %vm725, %v729, %v730
        %v732 = vrot.slane %v633, 7
        %v733 = vrot.slane %v634, 7
        %v734 = vsel %vm725, %v732, %v733
        %v735 = vrot.slane %v635, 7
        %v736 = vrot.slane %v636, 7
        %v737 = vsel %vm725, %v735, %v736
        %v738 = vrot.slane %v637, 7
        %v739 = vrot.slane %v638, 7
        %v740 = vsel %vm725, %v738, %v739
        %v741 = vrot.slane %v639, 7
        %v742 = vrot.slane %v640, 7
        %v743 = vsel %vm725, %v741, %v742
        %v744 = vrot.slane %v641, 7
        %v745 = vrot.slane %v642, 7
        %v746 = vsel %vm725, %v744, %v745
        %v747 = vrot.slane %v643, 7
        %v748 = vrot.slane %v644, 7
        %v749 = vsel %vm725, %v747, %v748
        %v750 = vrot.slane %v645, 7
        %v751 = vrot.slane %v646, 7
        %v752 = vsel %vm725, %v750, %v751
        %v753 = vrot.slane %v647, 7
        %v754 = vrot.slane %v648, 7
        %v755 = vsel %vm725, %v753, %v754
        %v756 = vrot.slane %v649, 7
        %v757 = vrot.slane %v650, 7
        %v758 = vsel %vm725, %v756, %v757
        %v759 = vrot.slane %v651, 7
        %v760 = vrot.slane %v652, 7
        %v761 = vsel %vm725, %v759, %v760
        %v762 = vrot.slane %v653, 7
        %v763 = vrot.slane %v654, 7
        %v764 = vsel %vm725, %v762, %v763
        %v765 = vrot.slane %v655, 7
        %v766 = vrot.slane %v656, 7
        %v767 = vsel %vm725, %v765, %v766
        %v768 = vrot.slane %v657, 7
        %v769 = vrot.slane %v658, 7
        %v770 = vsel %vm725, %v768, %v769
        %v771 = vrot.slane %v659, 7
        %v772 = vrot.slane %v660, 7
        %v773 = vsel %vm725, %v771, %v772
        %v822 = vrot.slane %v630, 5
        %v823 = vrot.slane %v632, 5
        %v824 = vrot.slane %v634, 5
        %v825 = vrot.slane %v636, 5
        %v826 = vrot.slane %v638, 5
        %v827 = vrot.slane %v640, 5
        %v828 = vrot.slane %v642, 5
        %v829 = vrot.slane %v644, 5
        %v830 = vrot.slane %v646, 5
        %v831 = vrot.slane %v648, 5
        %v832 = vrot.slane %v650, 5
        %v833 = vrot.slane %v652, 5
        %v834 = vrot.slane %v654, 5
        %v835 = vrot.slane %v656, 5
        %v836 = vrot.slane %v658, 5
        %v837 = vrot.slane %v660, 5
        %v854 = vsel %vm725, %v677, %v726
        %v855 = vsel %vm725, %v678, %v729
        %v856 = vsel %vm725, %v679, %v732
        %v857 = vsel %vm725, %v680, %v735
        %v858 = vsel %vm725, %v681, %v738
        %v859 = vsel %vm725, %v682, %v741
        %v860 = vsel %vm725, %v683, %v744
        %v861 = vsel %vm725, %v684, %v747
        %v862 = vsel %vm725, %v685, %v750
        %v863 = vsel %vm725, %v686, %v753
        %v864 = vsel %vm725, %v687, %v756
        %v865 = vsel %vm725, %v688, %v759
        %v866 = vsel %vm725, %v689, %v762
        %v867 = vsel %vm725, %v690, %v765
        %v868 = vsel %vm725, %v691, %v768
        %v869 = vsel %vm725, %v692, %v771
        %v870 = vsel %vm725, %v727, %v822
        %v871 = vsel %vm725, %v730, %v823
        %v872 = vsel %vm725, %v733, %v824
        %v873 = vsel %vm725, %v736, %v825
        %v874 = vsel %vm725, %v739, %v826
        %v875 = vsel %vm725, %v742, %v827
        %v876 = vsel %vm725, %v745, %v828
        %v877 = vsel %vm725, %v748, %v829
        %v878 = vsel %vm725, %v751, %v830
        %v879 = vsel %vm725, %v754, %v831
        %v880 = vsel %vm725, %v757, %v832
        %v881 = vsel %vm725, %v760, %v833
        %v882 = vsel %vm725, %v763, %v834
        %v883 = vsel %vm725, %v766, %v835
        %v884 = vsel %vm725, %v769, %v836
        %v885 = vsel %vm725, %v772, %v837
        %s886 = scalar_lea.vmem [#allocation2], 24
        %vm887 = vcmask 523264
        %888 = vst.msk [vmem:[%s886] sm:$0xff] %vm887, %v854
        %889 = vst.msk [vmem:[%s886 + $0x8] sm:$0xff] %vm887, %v728
        %vm890 = vcmask 517120
        %891 = vst.msk [vmem:[%s886 + $0x10] sm:$0x3] %vm890, %v870
        %892 = vst.msk [vmem:[%s886 + $0x18] sm:$0xff] %vm887, %v855
        %893 = vst.msk [vmem:[%s886 + $0x20] sm:$0xff] %vm887, %v731
        %894 = vst.msk [vmem:[%s886 + $0x28] sm:$0x3] %vm890, %v871
        %895 = vst.msk [vmem:[%s886 + $0x30] sm:$0xff] %vm887, %v856
        %896 = vst.msk [vmem:[%s886 + $0x38] sm:$0xff] %vm887, %v734
        %897 = vst.msk [vmem:[%s886 + $0x40] sm:$0x3] %vm890, %v872
        %898 = vst.msk [vmem:[%s886 + $0x48] sm:$0xff] %vm887, %v857
        %899 = vst.msk [vmem:[%s886 + $0x50] sm:$0xff] %vm887, %v737
        %900 = vst.msk [vmem:[%s886 + $0x58] sm:$0x3] %vm890, %v873
        %901 = vst.msk [vmem:[%s886 + $0x60] sm:$0xff] %vm887, %v858
        %902 = vst.msk [vmem:[%s886 + $0x68] sm:$0xff] %vm887, %v740
        %903 = vst.msk [vmem:[%s886 + $0x70] sm:$0x3] %vm890, %v874
        %904 = vst.msk [vmem:[%s886 + $0x78] sm:$0xff] %vm887, %v859
        %905 = vst.msk [vmem:[%s886 + $0x80] sm:$0xff] %vm887, %v743
        %906 = vst.msk [vmem:[%s886 + $0x88] sm:$0x3] %vm890, %v875
        %907 = vst.msk [vmem:[%s886 + $0x90] sm:$0xff] %vm887, %v860
        %908 = vst.msk [vmem:[%s886 + $0x98] sm:$0xff] %vm887, %v746
        %909 = vst.msk [vmem:[%s886 + $0xa0] sm:$0x3] %vm890, %v876
        %910 = vst.msk [vmem:[%s886 + $0xa8] sm:$0xff] %vm887, %v861
        %911 = vst.msk [vmem:[%s886 + $0xb0] sm:$0xff] %vm887, %v749
        %912 = vst.msk [vmem:[%s886 + $0xb8] sm:$0x3] %vm890, %v877
        %913 = vst.msk [vmem:[%s886 + $0xc0] sm:$0xff] %vm887, %v862
        %914 = vst.msk [vmem:[%s886 + $0xc8] sm:$0xff] %vm887, %v752
        %915 = vst.msk [vmem:[%s886 + $0xd0] sm:$0x3] %vm890, %v878
        %916 = vst.msk [vmem:[%s886 + $0xd8] sm:$0xff] %vm887, %v863
        %917 = vst.msk [vmem:[%s886 + $0xe0] sm:$0xff] %vm887, %v755
        %918 = vst.msk [vmem:[%s886 + $0xe8] sm:$0x3] %vm890, %v879
        %919 = vst.msk [vmem:[%s886 + $0xf0] sm:$0xff] %vm887, %v864
        %920 = vst.msk [vmem:[%s886 + $0xf8] sm:$0xff] %vm887, %v758
        %921 = vst.msk [vmem:[%s886 + $0x100] sm:$0x3] %vm890, %v880
        %922 = vst.msk [vmem:[%s886 + $0x108] sm:$0xff] %vm887, %v865
        %923 = vst.msk [vmem:[%s886 + $0x110] sm:$0xff] %vm887, %v761
        %924 = vst.msk [vmem:[%s886 + $0x118] sm:$0x3] %vm890, %v881
        %925 = vst.msk [vmem:[%s886 + $0x120] sm:$0xff] %vm887, %v866
        %926 = vst.msk [vmem:[%s886 + $0x128] sm:$0xff] %vm887, %v764
        %927 = vst.msk [vmem:[%s886 + $0x130] sm:$0x3] %vm890, %v882
        %928 = vst.msk [vmem:[%s886 + $0x138] sm:$0xff] %vm887, %v867
        %929 = vst.msk [vmem:[%s886 + $0x140] sm:$0xff] %vm887, %v767
        %930 = vst.msk [vmem:[%s886 + $0x148] sm:$0x3] %vm890, %v883
        %931 = vst.msk [vmem:[%s886 + $0x150] sm:$0xff] %vm887, %v868
        %932 = vst.msk [vmem:[%s886 + $0x158] sm:$0xff] %vm887, %v770
        %933 = vst.msk [vmem:[%s886 + $0x160] sm:$0x3] %vm890, %v884
        %934 = vst.msk [vmem:[%s886 + $0x168] sm:$0xff] %vm887, %v869
        %935 = vst.msk [vmem:[%s886 + $0x170] sm:$0xff] %vm887, %v773
        %936 = vst.msk [vmem:[%s886 + $0x178] sm:$0x3] %vm890, %v885
        %s937 = scalar_lea.vmem [#allocation2], 48
        %v938 = vld [vmem:[%s937] sm:$0xff]
        %v939 = vld [vmem:[%s937 + $0x8] sm:$0xff]
        %v940 = vld [vmem:[%s937 + $0x10] sm:$0x3]
        %941 = vst.msk [vmem:[#allocation2] sm:$0xff] %vm887, %v938
        %942 = vst.msk [vmem:[#allocation2 + $0x8] sm:$0xff] %vm887, %v939
        %943 = vst.msk [vmem:[#allocation2 + $0x10] sm:$0x3] %vm890, %v940
        %s944 = scalar_lea.vmem [#allocation2], 360
        %v945 = vld [vmem:[%s944] sm:$0xff]
        %v946 = vld [vmem:[%s944 + $0x8] sm:$0xff]
        %v947 = vld [vmem:[%s944 + $0x10] sm:$0x3]
        %s948 = scalar_lea.vmem [#allocation2], 408
        %949 = vst.msk [vmem:[%s948] sm:$0xff] %vm887, %v945
        %950 = vst.msk [vmem:[%s948 + $0x8] sm:$0xff] %vm887, %v946
        %951 = vst.msk [vmem:[%s948 + $0x10] sm:$0x3] %vm890, %v947
        %v952 = vld [vmem:[#allocation2] sm:$0xff]
        %v953 = vld [vmem:[#allocation2 + $0x8] sm:$0xff]
        %v954 = vld [vmem:[#allocation2 + $0x10] sm:$0x3]
        %v955 = vld [vmem:[#allocation2 + $0x18] sm:$0xff]
        %v956 = vld [vmem:[#allocation2 + $0x20] sm:$0xff]
        %v957 = vld [vmem:[#allocation2 + $0x28] sm:$0x3]
        %v958 = vld [vmem:[#allocation2 + $0x30] sm:$0xff]
        %v959 = vld [vmem:[#allocation2 + $0x38] sm:$0xff]
        %v960 = vld [vmem:[#allocation2 + $0x40] sm:$0x3]
        %v961 = vld [vmem:[#allocation2 + $0x48] sm:$0xff]
        %v962 = vld [vmem:[#allocation2 + $0x50] sm:$0xff]
        %v963 = vld [vmem:[#allocation2 + $0x58] sm:$0x3]
        %vm976 = vcmask 1046528
        %v977 = vrot.slane %v952, 1
        %v978 = vrot.slane %v953, 1
        %v979 = vsel %vm976, %v977, %v978
        %v980 = vrot.slane %v954, 1
        %v981 = vsel %vm976, %v978, %v980
        %v982 = vrot.slane %v955, 1
        %v983 = vrot.slane %v956, 1
        %v984 = vsel %vm976, %v982, %v983
        %v985 = vrot.slane %v957, 1
        %v986 = vsel %vm976, %v983, %v985
        %v987 = vrot.slane %v958, 1
        %v988 = vrot.slane %v959, 1
        %v989 = vsel %vm976, %v987, %v988
        %v990 = vrot.slane %v960, 1
        %v991 = vsel %vm976, %v988, %v990
        %v992 = vrot.slane %v961, 1
        %v993 = vrot.slane %v962, 1
        %v994 = vsel %vm976, %v992, %v993
        %v995 = vrot.slane %v963, 1
        %v996 = vsel %vm976, %v993, %v995
        %997 = vrot.lane.b32.xlu0 %v979, 64
        %v998 = vpop.permute.xlu0 %997
        %999 = vrot.lane.b32.xlu0 %v981, 64
        %v1000 = vpop.permute.xlu0 %999
        %1001 = vrot.lane.b32.xlu0 %v984, 64
        %v1002 = vpop.permute.xlu0 %1001
        %1003 = vrot.lane.b32.xlu0 %v986, 64
        %v1004 = vpop.permute.xlu0 %1003
        %1005 = vrot.lane.b32.xlu0 %v989, 64
        %v1006 = vpop.permute.xlu0 %1005
        %1007 = vrot.lane.b32.xlu0 %v991, 64
        %v1008 = vpop.permute.xlu0 %1007
        %1009 = vrot.lane.b32.xlu0 %v994, 64
        %v1010 = vpop.permute.xlu0 %1009
        %1011 = vrot.lane.b32.xlu0 %v996, 64
        %v1012 = vpop.permute.xlu0 %1011
        %v1021 = vrot.slane %v952, 2
        %v1022 = vrot.slane %v953, 2
        %v1023 = vsel %vm462, %v1021, %v1022
        %v1024 = vrot.slane %v954, 2
        %v1025 = vsel %vm462, %v1022, %v1024
        %v1026 = vrot.slane %v955, 2
        %v1027 = vrot.slane %v956, 2
        %v1028 = vsel %vm462, %v1026, %v1027
        %v1029 = vrot.slane %v957, 2
        %v1030 = vsel %vm462, %v1027, %v1029
        %v1031 = vrot.slane %v958, 2
        %v1032 = vrot.slane %v959, 2
        %v1033 = vsel %vm462, %v1031, %v1032
        %v1034 = vrot.slane %v960, 2
        %v1035 = vsel %vm462, %v1032, %v1034
        %v1036 = vrot.slane %v961, 2
        %v1037 = vrot.slane %v962, 2
        %v1038 = vsel %vm462, %v1036, %v1037
        %v1039 = vrot.slane %v963, 2
        %v1040 = vsel %vm462, %v1037, %v1039
        %v1049 = vsel %vm887, %v952, %v998
        %v1050 = vsel %vm887, %v953, %v1000
        %v1051 = vsel %vm887, %v955, %v1002
        %v1052 = vsel %vm887, %v956, %v1004
        %v1053 = vsel %vm887, %v958, %v1006
        %v1054 = vsel %vm887, %v959, %v1008
        %v1055 = vsel %vm887, %v961, %v1010
        %v1056 = vsel %vm887, %v962, %v1012
        %v1057 = vpack.c.bf16 %v1050, %v1049
        %v1058 = vpack.c.bf16 %v1025, %v1023
        %v1059 = vpack.c.bf16 %v1052, %v1051
        %v1060 = vpack.c.bf16 %v1030, %v1028
        %v1061 = vpack.c.bf16 %v1054, %v1053
        %v1062 = vpack.c.bf16 %v1035, %v1033
        %v1063 = vpack.c.bf16 %v1056, %v1055
        %v1064 = vpack.c.bf16 %v1040, %v1038
        %v1065 = vld [vmem:[%s3] sm:$0xf]
        %v1066 = vld [vmem:[%s3 + $0x4] sm:$0xf]
        %v1067 = vld [vmem:[%s3 + $0x8] sm:$0xf]
        %v1068 = vld [vmem:[%s3 + $0xc] sm:$0xf]
        %v1069 = vld [vmem:[%s3 + $0x10] sm:$0xf]
        %v1070 = vld [vmem:[%s3 + $0x14] sm:$0xf]
        %v1071 = vld [vmem:[%s3 + $0x18] sm:$0xf]
        %v1072 = vld [vmem:[%s3 + $0x1c] sm:$0xf]
        %v1073 = vld [vmem:[%s3 + $0x20] sm:$0xf]
        %v1074 = vld [vmem:[%s3 + $0x24] sm:$0xf]
        %v1075 = vld [vmem:[%s3 + $0x28] sm:$0xf]
        %v1076 = vld [vmem:[%s3 + $0x2c] sm:$0xf]
        %v1077 = vld [vmem:[%s3 + $0x30] sm:$0xf]
        %v1078 = vld [vmem:[%s3 + $0x34] sm:$0xf]
        %v1079 = vld [vmem:[%s3 + $0x38] sm:$0xf]
        %v1080 = vld [vmem:[%s3 + $0x3c] sm:$0xf]
        %v1081 = vld [vmem:[%s3 + $0x40] sm:$0xf]
        %v1082 = vld [vmem:[%s3 + $0x44] sm:$0xf]
        %v1083 = vld [vmem:[%s3 + $0x48] sm:$0xf]
        %v1084 = vld [vmem:[%s3 + $0x4c] sm:$0xf]
        %v1085 = vld [vmem:[%s3 + $0x50] sm:$0xf]
        %v1086 = vld [vmem:[%s3 + $0x54] sm:$0xf]
        %v1087 = vld [vmem:[%s3 + $0x58] sm:$0xf]
        %v1088 = vld [vmem:[%s3 + $0x5c] sm:$0xf]
        %v1089 = vld [vmem:[%s886] sm:$0xff]
        %v1090 = vld [vmem:[%s886 + $0x8] sm:$0xff]
        %v1091 = vld [vmem:[%s886 + $0x10] sm:$0x3]
        %v1092 = vld [vmem:[%s886 + $0x18] sm:$0xff]
        %v1093 = vld [vmem:[%s886 + $0x20] sm:$0xff]
        %v1094 = vld [vmem:[%s886 + $0x28] sm:$0x3]
        %v1095 = vld [vmem:[%s886 + $0x30] sm:$0xff]
        %v1096 = vld [vmem:[%s886 + $0x38] sm:$0xff]
        %v1097 = vld [vmem:[%s886 + $0x40] sm:$0x3]
        %v1098 = vld [vmem:[%s886 + $0x48] sm:$0xff]
        %v1099 = vld [vmem:[%s886 + $0x50] sm:$0xff]
        %v1100 = vld [vmem:[%s886 + $0x58] sm:$0x3]
        %v1113 = vrot.slane %v1089, 1
        %v1114 = vrot.slane %v1090, 1
        %v1115 = vsel %vm976, %v1113, %v1114
        %v1116 = vrot.slane %v1091, 1
        %v1117 = vsel %vm976, %v1114, %v1116
        %v1118 = vrot.slane %v1092, 1
        %v1119 = vrot.slane %v1093, 1
        %v1120 = vsel %vm976, %v1118, %v1119
        %v1121 = vrot.slane %v1094, 1
        %v1122 = vsel %vm976, %v1119, %v1121
        %v1123 = vrot.slane %v1095, 1
        %v1124 = vrot.slane %v1096, 1
        %v1125 = vsel %vm976, %v1123, %v1124
        %v1126 = vrot.slane %v1097, 1
        %v1127 = vsel %vm976, %v1124, %v1126
        %v1128 = vrot.slane %v1098, 1
        %v1129 = vrot.slane %v1099, 1
        %v1130 = vsel %vm976, %v1128, %v1129
        %v1131 = vrot.slane %v1100, 1
        %v1132 = vsel %vm976, %v1129, %v1131
        %1133 = vrot.lane.b32.xlu0 %v1115, 64
        %v1134 = vpop.permute.xlu0 %1133
        %1135 = vrot.lane.b32.xlu0 %v1117, 64
        %v1136 = vpop.permute.xlu0 %1135
        %1137 = vrot.lane.b32.xlu0 %v1120, 64
        %v1138 = vpop.permute.xlu0 %1137
        %1139 = vrot.lane.b32.xlu0 %v1122, 64
        %v1140 = vpop.permute.xlu0 %1139
        %1141 = vrot.lane.b32.xlu0 %v1125, 64
        %v1142 = vpop.permute.xlu0 %1141
        %1143 = vrot.lane.b32.xlu0 %v1127, 64
        %v1144 = vpop.permute.xlu0 %1143
        %1145 = vrot.lane.b32.xlu0 %v1130, 64
        %v1146 = vpop.permute.xlu0 %1145
        %1147 = vrot.lane.b32.xlu0 %v1132, 64
        %v1148 = vpop.permute.xlu0 %1147
        %v1157 = vrot.slane %v1089, 2
        %v1158 = vrot.slane %v1090, 2
        %v1159 = vsel %vm462, %v1157, %v1158
        %v1160 = vrot.slane %v1091, 2
        %v1161 = vsel %vm462, %v1158, %v1160
        %v1162 = vrot.slane %v1092, 2
        %v1163 = vrot.slane %v1093, 2
        %v1164 = vsel %vm462, %v1162, %v1163
        %v1165 = vrot.slane %v1094, 2
        %v1166 = vsel %vm462, %v1163, %v1165
        %v1167 = vrot.slane %v1095, 2
        %v1168 = vrot.slane %v1096, 2
        %v1169 = vsel %vm462, %v1167, %v1168
        %v1170 = vrot.slane %v1097, 2
        %v1171 = vsel %vm462, %v1168, %v1170
        %v1172 = vrot.slane %v1098, 2
        %v1173 = vrot.slane %v1099, 2
        %v1174 = vsel %vm462, %v1172, %v1173
        %v1175 = vrot.slane %v1100, 2
        %v1176 = vsel %vm462, %v1173, %v1175
        %v1185 = vsel %vm887, %v1089, %v1134
        %v1186 = vsel %vm887, %v1090, %v1136
        %v1187 = vsel %vm887, %v1092, %v1138
        %v1188 = vsel %vm887, %v1093, %v1140
        %v1189 = vsel %vm887, %v1095, %v1142
        %v1190 = vsel %vm887, %v1096, %v1144
        %v1191 = vsel %vm887, %v1098, %v1146
        %v1192 = vsel %vm887, %v1099, %v1148
        %v1193 = vpack.c.bf16 %v1186, %v1185
        %v1194 = vpack.c.bf16 %v1161, %v1159
        %v1195 = vpack.c.bf16 %v1188, %v1187
        %v1196 = vpack.c.bf16 %v1166, %v1164
        %v1197 = vpack.c.bf16 %v1190, %v1189
        %v1198 = vpack.c.bf16 %v1171, %v1169
        %v1199 = vpack.c.bf16 %v1192, %v1191
        %v1200 = vpack.c.bf16 %v1176, %v1174
        %s1201 = scalar_lea.vmem %s3, 96
        %v1202 = vld [vmem:[%s1201] sm:$0xf]
        %v1203 = vld [vmem:[%s1201 + $0x4] sm:$0xf]
        %v1204 = vld [vmem:[%s1201 + $0x8] sm:$0xf]
        %v1205 = vld [vmem:[%s1201 + $0xc] sm:$0xf]
        %v1206 = vld [vmem:[%s1201 + $0x10] sm:$0xf]
        %v1207 = vld [vmem:[%s1201 + $0x14] sm:$0xf]
        %v1208 = vld [vmem:[%s1201 + $0x18] sm:$0xf]
        %v1209 = vld [vmem:[%s1201 + $0x1c] sm:$0xf]
        %v1210 = vld [vmem:[%s1201 + $0x20] sm:$0xf]
        %v1211 = vld [vmem:[%s1201 + $0x24] sm:$0xf]
        %v1212 = vld [vmem:[%s1201 + $0x28] sm:$0xf]
        %v1213 = vld [vmem:[%s1201 + $0x2c] sm:$0xf]
        %v1214 = vld [vmem:[%s1201 + $0x30] sm:$0xf]
        %v1215 = vld [vmem:[%s1201 + $0x34] sm:$0xf]
        %v1216 = vld [vmem:[%s1201 + $0x38] sm:$0xf]
        %v1217 = vld [vmem:[%s1201 + $0x3c] sm:$0xf]
        %v1218 = vld [vmem:[%s1201 + $0x40] sm:$0xf]
        %v1219 = vld [vmem:[%s1201 + $0x44] sm:$0xf]
        %v1220 = vld [vmem:[%s1201 + $0x48] sm:$0xf]
        %v1221 = vld [vmem:[%s1201 + $0x4c] sm:$0xf]
        %v1222 = vld [vmem:[%s1201 + $0x50] sm:$0xf]
        %v1223 = vld [vmem:[%s1201 + $0x54] sm:$0xf]
        %v1224 = vld [vmem:[%s1201 + $0x58] sm:$0xf]
        %v1225 = vld [vmem:[%s1201 + $0x5c] sm:$0xf]
        %v1250 = vunpack.c.l.b16 %v1202
        %v1251 = vunpack.c.l.b16 %v1203
        %v1252 = vunpack.c.l.b16 %v1204
        %v1253 = vunpack.c.l.b16 %v1205
        %v1254 = vunpack.c.l.b16 %v1206
        %v1255 = vunpack.c.l.b16 %v1207
        %v1256 = vunpack.c.l.b16 %v1208
        %v1257 = vunpack.c.l.b16 %v1209
        %v1258 = vunpack.c.l.b16 %v1210
        %v1259 = vunpack.c.l.b16 %v1211
        %v1260 = vunpack.c.l.b16 %v1212
        %v1261 = vunpack.c.l.b16 %v1213
        %v1262 = vunpack.c.l.b16 %v1214
        %v1263 = vunpack.c.l.b16 %v1215
        %v1264 = vunpack.c.l.b16 %v1216
        %v1265 = vunpack.c.l.b16 %v1217
        %v1266 = vunpack.c.l.b16 %v1218
        %v1267 = vunpack.c.l.b16 %v1219
        %v1268 = vunpack.c.l.b16 %v1220
        %v1269 = vunpack.c.l.b16 %v1221
        %v1270 = vunpack.c.l.b16 %v1222
        %v1271 = vunpack.c.l.b16 %v1223
        %v1272 = vunpack.c.l.b16 %v1224
        %v1273 = vunpack.c.l.b16 %v1225
        %v1274 = vpack.c.b16 %v1251, %v1250
        %v1275 = vpack.c.b16 %v1253, %v1252
        %v1276 = vpack.c.b16 %v1255, %v1254
        %v1277 = vpack.c.b16 %v1257, %v1256
        %v1278 = vpack.c.b16 %v1259, %v1258
        %v1279 = vpack.c.b16 %v1261, %v1260
        %v1280 = vpack.c.b16 %v1263, %v1262
        %v1281 = vpack.c.b16 %v1265, %v1264
        %v1282 = vpack.c.b16 %v1267, %v1266
        %v1283 = vpack.c.b16 %v1269, %v1268
        %v1284 = vpack.c.b16 %v1271, %v1270
        %v1285 = vpack.c.b16 %v1273, %v1272
        %v1299 = vsel %vm887, %v1194, 0
        %v1302 = vsel %vm887, %v1196, 0
        %v1305 = vsel %vm887, %v1198, 0
        %v1308 = vsel %vm887, %v1200, 0
        %1310 = vmatprep.subr.bf16.mxu0 0
        %1311 = vmatpush1.bf16.msra.mxu0 %v1274
        %1312 = vmatprep.subr.bf16.mxu0 0
        %1313 = vmatpush1.bf16.msra.mxu0 %v1275
        %1314 = vmatprep.subr.bf16.mxu0 0
        %1315 = vmatpush1.bf16.msra.mxu0 %v1276
        %1316 = vmatprep.subr.bf16.mxu0 0
        %1317 = vmatpush1.bf16.msra.mxu0 %v1277
        %1318 = vmatprep.subr.bf16.mxu0 0
        %1319 = vmatpush1.bf16.msra.mxu0 %v1278
        %1320 = vmatprep.subr.bf16.mxu0 0
        %1321 = vmatpush1.bf16.msra.mxu0 %v1279
        %1322 = vmatprep.subr.bf16.mxu0 0
        %1323 = vmatpush1.bf16.msra.mxu0 %v1280
        %1324 = vmatprep.subr.bf16.mxu0 0
        %1325 = vmatpush1.bf16.msra.mxu0 %v1281
        %1326 = vmatprep.subr.bf16.mxu0 0
        %1327 = vmatpush1.bf16.msra.mxu0 %v1282
        %1328 = vmatprep.subr.bf16.mxu0 0
        %1329 = vmatpush1.bf16.msra.mxu0 %v1283
        %1330 = vmatprep.subr.bf16.mxu0 0
        %1331 = vmatpush1.bf16.msra.mxu0 %v1284
        %1332 = vmatprep.subr.bf16.mxu0 0
        %1333 = vmatpush1.bf16.msra.mxu0 %v1285
        %1334 = vmatprep.subr.bf16.mxu0 0
        %1335 = vmatpush1.bf16.msra.mxu0 0
        %1336 = vmatprep.subr.bf16.mxu0 0
        %1337 = vmatpush1.bf16.msra.mxu0 0
        %1338 = vmatprep.subr.bf16.mxu0 0
        %1339 = vmatpush1.bf16.msra.mxu0 0
        %1340 = vmatprep.subr.bf16.mxu0 0
        %1341 = vmatpush1.bf16.msra.mxu0 0
        %1342 = vmatprep.mubr.bf16.mxu0 %v1299
        %1343 = vmatmul.mubr.bf16.gmra.mrb[0].mxu0 %v1193
        %v1344 = vpop.f32.mrb[0].mxu0
        %v1345 = vadd.f32 0.0, %v1344
        %v1346 = vpop.f32.mrb[0].mxu0
        %v1347 = vpop.f32.mrb[0].mxu0
        %v1348 = vadd.f32 0.0, %v1347
        %v1349 = vpop.f32.mrb[0].mxu0
        %1350 = vmatprep.mubr.bf16.mxu0 %v1302
        %1351 = vmatmul.mubr.bf16.gmra.mrb[0].mxu0 %v1195
        %v1352 = vpop.f32.mrb[0].mxu0
        %v1353 = vadd.f32 0.0, %v1352
        %v1354 = vpop.f32.mrb[0].mxu0
        %v1355 = vpop.f32.mrb[0].mxu0
        %v1356 = vadd.f32 0.0, %v1355
        %v1357 = vpop.f32.mrb[0].mxu0
        %1358 = vmatprep.mubr.bf16.mxu0 %v1305
        %1359 = vmatmul.mubr.bf16.gmra.mrb[0].mxu0 %v1197
        %v1360 = vpop.f32.mrb[0].mxu0
        %v1361 = vadd.f32 0.0, %v1360
        %v1362 = vpop.f32.mrb[0].mxu0
        %v1363 = vpop.f32.mrb[0].mxu0
        %v1364 = vadd.f32 0.0, %v1363
        %v1365 = vpop.f32.mrb[0].mxu0
        %1366 = vmatprep.mubr.bf16.mxu0 %v1308
        %1367 = vmatmul.mubr.bf16.gmra.mrb[0].mxu0 %v1199
        %v1368 = vpop.f32.mrb[0].mxu0
        %v1369 = vadd.f32 0.0, %v1368
        %v1370 = vpop.f32.mrb[0].mxu0
        %v1371 = vpop.f32.mrb[0].mxu0
        %v1372 = vadd.f32 0.0, %v1371
        %v1373 = vpop.f32.mrb[0].mxu0
        %1374 = vdwg.mxu0
        %v1399 = vunpack.c.l.b16 %v1065
        %v1400 = vunpack.c.l.b16 %v1066
        %v1401 = vunpack.c.l.b16 %v1067
        %v1402 = vunpack.c.l.b16 %v1068
        %v1403 = vunpack.c.l.b16 %v1069
        %v1404 = vunpack.c.l.b16 %v1070
        %v1405 = vunpack.c.l.b16 %v1071
        %v1406 = vunpack.c.l.b16 %v1072
        %v1407 = vunpack.c.l.b16 %v1073
        %v1408 = vunpack.c.l.b16 %v1074
        %v1409 = vunpack.c.l.b16 %v1075
        %v1410 = vunpack.c.l.b16 %v1076
        %v1411 = vunpack.c.l.b16 %v1077
        %v1412 = vunpack.c.l.b16 %v1078
        %v1413 = vunpack.c.l.b16 %v1079
        %v1414 = vunpack.c.l.b16 %v1080
        %v1415 = vunpack.c.l.b16 %v1081
        %v1416 = vunpack.c.l.b16 %v1082
        %v1417 = vunpack.c.l.b16 %v1083
        %v1418 = vunpack.c.l.b16 %v1084
        %v1419 = vunpack.c.l.b16 %v1085
        %v1420 = vunpack.c.l.b16 %v1086
        %v1421 = vunpack.c.l.b16 %v1087
        %v1422 = vunpack.c.l.b16 %v1088
        %v1423 = vpack.c.b16 %v1400, %v1399
        %v1424 = vpack.c.b16 %v1402, %v1401
        %v1425 = vpack.c.b16 %v1404, %v1403
        %v1426 = vpack.c.b16 %v1406, %v1405
        %v1427 = vpack.c.b16 %v1408, %v1407
        %v1428 = vpack.c.b16 %v1410, %v1409
        %v1429 = vpack.c.b16 %v1412, %v1411
        %v1430 = vpack.c.b16 %v1414, %v1413
        %v1431 = vpack.c.b16 %v1416, %v1415
        %v1432 = vpack.c.b16 %v1418, %v1417
        %v1433 = vpack.c.b16 %v1420, %v1419
        %v1434 = vpack.c.b16 %v1422, %v1421
        %v1448 = vsel %vm887, %v1058, 0
        %v1451 = vsel %vm887, %v1060, 0
        %v1454 = vsel %vm887, %v1062, 0
        %v1457 = vsel %vm887, %v1064, 0
        %1459 = vmatprep.subr.bf16.mxu0 0
        %1460 = vmatpush1.bf16.msra.mxu0 %v1423
        %1461 = vmatprep.subr.bf16.mxu0 0
        %1462 = vmatpush1.bf16.msra.mxu0 %v1424
        %1463 = vmatprep.subr.bf16.mxu0 0
        %1464 = vmatpush1.bf16.msra.mxu0 %v1425
        %1465 = vmatprep.subr.bf16.mxu0 0
        %1466 = vmatpush1.bf16.msra.mxu0 %v1426
        %1467 = vmatprep.subr.bf16.mxu0 0
        %1468 = vmatpush1.bf16.msra.mxu0 %v1427
        %1469 = vmatprep.subr.bf16.mxu0 0
        %1470 = vmatpush1.bf16.msra.mxu0 %v1428
        %1471 = vmatprep.subr.bf16.mxu0 0
        %1472 = vmatpush1.bf16.msra.mxu0 %v1429
        %1473 = vmatprep.subr.bf16.mxu0 0
        %1474 = vmatpush1.bf16.msra.mxu0 %v1430
        %1475 = vmatprep.subr.bf16.mxu0 0
        %1476 = vmatpush1.bf16.msra.mxu0 %v1431
        %1477 = vmatprep.subr.bf16.mxu0 0
        %1478 = vmatpush1.bf16.msra.mxu0 %v1432
        %1479 = vmatprep.subr.bf16.mxu0 0
        %1480 = vmatpush1.bf16.msra.mxu0 %v1433
        %1481 = vmatprep.subr.bf16.mxu0 0
        %1482 = vmatpush1.bf16.msra.mxu0 %v1434
        %1483 = vmatprep.subr.bf16.mxu0 0
        %1484 = vmatpush1.bf16.msra.mxu0 0
        %1485 = vmatprep.subr.bf16.mxu0 0
        %1486 = vmatpush1.bf16.msra.mxu0 0
        %1487 = vmatprep.subr.bf16.mxu0 0
        %1488 = vmatpush1.bf16.msra.mxu0 0
        %1489 = vmatprep.subr.bf16.mxu0 0
        %1490 = vmatpush1.bf16.msra.mxu0 0
        %1491 = vmatprep.mubr.bf16.mxu0 %v1448
        %1492 = vmatmul.mubr.bf16.gmra.mrb[0].mxu0 %v1057
        %v1493 = vpop.f32.mrb[0].mxu0
        %v1494 = vadd.f32 %v1345, %v1493
        %v1495 = vpop.f32.mrb[0].mxu0
        %v1496 = vpop.f32.mrb[0].mxu0
        %v1497 = vadd.f32 %v1348, %v1496
        %v1498 = vpop.f32.mrb[0].mxu0
        %1499 = vmatprep.mubr.bf16.mxu0 %v1451
        %1500 = vmatmul.mubr.bf16.gmra.mrb[0].mxu0 %v1059
        %v1501 = vpop.f32.mrb[0].mxu0
        %v1502 = vadd.f32 %v1353, %v1501
        %v1503 = vpop.f32.mrb[0].mxu0
        %v1504 = vpop.f32.mrb[0].mxu0
        %v1505 = vadd.f32 %v1356, %v1504
        %v1506 = vpop.f32.mrb[0].mxu0
        %1507 = vmatprep.mubr.bf16.mxu0 %v1454
        %1508 = vmatmul.mubr.bf16.gmra.mrb[0].mxu0 %v1061
        %v1509 = vpop.f32.mrb[0].mxu0
        %v1510 = vadd.f32 %v1361, %v1509
        %v1511 = vpop.f32.mrb[0].mxu0
        %v1512 = vpop.f32.mrb[0].mxu0
        %v1513 = vadd.f32 %v1364, %v1512
        %v1514 = vpop.f32.mrb[0].mxu0
        %1515 = vmatprep.mubr.bf16.mxu0 %v1457
        %1516 = vmatmul.mubr.bf16.gmra.mrb[0].mxu0 %v1063
        %v1517 = vpop.f32.mrb[0].mxu0
        %v1518 = vadd.f32 %v1369, %v1517
        %v1519 = vpop.f32.mrb[0].mxu0
        %v1520 = vpop.f32.mrb[0].mxu0
        %v1521 = vadd.f32 %v1372, %v1520
        %v1522 = vpop.f32.mrb[0].mxu0
        %1523 = vdwg.mxu0
        %v1524 = vld [vmem:[%s937] sm:$0xff]
        %v1525 = vld [vmem:[%s937 + $0x8] sm:$0xff]
        %v1526 = vld [vmem:[%s937 + $0x10] sm:$0x3]
        %v1527 = vld [vmem:[%s937 + $0x18] sm:$0xff]
        %v1528 = vld [vmem:[%s937 + $0x20] sm:$0xff]
        %v1529 = vld [vmem:[%s937 + $0x28] sm:$0x3]
        %v1530 = vld [vmem:[%s937 + $0x30] sm:$0xff]
        %v1531 = vld [vmem:[%s937 + $0x38] sm:$0xff]
        %v1532 = vld [vmem:[%s937 + $0x40] sm:$0x3]
        %v1533 = vld [vmem:[%s937 + $0x48] sm:$0xff]
        %v1534 = vld [vmem:[%s937 + $0x50] sm:$0xff]
        %v1535 = vld [vmem:[%s937 + $0x58] sm:$0x3]
        %v1548 = vrot.slane %v1524, 1
        %v1549 = vrot.slane %v1525, 1
        %v1550 = vsel %vm976, %v1548, %v1549
        %v1551 = vrot.slane %v1526, 1
        %v1552 = vsel %vm976, %v1549, %v1551
        %v1553 = vrot.slane %v1527, 1
        %v1554 = vrot.slane %v1528, 1
        %v1555 = vsel %vm976, %v1553, %v1554
        %v1556 = vrot.slane %v1529, 1
        %v1557 = vsel %vm976, %v1554, %v1556
        %v1558 = vrot.slane %v1530, 1
        %v1559 = vrot.slane %v1531, 1
        %v1560 = vsel %vm976, %v1558, %v1559
        %v1561 = vrot.slane %v1532, 1
        %v1562 = vsel %vm976, %v1559, %v1561
        %v1563 = vrot.slane %v1533, 1
        %v1564 = vrot.slane %v1534, 1
        %v1565 = vsel %vm976, %v1563, %v1564
        %v1566 = vrot.slane %v1535, 1
        %v1567 = vsel %vm976, %v1564, %v1566
        %1568 = vrot.lane.b32.xlu0 %v1550, 64
        %v1569 = vpop.permute.xlu0 %1568
        %1570 = vrot.lane.b32.xlu0 %v1552, 64
        %v1571 = vpop.permute.xlu0 %1570
        %1572 = vrot.lane.b32.xlu0 %v1555, 64
        %v1573 = vpop.permute.xlu0 %1572
        %1574 = vrot.lane.b32.xlu0 %v1557, 64
        %v1575 = vpop.permute.xlu0 %1574
        %1576 = vrot.lane.b32.xlu0 %v1560, 64
        %v1577 = vpop.permute.xlu0 %1576
        %1578 = vrot.lane.b32.xlu0 %v1562, 64
        %v1579 = vpop.permute.xlu0 %1578
        %1580 = vrot.lane.b32.xlu0 %v1565, 64
        %v1581 = vpop.permute.xlu0 %1580
        %1582 = vrot.lane.b32.xlu0 %v1567, 64
        %v1583 = vpop.permute.xlu0 %1582
        %v1592 = vrot.slane %v1524, 2
        %v1593 = vrot.slane %v1525, 2
        %v1594 = vsel %vm462, %v1592, %v1593
        %v1595 = vrot.slane %v1526, 2
        %v1596 = vsel %vm462, %v1593, %v1595
        %v1597 = vrot.slane %v1527, 2
        %v1598 = vrot.slane %v1528, 2
        %v1599 = vsel %vm462, %v1597, %v1598
        %v1600 = vrot.slane %v1529, 2
        %v1601 = vsel %vm462, %v1598, %v1600
        %v1602 = vrot.slane %v1530, 2
        %v1603 = vrot.slane %v1531, 2
        %v1604 = vsel %vm462, %v1602, %v1603
        %v1605 = vrot.slane %v1532, 2
        %v1606 = vsel %vm462, %v1603, %v1605
        %v1607 = vrot.slane %v1533, 2
        %v1608 = vrot.slane %v1534, 2
        %v1609 = vsel %vm462, %v1607, %v1608
        %v1610 = vrot.slane %v1535, 2
        %v1611 = vsel %vm462, %v1608, %v1610
        %v1620 = vsel %vm887, %v1524, %v1569
        %v1621 = vsel %vm887, %v1525, %v1571
        %v1622 = vsel %vm887, %v1527, %v1573
        %v1623 = vsel %vm887, %v1528, %v1575
        %v1624 = vsel %vm887, %v1530, %v1577
        %v1625 = vsel %vm887, %v1531, %v1579
        %v1626 = vsel %vm887, %v1533, %v1581
        %v1627 = vsel %vm887, %v1534, %v1583
        %v1628 = vpack.c.bf16 %v1621, %v1620
        %v1629 = vpack.c.bf16 %v1596, %v1594
        %v1630 = vpack.c.bf16 %v1623, %v1622
        %v1631 = vpack.c.bf16 %v1601, %v1599
        %v1632 = vpack.c.bf16 %v1625, %v1624
        %v1633 = vpack.c.bf16 %v1606, %v1604
        %v1634 = vpack.c.bf16 %v1627, %v1626
        %v1635 = vpack.c.bf16 %v1611, %v1609
        %s1636 = scalar_lea.vmem %s3, 192
        %v1637 = vld [vmem:[%s1636] sm:$0xf]
        %v1638 = vld [vmem:[%s1636 + $0x4] sm:$0xf]
        %v1639 = vld [vmem:[%s1636 + $0x8] sm:$0xf]
        %v1640 = vld [vmem:[%s1636 + $0xc] sm:$0xf]
        %v1641 = vld [vmem:[%s1636 + $0x10] sm:$0xf]
        %v1642 = vld [vmem:[%s1636 + $0x14] sm:$0xf]
        %v1643 = vld [vmem:[%s1636 + $0x18] sm:$0xf]
        %v1644 = vld [vmem:[%s1636 + $0x1c] sm:$0xf]
        %v1645 = vld [vmem:[%s1636 + $0x20] sm:$0xf]
        %v1646 = vld [vmem:[%s1636 + $0x24] sm:$0xf]
        %v1647 = vld [vmem:[%s1636 + $0x28] sm:$0xf]
        %v1648 = vld [vmem:[%s1636 + $0x2c] sm:$0xf]
        %v1649 = vld [vmem:[%s1636 + $0x30] sm:$0xf]
        %v1650 = vld [vmem:[%s1636 + $0x34] sm:$0xf]
        %v1651 = vld [vmem:[%s1636 + $0x38] sm:$0xf]
        %v1652 = vld [vmem:[%s1636 + $0x3c] sm:$0xf]
        %v1653 = vld [vmem:[%s1636 + $0x40] sm:$0xf]
        %v1654 = vld [vmem:[%s1636 + $0x44] sm:$0xf]
        %v1655 = vld [vmem:[%s1636 + $0x48] sm:$0xf]
        %v1656 = vld [vmem:[%s1636 + $0x4c] sm:$0xf]
        %v1657 = vld [vmem:[%s1636 + $0x50] sm:$0xf]
        %v1658 = vld [vmem:[%s1636 + $0x54] sm:$0xf]
        %v1659 = vld [vmem:[%s1636 + $0x58] sm:$0xf]
        %v1660 = vld [vmem:[%s1636 + $0x5c] sm:$0xf]
        %v1685 = vunpack.c.l.b16 %v1637
        %v1686 = vunpack.c.l.b16 %v1638
        %v1687 = vunpack.c.l.b16 %v1639
        %v1688 = vunpack.c.l.b16 %v1640
        %v1689 = vunpack.c.l.b16 %v1641
        %v1690 = vunpack.c.l.b16 %v1642
        %v1691 = vunpack.c.l.b16 %v1643
        %v1692 = vunpack.c.l.b16 %v1644
        %v1693 = vunpack.c.l.b16 %v1645
        %v1694 = vunpack.c.l.b16 %v1646
        %v1695 = vunpack.c.l.b16 %v1647
        %v1696 = vunpack.c.l.b16 %v1648
        %v1697 = vunpack.c.l.b16 %v1649
        %v1698 = vunpack.c.l.b16 %v1650
        %v1699 = vunpack.c.l.b16 %v1651
        %v1700 = vunpack.c.l.b16 %v1652
        %v1701 = vunpack.c.l.b16 %v1653
        %v1702 = vunpack.c.l.b16 %v1654
        %v1703 = vunpack.c.l.b16 %v1655
        %v1704 = vunpack.c.l.b16 %v1656
        %v1705 = vunpack.c.l.b16 %v1657
        %v1706 = vunpack.c.l.b16 %v1658
        %v1707 = vunpack.c.l.b16 %v1659
        %v1708 = vunpack.c.l.b16 %v1660
        %v1709 = vpack.c.b16 %v1686, %v1685
        %v1710 = vpack.c.b16 %v1688, %v1687
        %v1711 = vpack.c.b16 %v1690, %v1689
        %v1712 = vpack.c.b16 %v1692, %v1691
        %v1713 = vpack.c.b16 %v1694, %v1693
        %v1714 = vpack.c.b16 %v1696, %v1695
        %v1715 = vpack.c.b16 %v1698, %v1697
        %v1716 = vpack.c.b16 %v1700, %v1699
        %v1717 = vpack.c.b16 %v1702, %v1701
        %v1718 = vpack.c.b16 %v1704, %v1703
        %v1719 = vpack.c.b16 %v1706, %v1705
        %v1720 = vpack.c.b16 %v1708, %v1707
        %v1734 = vsel %vm887, %v1629, 0
        %v1737 = vsel %vm887, %v1631, 0
        %v1740 = vsel %vm887, %v1633, 0
        %v1743 = vsel %vm887, %v1635, 0
        %1745 = vmatprep.subr.bf16.mxu0 0
        %1746 = vmatpush1.bf16.msra.mxu0 %v1709
        %1747 = vmatprep.subr.bf16.mxu0 0
        %1748 = vmatpush1.bf16.msra.mxu0 %v1710
        %1749 = vmatprep.subr.bf16.mxu0 0
        %1750 = vmatpush1.bf16.msra.mxu0 %v1711
        %1751 = vmatprep.subr.bf16.mxu0 0
        %1752 = vmatpush1.bf16.msra.mxu0 %v1712
        %1753 = vmatprep.subr.bf16.mxu0 0
        %1754 = vmatpush1.bf16.msra.mxu0 %v1713
        %1755 = vmatprep.subr.bf16.mxu0 0
        %1756 = vmatpush1.bf16.msra.mxu0 %v1714
        %1757 = vmatprep.subr.bf16.mxu0 0
        %1758 = vmatpush1.bf16.msra.mxu0 %v1715
        %1759 = vmatprep.subr.bf16.mxu0 0
        %1760 = vmatpush1.bf16.msra.mxu0 %v1716
        %1761 = vmatprep.subr.bf16.mxu0 0
        %1762 = vmatpush1.bf16.msra.mxu0 %v1717
        %1763 = vmatprep.subr.bf16.mxu0 0
        %1764 = vmatpush1.bf16.msra.mxu0 %v1718
        %1765 = vmatprep.subr.bf16.mxu0 0
        %1766 = vmatpush1.bf16.msra.mxu0 %v1719
        %1767 = vmatprep.subr.bf16.mxu0 0
        %1768 = vmatpush1.bf16.msra.mxu0 %v1720
        %1769 = vmatprep.subr.bf16.mxu0 0
        %1770 = vmatpush1.bf16.msra.mxu0 0
        %1771 = vmatprep.subr.bf16.mxu0 0
        %1772 = vmatpush1.bf16.msra.mxu0 0
        %1773 = vmatprep.subr.bf16.mxu0 0
        %1774 = vmatpush1.bf16.msra.mxu0 0
        %1775 = vmatprep.subr.bf16.mxu0 0
        %1776 = vmatpush1.bf16.msra.mxu0 0
        %1777 = vmatprep.mubr.bf16.mxu0 %v1734
        %1778 = vmatmul.mubr.bf16.gmra.mrb[0].mxu0 %v1628
        %v1779 = vpop.f32.mrb[0].mxu0
        %v1780 = vadd.f32 0.0, %v1779
        %v1781 = vpop.f32.mrb[0].mxu0
        %v1782 = vpop.f32.mrb[0].mxu0
        %v1783 = vadd.f32 0.0, %v1782
        %v1784 = vpop.f32.mrb[0].mxu0
        %1785 = vmatprep.mubr.bf16.mxu0 %v1737
        %1786 = vmatmul.mubr.bf16.gmra.mrb[0].mxu0 %v1630
        %v1787 = vpop.f32.mrb[0].mxu0
        %v1788 = vadd.f32 0.0, %v1787
        %v1789 = vpop.f32.mrb[0].mxu0
        %v1790 = vpop.f32.mrb[0].mxu0
        %v1791 = vadd.f32 0.0, %v1790
        %v1792 = vpop.f32.mrb[0].mxu0
        %1793 = vmatprep.mubr.bf16.mxu0 %v1740
        %1794 = vmatmul.mubr.bf16.gmra.mrb[0].mxu0 %v1632
        %v1795 = vpop.f32.mrb[0].mxu0
        %v1796 = vadd.f32 0.0, %v1795
        %v1797 = vpop.f32.mrb[0].mxu0
        %v1798 = vpop.f32.mrb[0].mxu0
        %v1799 = vadd.f32 0.0, %v1798
        %v1800 = vpop.f32.mrb[0].mxu0
        %1801 = vmatprep.mubr.bf16.mxu0 %v1743
        %1802 = vmatmul.mubr.bf16.gmra.mrb[0].mxu0 %v1634
        %v1803 = vpop.f32.mrb[0].mxu0
        %v1804 = vadd.f32 0.0, %v1803
        %v1805 = vpop.f32.mrb[0].mxu0
        %v1806 = vpop.f32.mrb[0].mxu0
        %v1807 = vadd.f32 0.0, %v1806
        %v1808 = vpop.f32.mrb[0].mxu0
        %1809 = vdwg.mxu0
        %v1810 = vadd.f32 %v1494, %v1780
        %v1811 = vadd.f32 %v1497, %v1783
        %v1812 = vadd.f32 %v1502, %v1788
        %v1813 = vadd.f32 %v1505, %v1791
        %v1814 = vadd.f32 %v1510, %v1796
        %v1815 = vadd.f32 %v1513, %v1799
        %v1816 = vadd.f32 %v1518, %v1804
        %v1817 = vadd.f32 %v1521, %v1807
        %v1818 = vld [vmem:[%s4] sm:$0x1]
        %v1820 = vlaneseq
        %v1821 = vshrl.u32 %v1820, 7
        %v1822 = vsub.s32 0, %v1821
        %v1823 = vrot.slane %v1818, %v1822
        %v1825 = vadd.f32 %v1810, %v1823
        %v1826 = vadd.f32 %v1811, %v1823
        %v1827 = vadd.f32 %v1812, %v1823
        %v1828 = vadd.f32 %v1813, %v1823
        %v1829 = vadd.f32 %v1814, %v1823
        %v1830 = vadd.f32 %v1815, %v1823
        %v1831 = vadd.f32 %v1816, %v1823
        %v1832 = vadd.f32 %v1817, %v1823
        %v1833 = vmax.f32 %v1825, 0.0
        %v1834 = vmax.f32 %v1826, 0.0
        %v1835 = vmax.f32 %v1827, 0.0
        %v1836 = vmax.f32 %v1828, 0.0
        %v1837 = vmax.f32 %v1829, 0.0
        %v1838 = vmax.f32 %v1830, 0.0
        %v1839 = vmax.f32 %v1831, 0.0
        %v1840 = vmax.f32 %v1832, 0.0
        %v1841 = vmax.f32 %v1833, %v1835
        %v1842 = vmax.f32 %v1834, %v1836
        %v1843 = vmax.f32 %v1837, %v1839
        %v1844 = vmax.f32 %v1838, %v1840
        %s1845 = scalar_lea.vmem [#allocation2], 96
        %v1846 = vld [vmem:[%s1845] sm:$0xff]
        %v1847 = vld [vmem:[%s1845 + $0x8] sm:$0xff]
        %v1848 = vld [vmem:[%s1845 + $0x10] sm:$0x3]
        %v1849 = vld [vmem:[%s1845 + $0x18] sm:$0xff]
        %v1850 = vld [vmem:[%s1845 + $0x20] sm:$0xff]
        %v1851 = vld [vmem:[%s1845 + $0x28] sm:$0x3]
        %v1852 = vld [vmem:[%s1845 + $0x30] sm:$0xff]
        %v1853 = vld [vmem:[%s1845 + $0x38] sm:$0xff]
        %v1854 = vld [vmem:[%s1845 + $0x40] sm:$0x3]
        %v1855 = vld [vmem:[%s1845 + $0x48] sm:$0xff]
        %v1856 = vld [vmem:[%s1845 + $0x50] sm:$0xff]
        %v1857 = vld [vmem:[%s1845 + $0x58] sm:$0x3]
        %v1870 = vrot.slane %v1846, 1
        %v1871 = vrot.slane %v1847, 1
        %v1872 = vsel %vm976, %v1870, %v1871
        %v1873 = vrot.slane %v1848, 1
        %v1874 = vsel %vm976, %v1871, %v1873
        %v1875 = vrot.slane %v1849, 1
        %v1876 = vrot.slane %v1850, 1
        %v1877 = vsel %vm976, %v1875, %v1876
        %v1878 = vrot.slane %v1851, 1
        %v1879 = vsel %vm976, %v1876, %v1878
        %v1880 = vrot.slane %v1852, 1
        %v1881 = vrot.slane %v1853, 1
        %v1882 = vsel %vm976, %v1880, %v1881
        %v1883 = vrot.slane %v1854, 1
        %v1884 = vsel %vm976, %v1881, %v1883
        %v1885 = vrot.slane %v1855, 1
        %v1886 = vrot.slane %v1856, 1
        %v1887 = vsel %vm976, %v1885, %v1886
        %v1888 = vrot.slane %v1857, 1
        %v1889 = vsel %vm976, %v1886, %v1888
        %1890 = vrot.lane.b32.xlu0 %v1872, 64
        %v1891 = vpop.permute.xlu0 %1890
        %1892 = vrot.lane.b32.xlu0 %v1874, 64
        %v1893 = vpop.permute.xlu0 %1892
        %1894 = vrot.lane.b32.xlu0 %v1877, 64
        %v1895 = vpop.permute.xlu0 %1894
        %1896 = vrot.lane.b32.xlu0 %v1879, 64
        %v1897 = vpop.permute.xlu0 %1896
        %1898 = vrot.lane.b32.xlu0 %v1882, 64
        %v1899 = vpop.permute.xlu0 %1898
        %1900 = vrot.lane.b32.xlu0 %v1884, 64
        %v1901 = vpop.permute.xlu0 %1900
        %1902 = vrot.lane.b32.xlu0 %v1887, 64
        %v1903 = vpop.permute.xlu0 %1902
        %1904 = vrot.lane.b32.xlu0 %v1889, 64
        %v1905 = vpop.permute.xlu0 %1904
        %v1914 = vrot.slane %v1846, 2
        %v1915 = vrot.slane %v1847, 2
        %v1916 = vsel %vm462, %v1914, %v1915
        %v1917 = vrot.slane %v1848, 2
        %v1918 = vsel %vm462, %v1915, %v1917
        %v1919 = vrot.slane %v1849, 2
        %v1920 = vrot.slane %v1850, 2
        %v1921 = vsel %vm462, %v1919, %v1920
        %v1922 = vrot.slane %v1851, 2
        %v1923 = vsel %vm462, %v1920, %v1922
        %v1924 = vrot.slane %v1852, 2
        %v1925 = vrot.slane %v1853, 2
        %v1926 = vsel %vm462, %v1924, %v1925
        %v1927 = vrot.slane %v1854, 2
        %v1928 = vsel %vm462, %v1925, %v1927
        %v1929 = vrot.slane %v1855, 2
        %v1930 = vrot.slane %v1856, 2
        %v1931 = vsel %vm462, %v1929, %v1930
        %v1932 = vrot.slane %v1857, 2
        %v1933 = vsel %vm462, %v1930, %v1932
        %v1942 = vsel %vm887, %v1846, %v1891
        %v1943 = vsel %vm887, %v1847, %v1893
        %v1944 = vsel %vm887, %v1849, %v1895
        %v1945 = vsel %vm887, %v1850, %v1897
        %v1946 = vsel %vm887, %v1852, %v1899
        %v1947 = vsel %vm887, %v1853, %v1901
        %v1948 = vsel %vm887, %v1855, %v1903
        %v1949 = vsel %vm887, %v1856, %v1905
        %v1950 = vpack.c.bf16 %v1943, %v1942
        %v1951 = vpack.c.bf16 %v1918, %v1916
        %v1952 = vpack.c.bf16 %v1945, %v1944
        %v1953 = vpack.c.bf16 %v1923, %v1921
        %v1954 = vpack.c.bf16 %v1947, %v1946
        %v1955 = vpack.c.bf16 %v1928, %v1926
        %v1956 = vpack.c.bf16 %v1949, %v1948
        %v1957 = vpack.c.bf16 %v1933, %v1931
        %s1958 = scalar_lea.vmem [#allocation2], 120
        %v1959 = vld [vmem:[%s1958] sm:$0xff]
        %v1960 = vld [vmem:[%s1958 + $0x8] sm:$0xff]
        %v1961 = vld [vmem:[%s1958 + $0x10] sm:$0x3]
        %v1962 = vld [vmem:[%s1958 + $0x18] sm:$0xff]
        %v1963 = vld [vmem:[%s1958 + $0x20] sm:$0xff]
        %v1964 = vld [vmem:[%s1958 + $0x28] sm:$0x3]
        %v1965 = vld [vmem:[%s1958 + $0x30] sm:$0xff]
        %v1966 = vld [vmem:[%s1958 + $0x38] sm:$0xff]
        %v1967 = vld [vmem:[%s1958 + $0x40] sm:$0x3]
        %v1968 = vld [vmem:[%s1958 + $0x48] sm:$0xff]
        %v1969 = vld [vmem:[%s1958 + $0x50] sm:$0xff]
        %v1970 = vld [vmem:[%s1958 + $0x58] sm:$0x3]
        %v1983 = vrot.slane %v1959, 1
        %v1984 = vrot.slane %v1960, 1
        %v1985 = vsel %vm976, %v1983, %v1984
        %v1986 = vrot.slane %v1961, 1
        %v1987 = vsel %vm976, %v1984, %v1986
        %v1988 = vrot.slane %v1962, 1
        %v1989 = vrot.slane %v1963, 1
        %v1990 = vsel %vm976, %v1988, %v1989
        %v1991 = vrot.slane %v1964, 1
        %v1992 = vsel %vm976, %v1989, %v1991
        %v1993 = vrot.slane %v1965, 1
        %v1994 = vrot.slane %v1966, 1
        %v1995 = vsel %vm976, %v1993, %v1994
        %v1996 = vrot.slane %v1967, 1
        %v1997 = vsel %vm976, %v1994, %v1996
        %v1998 = vrot.slane %v1968, 1
        %v1999 = vrot.slane %v1969, 1
        %v2000 = vsel %vm976, %v1998, %v1999
        %v2001 = vrot.slane %v1970, 1
        %v2002 = vsel %vm976, %v1999, %v2001
        %2003 = vrot.lane.b32.xlu0 %v1985, 64
        %v2004 = vpop.permute.xlu0 %2003
        %2005 = vrot.lane.b32.xlu0 %v1987, 64
        %v2006 = vpop.permute.xlu0 %2005
        %2007 = vrot.lane.b32.xlu0 %v1990, 64
        %v2008 = vpop.permute.xlu0 %2007
        %2009 = vrot.lane.b32.xlu0 %v1992, 64
        %v2010 = vpop.permute.xlu0 %2009
        %2011 = vrot.lane.b32.xlu0 %v1995, 64
        %v2012 = vpop.permute.xlu0 %2011
        %2013 = vrot.lane.b32.xlu0 %v1997, 64
        %v2014 = vpop.permute.xlu0 %2013
        %2015 = vrot.lane.b32.xlu0 %v2000, 64
        %v2016 = vpop.permute.xlu0 %2015
        %2017 = vrot.lane.b32.xlu0 %v2002, 64
        %v2018 = vpop.permute.xlu0 %2017
        %v2027 = vrot.slane %v1959, 2
        %v2028 = vrot.slane %v1960, 2
        %v2029 = vsel %vm462, %v2027, %v2028
        %v2030 = vrot.slane %v1961, 2
        %v2031 = vsel %vm462, %v2028, %v2030
        %v2032 = vrot.slane %v1962, 2
        %v2033 = vrot.slane %v1963, 2
        %v2034 = vsel %vm462, %v2032, %v2033
        %v2035 = vrot.slane %v1964, 2
        %v2036 = vsel %vm462, %v2033, %v2035
        %v2037 = vrot.slane %v1965, 2
        %v2038 = vrot.slane %v1966, 2
        %v2039 = vsel %vm462, %v2037, %v2038
        %v2040 = vrot.slane %v1967, 2
        %v2041 = vsel %vm462, %v2038, %v2040
        %v2042 = vrot.slane %v1968, 2
        %v2043 = vrot.slane %v1969, 2
        %v2044 = vsel %vm462, %v2042, %v2043
        %v2045 = vrot.slane %v1970, 2
        %v2046 = vsel %vm462, %v2043, %v2045
        %v2055 = vsel %vm887, %v1959, %v2004
        %v2056 = vsel %vm887, %v1960, %v2006
        %v2057 = vsel %vm887, %v1962, %v2008
        %v2058 = vsel %vm887, %v1963, %v2010
        %v2059 = vsel %vm887, %v1965, %v2012
        %v2060 = vsel %vm887, %v1966, %v2014
        %v2061 = vsel %vm887, %v1968, %v2016
        %v2062 = vsel %vm887, %v1969, %v2018
        %v2063 = vpack.c.bf16 %v2056, %v2055
        %v2064 = vpack.c.bf16 %v2031, %v2029
        %v2065 = vpack.c.bf16 %v2058, %v2057
        %v2066 = vpack.c.bf16 %v2036, %v2034
        %v2067 = vpack.c.bf16 %v2060, %v2059
        %v2068 = vpack.c.bf16 %v2041, %v2039
        %v2069 = vpack.c.bf16 %v2062, %v2061
        %v2070 = vpack.c.bf16 %v2046, %v2044
        %v2072 = vsel %vm887, %v2064, 0
        %v2075 = vsel %vm887, %v2066, 0
        %v2078 = vsel %vm887, %v2068, 0
        %v2081 = vsel %vm887, %v2070, 0
        %2083 = vmatprep.subr.bf16.mxu0 0
        %2084 = vmatpush1.bf16.msra.mxu0 %v1274
        %2085 = vmatprep.subr.bf16.mxu0 0
        %2086 = vmatpush1.bf16.msra.mxu0 %v1275
        %2087 = vmatprep.subr.bf16.mxu0 0
        %2088 = vmatpush1.bf16.msra.mxu0 %v1276
        %2089 = vmatprep.subr.bf16.mxu0 0
        %2090 = vmatpush1.bf16.msra.mxu0 %v1277
        %2091 = vmatprep.subr.bf16.mxu0 0
        %2092 = vmatpush1.bf16.msra.mxu0 %v1278
        %2093 = vmatprep.subr.bf16.mxu0 0
        %2094 = vmatpush1.bf16.msra.mxu0 %v1279
        %2095 = vmatprep.subr.bf16.mxu0 0
        %2096 = vmatpush1.bf16.msra.mxu0 %v1280
        %2097 = vmatprep.subr.bf16.mxu0 0
        %2098 = vmatpush1.bf16.msra.mxu0 %v1281
        %2099 = vmatprep.subr.bf16.mxu0 0
        %2100 = vmatpush1.bf16.msra.mxu0 %v1282
        %2101 = vmatprep.subr.bf16.mxu0 0
        %2102 = vmatpush1.bf16.msra.mxu0 %v1283
        %2103 = vmatprep.subr.bf16.mxu0 0
        %2104 = vmatpush1.bf16.msra.mxu0 %v1284
        %2105 = vmatprep.subr.bf16.mxu0 0
        %2106 = vmatpush1.bf16.msra.mxu0 %v1285
        %2107 = vmatprep.subr.bf16.mxu0 0
        %2108 = vmatpush1.bf16.msra.mxu0 0
        %2109 = vmatprep.subr.bf16.mxu0 0
        %2110 = vmatpush1.bf16.msra.mxu0 0
        %2111 = vmatprep.subr.bf16.mxu0 0
        %2112 = vmatpush1.bf16.msra.mxu0 0
        %2113 = vmatprep.subr.bf16.mxu0 0
        %2114 = vmatpush1.bf16.msra.mxu0 0
        %2115 = vmatprep.mubr.bf16.mxu0 %v2072
        %2116 = vmatmul.mubr.bf16.gmra.mrb[0].mxu0 %v2063
        %v2117 = vpop.f32.mrb[0].mxu0
        %v2118 = vadd.f32 0.0, %v2117
        %v2119 = vpop.f32.mrb[0].mxu0
        %v2120 = vpop.f32.mrb[0].mxu0
        %v2121 = vadd.f32 0.0, %v2120
        %v2122 = vpop.f32.mrb[0].mxu0
        %2123 = vmatprep.mubr.bf16.mxu0 %v2075
        %2124 = vmatmul.mubr.bf16.gmra.mrb[0].mxu0 %v2065
        %v2125 = vpop.f32.mrb[0].mxu0
        %v2126 = vadd.f32 0.0, %v2125
        %v2127 = vpop.f32.mrb[0].mxu0
        %v2128 = vpop.f32.mrb[0].mxu0
        %v2129 = vadd.f32 0.0, %v2128
        %v2130 = vpop.f32.mrb[0].mxu0
        %2131 = vmatprep.mubr.bf16.mxu0 %v2078
        %2132 = vmatmul.mubr.bf16.gmra.mrb[0].mxu0 %v2067
        %v2133 = vpop.f32.mrb[0].mxu0
        %v2134 = vadd.f32 0.0, %v2133
        %v2135 = vpop.f32.mrb[0].mxu0
        %v2136 = vpop.f32.mrb[0].mxu0
        %v2137 = vadd.f32 0.0, %v2136
        %v2138 = vpop.f32.mrb[0].mxu0
        %2139 = vmatprep.mubr.bf16.mxu0 %v2081
        %2140 = vmatmul.mubr.bf16.gmra.mrb[0].mxu0 %v2069
        %v2141 = vpop.f32.mrb[0].mxu0
        %v2142 = vadd.f32 0.0, %v2141
        %v2143 = vpop.f32.mrb[0].mxu0
        %v2144 = vpop.f32.mrb[0].mxu0
        %v2145 = vadd.f32 0.0, %v2144
        %v2146 = vpop.f32.mrb[0].mxu0
        %2147 = vdwg.mxu0
        %v2149 = vsel %vm887, %v1951, 0
        %v2152 = vsel %vm887, %v1953, 0
        %v2155 = vsel %vm887, %v1955, 0
        %v2158 = vsel %vm887, %v1957, 0
        %2160 = vmatprep.subr.bf16.mxu0 0
        %2161 = vmatpush1.bf16.msra.mxu0 %v1423
        %2162 = vmatprep.subr.bf16.mxu0 0
        %2163 = vmatpush1.bf16.msra.mxu0 %v1424
        %2164 = vmatprep.subr.bf16.mxu0 0
        %2165 = vmatpush1.bf16.msra.mxu0 %v1425
        %2166 = vmatprep.subr.bf16.mxu0 0
        %2167 = vmatpush1.bf16.msra.mxu0 %v1426
        %2168 = vmatprep.subr.bf16.mxu0 0
        %2169 = vmatpush1.bf16.msra.mxu0 %v1427
        %2170 = vmatprep.subr.bf16.mxu0 0
        %2171 = vmatpush1.bf16.msra.mxu0 %v1428
        %2172 = vmatprep.subr.bf16.mxu0 0
        %2173 = vmatpush1.bf16.msra.mxu0 %v1429
        %2174 = vmatprep.subr.bf16.mxu0 0
        %2175 = vmatpush1.bf16.msra.mxu0 %v1430
        %2176 = vmatprep.subr.bf16.mxu0 0
        %2177 = vmatpush1.bf16.msra.mxu0 %v1431
        %2178 = vmatprep.subr.bf16.mxu0 0
        %2179 = vmatpush1.bf16.msra.mxu0 %v1432
        %2180 = vmatprep.subr.bf16.mxu0 0
        %2181 = vmatpush1.bf16.msra.mxu0 %v1433
        %2182 = vmatprep.subr.bf16.mxu0 0
        %2183 = vmatpush1.bf16.msra.mxu0 %v1434
        %2184 = vmatprep.subr.bf16.mxu0 0
        %2185 = vmatpush1.bf16.msra.mxu0 0
        %2186 = vmatprep.subr.bf16.mxu0 0
        %2187 = vmatpush1.bf16.msra.mxu0 0
        %2188 = vmatprep.subr.bf16.mxu0 0
        %2189 = vmatpush1.bf16.msra.mxu0 0
        %2190 = vmatprep.subr.bf16.mxu0 0
        %2191 = vmatpush1.bf16.msra.mxu0 0
        %2192 = vmatprep.mubr.bf16.mxu0 %v2149
        %2193 = vmatmul.mubr.bf16.gmra.mrb[0].mxu0 %v1950
        %v2194 = vpop.f32.mrb[0].mxu0
        %v2195 = vadd.f32 %v2118, %v2194
        %v2196 = vpop.f32.mrb[0].mxu0
        %v2197 = vpop.f32.mrb[0].mxu0
        %v2198 = vadd.f32 %v2121, %v2197
        %v2199 = vpop.f32.mrb[0].mxu0
        %2200 = vmatprep.mubr.bf16.mxu0 %v2152
        %2201 = vmatmul.mubr.bf16.gmra.mrb[0].mxu0 %v1952
        %v2202 = vpop.f32.mrb[0].mxu0
        %v2203 = vadd.f32 %v2126, %v2202
        %v2204 = vpop.f32.mrb[0].mxu0
        %v2205 = vpop.f32.mrb[0].mxu0
        %v2206 = vadd.f32 %v2129, %v2205
        %v2207 = vpop.f32.mrb[0].mxu0
        %2208 = vmatprep.mubr.bf16.mxu0 %v2155
        %2209 = vmatmul.mubr.bf16.gmra.mrb[0].mxu0 %v1954
        %v2210 = vpop.f32.mrb[0].mxu0
        %v2211 = vadd.f32 %v2134, %v2210
        %v2212 = vpop.f32.mrb[0].mxu0
        %v2213 = vpop.f32.mrb[0].mxu0
        %v2214 = vadd.f32 %v2137, %v2213
        %v2215 = vpop.f32.mrb[0].mxu0
        %2216 = vmatprep.mubr.bf16.mxu0 %v2158
        %2217 = vmatmul.mubr.bf16.gmra.mrb[0].mxu0 %v1956
        %v2218 = vpop.f32.mrb[0].mxu0
        %v2219 = vadd.f32 %v2142, %v2218
        %v2220 = vpop.f32.mrb[0].mxu0
        %v2221 = vpop.f32.mrb[0].mxu0
        %v2222 = vadd.f32 %v2145, %v2221
        %v2223 = vpop.f32.mrb[0].mxu0
        %2224 = vdwg.mxu0
        %s2225 = scalar_lea.vmem [#allocation2], 144
        %v2226 = vld [vmem:[%s2225] sm:$0xff]
        %v2227 = vld [vmem:[%s2225 + $0x8] sm:$0xff]
        %v2228 = vld [vmem:[%s2225 + $0x10] sm:$0x3]
        %v2229 = vld [vmem:[%s2225 + $0x18] sm:$0xff]
        %v2230 = vld [vmem:[%s2225 + $0x20] sm:$0xff]
        %v2231 = vld [vmem:[%s2225 + $0x28] sm:$0x3]
        %v2232 = vld [vmem:[%s2225 + $0x30] sm:$0xff]
        %v2233 = vld [vmem:[%s2225 + $0x38] sm:$0xff]
        %v2234 = vld [vmem:[%s2225 + $0x40] sm:$0x3]
        %v2235 = vld [vmem:[%s2225 + $0x48] sm:$0xff]
        %v2236 = vld [vmem:[%s2225 + $0x50] sm:$0xff]
        %v2237 = vld [vmem:[%s2225 + $0x58] sm:$0x3]
        %v2250 = vrot.slane %v2226, 1
        %v2251 = vrot.slane %v2227, 1
        %v2252 = vsel %vm976, %v2250, %v2251
        %v2253 = vrot.slane %v2228, 1
        %v2254 = vsel %vm976, %v2251, %v2253
        %v2255 = vrot.slane %v2229, 1
        %v2256 = vrot.slane %v2230, 1
        %v2257 = vsel %vm976, %v2255, %v2256
        %v2258 = vrot.slane %v2231, 1
        %v2259 = vsel %vm976, %v2256, %v2258
        %v2260 = vrot.slane %v2232, 1
        %v2261 = vrot.slane %v2233, 1
        %v2262 = vsel %vm976, %v2260, %v2261
        %v2263 = vrot.slane %v2234, 1
        %v2264 = vsel %vm976, %v2261, %v2263
        %v2265 = vrot.slane %v2235, 1
        %v2266 = vrot.slane %v2236, 1
        %v2267 = vsel %vm976, %v2265, %v2266
        %v2268 = vrot.slane %v2237, 1
        %v2269 = vsel %vm976, %v2266, %v2268
        %2270 = vrot.lane.b32.xlu0 %v2252, 64
        %v2271 = vpop.permute.xlu0 %2270
        %2272 = vrot.lane.b32.xlu0 %v2254, 64
        %v2273 = vpop.permute.xlu0 %2272
        %2274 = vrot.lane.b32.xlu0 %v2257, 64
        %v2275 = vpop.permute.xlu0 %2274
        %2276 = vrot.lane.b32.xlu0 %v2259, 64
        %v2277 = vpop.permute.xlu0 %2276
        %2278 = vrot.lane.b32.xlu0 %v2262, 64
        %v2279 = vpop.permute.xlu0 %2278
        %2280 = vrot.lane.b32.xlu0 %v2264, 64
        %v2281 = vpop.permute.xlu0 %2280
        %2282 = vrot.lane.b32.xlu0 %v2267, 64
        %v2283 = vpop.permute.xlu0 %2282
        %2284 = vrot.lane.b32.xlu0 %v2269, 64
        %v2285 = vpop.permute.xlu0 %2284
        %v2294 = vrot.slane %v2226, 2
        %v2295 = vrot.slane %v2227, 2
        %v2296 = vsel %vm462, %v2294, %v2295
        %v2297 = vrot.slane %v2228, 2
        %v2298 = vsel %vm462, %v2295, %v2297
        %v2299 = vrot.slane %v2229, 2
        %v2300 = vrot.slane %v2230, 2
        %v2301 = vsel %vm462, %v2299, %v2300
        %v2302 = vrot.slane %v2231, 2
        %v2303 = vsel %vm462, %v2300, %v2302
        %v2304 = vrot.slane %v2232, 2
        %v2305 = vrot.slane %v2233, 2
        %v2306 = vsel %vm462, %v2304, %v2305
        %v2307 = vrot.slane %v2234, 2
        %v2308 = vsel %vm462, %v2305, %v2307
        %v2309 = vrot.slane %v2235, 2
        %v2310 = vrot.slane %v2236, 2
        %v2311 = vsel %vm462, %v2309, %v2310
        %v2312 = vrot.slane %v2237, 2
        %v2313 = vsel %vm462, %v2310, %v2312
        %v2322 = vsel %vm887, %v2226, %v2271
        %v2323 = vsel %vm887, %v2227, %v2273
        %v2324 = vsel %vm887, %v2229, %v2275
        %v2325 = vsel %vm887, %v2230, %v2277
        %v2326 = vsel %vm887, %v2232, %v2279
        %v2327 = vsel %vm887, %v2233, %v2281
        %v2328 = vsel %vm887, %v2235, %v2283
        %v2329 = vsel %vm887, %v2236, %v2285
        %v2330 = vpack.c.bf16 %v2323, %v2322
        %v2331 = vpack.c.bf16 %v2298, %v2296
        %v2332 = vpack.c.bf16 %v2325, %v2324
        %v2333 = vpack.c.bf16 %v2303, %v2301
        %v2334 = vpack.c.bf16 %v2327, %v2326
        %v2335 = vpack.c.bf16 %v2308, %v2306
        %v2336 = vpack.c.bf16 %v2329, %v2328
        %v2337 = vpack.c.bf16 %v2313, %v2311
        %v2339 = vsel %vm887, %v2331, 0
        %v2342 = vsel %vm887, %v2333, 0
        %v2345 = vsel %vm887, %v2335, 0
        %v2348 = vsel %vm887, %v2337, 0
        %2350 = vmatprep.subr.bf16.mxu0 0
        %2351 = vmatpush1.bf16.msra.mxu0 %v1709
        %2352 = vmatprep.subr.bf16.mxu0 0
        %2353 = vmatpush1.bf16.msra.mxu0 %v1710
        %2354 = vmatprep.subr.bf16.mxu0 0
        %2355 = vmatpush1.bf16.msra.mxu0 %v1711
        %2356 = vmatprep.subr.bf16.mxu0 0
        %2357 = vmatpush1.bf16.msra.mxu0 %v1712
        %2358 = vmatprep.subr.bf16.mxu0 0
        %2359 = vmatpush1.bf16.msra.mxu0 %v1713
        %2360 = vmatprep.subr.bf16.mxu0 0
        %2361 = vmatpush1.bf16.msra.mxu0 %v1714
        %2362 = vmatprep.subr.bf16.mxu0 0
        %2363 = vmatpush1.bf16.msra.mxu0 %v1715
        %2364 = vmatprep.subr.bf16.mxu0 0
        %2365 = vmatpush1.bf16.msra.mxu0 %v1716
        %2366 = vmatprep.subr.bf16.mxu0 0
        %2367 = vmatpush1.bf16.msra.mxu0 %v1717
        %2368 = vmatprep.subr.bf16.mxu0 0
        %2369 = vmatpush1.bf16.msra.mxu0 %v1718
        %2370 = vmatprep.subr.bf16.mxu0 0
        %2371 = vmatpush1.bf16.msra.mxu0 %v1719
        %2372 = vmatprep.subr.bf16.mxu0 0
        %2373 = vmatpush1.bf16.msra.mxu0 %v1720
        %2374 = vmatprep.subr.bf16.mxu0 0
        %2375 = vmatpush1.bf16.msra.mxu0 0
        %2376 = vmatprep.subr.bf16.mxu0 0
        %2377 = vmatpush1.bf16.msra.mxu0 0
        %2378 = vmatprep.subr.bf16.mxu0 0
        %2379 = vmatpush1.bf16.msra.mxu0 0
        %2380 = vmatprep.subr.bf16.mxu0 0
        %2381 = vmatpush1.bf16.msra.mxu0 0
        %2382 = vmatprep.mubr.bf16.mxu0 %v2339
        %2383 = vmatmul.mubr.bf16.gmra.mrb[0].mxu0 %v2330
        %v2384 = vpop.f32.mrb[0].mxu0
        %v2385 = vadd.f32 0.0, %v2384
        %v2386 = vpop.f32.mrb[0].mxu0
        %v2387 = vpop.f32.mrb[0].mxu0
        %v2388 = vadd.f32 0.0, %v2387
        %v2389 = vpop.f32.mrb[0].mxu0
        %2390 = vmatprep.mubr.bf16.mxu0 %v2342
        %2391 = vmatmul.mubr.bf16.gmra.mrb[0].mxu0 %v2332
        %v2392 = vpop.f32.mrb[0].mxu0
        %v2393 = vadd.f32 0.0, %v2392
        %v2394 = vpop.f32.mrb[0].mxu0
        %v2395 = vpop.f32.mrb[0].mxu0
        %v2396 = vadd.f32 0.0, %v2395
        %v2397 = vpop.f32.mrb[0].mxu0
        %2398 = vmatprep.mubr.bf16.mxu0 %v2345
        %2399 = vmatmul.mubr.bf16.gmra.mrb[0].mxu0 %v2334
        %v2400 = vpop.f32.mrb[0].mxu0
        %v2401 = vadd.f32 0.0, %v2400
        %v2402 = vpop.f32.mrb[0].mxu0
        %v2403 = vpop.f32.mrb[0].mxu0
        %v2404 = vadd.f32 0.0, %v2403
        %v2405 = vpop.f32.mrb[0].mxu0
        %2406 = vmatprep.mubr.bf16.mxu0 %v2348
        %2407 = vmatmul.mubr.bf16.gmra.mrb[0].mxu0 %v2336
        %v2408 = vpop.f32.mrb[0].mxu0
        %v2409 = vadd.f32 0.0, %v2408
        %v2410 = vpop.f32.mrb[0].mxu0
        %v2411 = vpop.f32.mrb[0].mxu0
        %v2412 = vadd.f32 0.0, %v2411
        %v2413 = vpop.f32.mrb[0].mxu0
        %2414 = vdwg.mxu0
        %v2415 = vadd.f32 %v2195, %v2385
        %v2416 = vadd.f32 %v2198, %v2388
        %v2417 = vadd.f32 %v2203, %v2393
        %v2418 = vadd.f32 %v2206, %v2396
        %v2419 = vadd.f32 %v2211, %v2401
        %v2420 = vadd.f32 %v2214, %v2404
        %v2421 = vadd.f32 %v2219, %v2409
        %v2422 = vadd.f32 %v2222, %v2412
        %v2423 = vadd.f32 %v2415, %v1823
        %v2424 = vadd.f32 %v2416, %v1823
        %v2425 = vadd.f32 %v2417, %v1823
        %v2426 = vadd.f32 %v2418, %v1823
        %v2427 = vadd.f32 %v2419, %v1823
        %v2428 = vadd.f32 %v2420, %v1823
        %v2429 = vadd.f32 %v2421, %v1823
        %v2430 = vadd.f32 %v2422, %v1823
        %v2431 = vmax.f32 %v2423, 0.0
        %v2432 = vmax.f32 %v2424, 0.0
        %v2433 = vmax.f32 %v2425, 0.0
        %v2434 = vmax.f32 %v2426, 0.0
        %v2435 = vmax.f32 %v2427, 0.0
        %v2436 = vmax.f32 %v2428, 0.0
        %v2437 = vmax.f32 %v2429, 0.0
        %v2438 = vmax.f32 %v2430, 0.0
        %v2439 = vmax.f32 %v2431, %v2433
        %v2440 = vmax.f32 %v2432, %v2434
        %v2441 = vmax.f32 %v2435, %v2437
        %v2442 = vmax.f32 %v2436, %v2438
        %s2443 = scalar_lea.vmem [#allocation2], 192
        %v2444 = vld [vmem:[%s2443] sm:$0xff]
        %v2445 = vld [vmem:[%s2443 + $0x8] sm:$0xff]
        %v2446 = vld [vmem:[%s2443 + $0x10] sm:$0x3]
        %v2447 = vld [vmem:[%s2443 + $0x18] sm:$0xff]
        %v2448 = vld [vmem:[%s2443 + $0x20] sm:$0xff]
        %v2449 = vld [vmem:[%s2443 + $0x28] sm:$0x3]
        %v2450 = vld [vmem:[%s2443 + $0x30] sm:$0xff]
        %v2451 = vld [vmem:[%s2443 + $0x38] sm:$0xff]
        %v2452 = vld [vmem:[%s2443 + $0x40] sm:$0x3]
        %v2453 = vld [vmem:[%s2443 + $0x48] sm:$0xff]
        %v2454 = vld [vmem:[%s2443 + $0x50] sm:$0xff]
        %v2455 = vld [vmem:[%s2443 + $0x58] sm:$0x3]
        %v2468 = vrot.slane %v2444, 1
        %v2469 = vrot.slane %v2445, 1
        %v2470 = vsel %vm976, %v2468, %v2469
        %v2471 = vrot.slane %v2446, 1
        %v2472 = vsel %vm976, %v2469, %v2471
        %v2473 = vrot.slane %v2447, 1
        %v2474 = vrot.slane %v2448, 1
        %v2475 = vsel %vm976, %v2473, %v2474
        %v2476 = vrot.slane %v2449, 1
        %v2477 = vsel %vm976, %v2474, %v2476
        %v2478 = vrot.slane %v2450, 1
        %v2479 = vrot.slane %v2451, 1
        %v2480 = vsel %vm976, %v2478, %v2479
        %v2481 = vrot.slane %v2452, 1
        %v2482 = vsel %vm976, %v2479, %v2481
        %v2483 = vrot.slane %v2453, 1
        %v2484 = vrot.slane %v2454, 1
        %v2485 = vsel %vm976, %v2483, %v2484
        %v2486 = vrot.slane %v2455, 1
        %v2487 = vsel %vm976, %v2484, %v2486
        %2488 = vrot.lane.b32.xlu0 %v2470, 64
        %v2489 = vpop.permute.xlu0 %2488
        %2490 = vrot.lane.b32.xlu0 %v2472, 64
        %v2491 = vpop.permute.xlu0 %2490
        %2492 = vrot.lane.b32.xlu0 %v2475, 64
        %v2493 = vpop.permute.xlu0 %2492
        %2494 = vrot.lane.b32.xlu0 %v2477, 64
        %v2495 = vpop.permute.xlu0 %2494
        %2496 = vrot.lane.b32.xlu0 %v2480, 64
        %v2497 = vpop.permute.xlu0 %2496
        %2498 = vrot.lane.b32.xlu0 %v2482, 64
        %v2499 = vpop.permute.xlu0 %2498
        %2500 = vrot.lane.b32.xlu0 %v2485, 64
        %v2501 = vpop.permute.xlu0 %2500
        %2502 = vrot.lane.b32.xlu0 %v2487, 64
        %v2503 = vpop.permute.xlu0 %2502
        %v2512 = vrot.slane %v2444, 2
        %v2513 = vrot.slane %v2445, 2
        %v2514 = vsel %vm462, %v2512, %v2513
        %v2515 = vrot.slane %v2446, 2
        %v2516 = vsel %vm462, %v2513, %v2515
        %v2517 = vrot.slane %v2447, 2
        %v2518 = vrot.slane %v2448, 2
        %v2519 = vsel %vm462, %v2517, %v2518
        %v2520 = vrot.slane %v2449, 2
        %v2521 = vsel %vm462, %v2518, %v2520
        %v2522 = vrot.slane %v2450, 2
        %v2523 = vrot.slane %v2451, 2
        %v2524 = vsel %vm462, %v2522, %v2523
        %v2525 = vrot.slane %v2452, 2
        %v2526 = vsel %vm462, %v2523, %v2525
        %v2527 = vrot.slane %v2453, 2
        %v2528 = vrot.slane %v2454, 2
        %v2529 = vsel %vm462, %v2527, %v2528
        %v2530 = vrot.slane %v2455, 2
        %v2531 = vsel %vm462, %v2528, %v2530
        %v2540 = vsel %vm887, %v2444, %v2489
        %v2541 = vsel %vm887, %v2445, %v2491
        %v2542 = vsel %vm887, %v2447, %v2493
        %v2543 = vsel %vm887, %v2448, %v2495
        %v2544 = vsel %vm887, %v2450, %v2497
        %v2545 = vsel %vm887, %v2451, %v2499
        %v2546 = vsel %vm887, %v2453, %v2501
        %v2547 = vsel %vm887, %v2454, %v2503
        %v2548 = vpack.c.bf16 %v2541, %v2540
        %v2549 = vpack.c.bf16 %v2516, %v2514
        %v2550 = vpack.c.bf16 %v2543, %v2542
        %v2551 = vpack.c.bf16 %v2521, %v2519
        %v2552 = vpack.c.bf16 %v2545, %v2544
        %v2553 = vpack.c.bf16 %v2526, %v2524
        %v2554 = vpack.c.bf16 %v2547, %v2546
        %v2555 = vpack.c.bf16 %v2531, %v2529
        %s2556 = scalar_lea.vmem [#allocation2], 216
        %v2557 = vld [vmem:[%s2556] sm:$0xff]
        %v2558 = vld [vmem:[%s2556 + $0x8] sm:$0xff]
        %v2559 = vld [vmem:[%s2556 + $0x10] sm:$0x3]
        %v2560 = vld [vmem:[%s2556 + $0x18] sm:$0xff]
        %v2561 = vld [vmem:[%s2556 + $0x20] sm:$0xff]
        %v2562 = vld [vmem:[%s2556 + $0x28] sm:$0x3]
        %v2563 = vld [vmem:[%s2556 + $0x30] sm:$0xff]
        %v2564 = vld [vmem:[%s2556 + $0x38] sm:$0xff]
        %v2565 = vld [vmem:[%s2556 + $0x40] sm:$0x3]
        %v2566 = vld [vmem:[%s2556 + $0x48] sm:$0xff]
        %v2567 = vld [vmem:[%s2556 + $0x50] sm:$0xff]
        %v2568 = vld [vmem:[%s2556 + $0x58] sm:$0x3]
        %v2581 = vrot.slane %v2557, 1
        %v2582 = vrot.slane %v2558, 1
        %v2583 = vsel %vm976, %v2581, %v2582
        %v2584 = vrot.slane %v2559, 1
        %v2585 = vsel %vm976, %v2582, %v2584
        %v2586 = vrot.slane %v2560, 1
        %v2587 = vrot.slane %v2561, 1
        %v2588 = vsel %vm976, %v2586, %v2587
        %v2589 = vrot.slane %v2562, 1
        %v2590 = vsel %vm976, %v2587, %v2589
        %v2591 = vrot.slane %v2563, 1
        %v2592 = vrot.slane %v2564, 1
        %v2593 = vsel %vm976, %v2591, %v2592
        %v2594 = vrot.slane %v2565, 1
        %v2595 = vsel %vm976, %v2592, %v2594
        %v2596 = vrot.slane %v2566, 1
        %v2597 = vrot.slane %v2567, 1
        %v2598 = vsel %vm976, %v2596, %v2597
        %v2599 = vrot.slane %v2568, 1
        %v2600 = vsel %vm976, %v2597, %v2599
        %2601 = vrot.lane.b32.xlu0 %v2583, 64
        %v2602 = vpop.permute.xlu0 %2601
        %2603 = vrot.lane.b32.xlu0 %v2585, 64
        %v2604 = vpop.permute.xlu0 %2603
        %2605 = vrot.lane.b32.xlu0 %v2588, 64
        %v2606 = vpop.permute.xlu0 %2605
        %2607 = vrot.lane.b32.xlu0 %v2590, 64
        %v2608 = vpop.permute.xlu0 %2607
        %2609 = vrot.lane.b32.xlu0 %v2593, 64
        %v2610 = vpop.permute.xlu0 %2609
        %2611 = vrot.lane.b32.xlu0 %v2595, 64
        %v2612 = vpop.permute.xlu0 %2611
        %2613 = vrot.lane.b32.xlu0 %v2598, 64
        %v2614 = vpop.permute.xlu0 %2613
        %2615 = vrot.lane.b32.xlu0 %v2600, 64
        %v2616 = vpop.permute.xlu0 %2615
        %v2625 = vrot.slane %v2557, 2
        %v2626 = vrot.slane %v2558, 2
        %v2627 = vsel %vm462, %v2625, %v2626
        %v2628 = vrot.slane %v2559, 2
        %v2629 = vsel %vm462, %v2626, %v2628
        %v2630 = vrot.slane %v2560, 2
        %v2631 = vrot.slane %v2561, 2
        %v2632 = vsel %vm462, %v2630, %v2631
        %v2633 = vrot.slane %v2562, 2
        %v2634 = vsel %vm462, %v2631, %v2633
        %v2635 = vrot.slane %v2563, 2
        %v2636 = vrot.slane %v2564, 2
        %v2637 = vsel %vm462, %v2635, %v2636
        %v2638 = vrot.slane %v2565, 2
        %v2639 = vsel %vm462, %v2636, %v2638
        %v2640 = vrot.slane %v2566, 2
        %v2641 = vrot.slane %v2567, 2
        %v2642 = vsel %vm462, %v2640, %v2641
        %v2643 = vrot.slane %v2568, 2
        %v2644 = vsel %vm462, %v2641, %v2643
        %v2653 = vsel %vm887, %v2557, %v2602
        %v2654 = vsel %vm887, %v2558, %v2604
        %v2655 = vsel %vm887, %v2560, %v2606
        %v2656 = vsel %vm887, %v2561, %v2608
        %v2657 = vsel %vm887, %v2563, %v2610
        %v2658 = vsel %vm887, %v2564, %v2612
        %v2659 = vsel %vm887, %v2566, %v2614
        %v2660 = vsel %vm887, %v2567, %v2616
        %v2661 = vpack.c.bf16 %v2654, %v2653
        %v2662 = vpack.c.bf16 %v2629, %v2627
        %v2663 = vpack.c.bf16 %v2656, %v2655
        %v2664 = vpack.c.bf16 %v2634, %v2632
        %v2665 = vpack.c.bf16 %v2658, %v2657
        %v2666 = vpack.c.bf16 %v2639, %v2637
        %v2667 = vpack.c.bf16 %v2660, %v2659
        %v2668 = vpack.c.bf16 %v2644, %v2642
        %v2670 = vsel %vm887, %v2662, 0
        %v2673 = vsel %vm887, %v2664, 0
        %v2676 = vsel %vm887, %v2666, 0
        %v2679 = vsel %vm887, %v2668, 0
        %2681 = vmatprep.subr.bf16.mxu0 0
        %2682 = vmatpush1.bf16.msra.mxu0 %v1274
        %2683 = vmatprep.subr.bf16.mxu0 0
        %2684 = vmatpush1.bf16.msra.mxu0 %v1275
        %2685 = vmatprep.subr.bf16.mxu0 0
        %2686 = vmatpush1.bf16.msra.mxu0 %v1276
        %2687 = vmatprep.subr.bf16.mxu0 0
        %2688 = vmatpush1.bf16.msra.mxu0 %v1277
        %2689 = vmatprep.subr.bf16.mxu0 0
        %2690 = vmatpush1.bf16.msra.mxu0 %v1278
        %2691 = vmatprep.subr.bf16.mxu0 0
        %2692 = vmatpush1.bf16.msra.mxu0 %v1279
        %2693 = vmatprep.subr.bf16.mxu0 0
        %2694 = vmatpush1.bf16.msra.mxu0 %v1280
        %2695 = vmatprep.subr.bf16.mxu0 0
        %2696 = vmatpush1.bf16.msra.mxu0 %v1281
        %2697 = vmatprep.subr.bf16.mxu0 0
        %2698 = vmatpush1.bf16.msra.mxu0 %v1282
        %2699 = vmatprep.subr.bf16.mxu0 0
        %2700 = vmatpush1.bf16.msra.mxu0 %v1283
        %2701 = vmatprep.subr.bf16.mxu0 0
        %2702 = vmatpush1.bf16.msra.mxu0 %v1284
        %2703 = vmatprep.subr.bf16.mxu0 0
        %2704 = vmatpush1.bf16.msra.mxu0 %v1285
        %2705 = vmatprep.subr.bf16.mxu0 0
        %2706 = vmatpush1.bf16.msra.mxu0 0
        %2707 = vmatprep.subr.bf16.mxu0 0
        %2708 = vmatpush1.bf16.msra.mxu0 0
        %2709 = vmatprep.subr.bf16.mxu0 0
        %2710 = vmatpush1.bf16.msra.mxu0 0
        %2711 = vmatprep.subr.bf16.mxu0 0
        %2712 = vmatpush1.bf16.msra.mxu0 0
        %2713 = vmatprep.mubr.bf16.mxu0 %v2670
        %2714 = vmatmul.mubr.bf16.gmra.mrb[0].mxu0 %v2661
        %v2715 = vpop.f32.mrb[0].mxu0
        %v2716 = vadd.f32 0.0, %v2715
        %v2717 = vpop.f32.mrb[0].mxu0
        %v2718 = vpop.f32.mrb[0].mxu0
        %v2719 = vadd.f32 0.0, %v2718
        %v2720 = vpop.f32.mrb[0].mxu0
        %2721 = vmatprep.mubr.bf16.mxu0 %v2673
        %2722 = vmatmul.mubr.bf16.gmra.mrb[0].mxu0 %v2663
        %v2723 = vpop.f32.mrb[0].mxu0
        %v2724 = vadd.f32 0.0, %v2723
        %v2725 = vpop.f32.mrb[0].mxu0
        %v2726 = vpop.f32.mrb[0].mxu0
        %v2727 = vadd.f32 0.0, %v2726
        %v2728 = vpop.f32.mrb[0].mxu0
        %2729 = vmatprep.mubr.bf16.mxu0 %v2676
        %2730 = vmatmul.mubr.bf16.gmra.mrb[0].mxu0 %v2665
        %v2731 = vpop.f32.mrb[0].mxu0
        %v2732 = vadd.f32 0.0, %v2731
        %v2733 = vpop.f32.mrb[0].mxu0
        %v2734 = vpop.f32.mrb[0].mxu0
        %v2735 = vadd.f32 0.0, %v2734
        %v2736 = vpop.f32.mrb[0].mxu0
        %2737 = vmatprep.mubr.bf16.mxu0 %v2679
        %2738 = vmatmul.mubr.bf16.gmra.mrb[0].mxu0 %v2667
        %v2739 = vpop.f32.mrb[0].mxu0
        %v2740 = vadd.f32 0.0, %v2739
        %v2741 = vpop.f32.mrb[0].mxu0
        %v2742 = vpop.f32.mrb[0].mxu0
        %v2743 = vadd.f32 0.0, %v2742
        %v2744 = vpop.f32.mrb[0].mxu0
        %2745 = vdwg.mxu0
        %v2747 = vsel %vm887, %v2549, 0
        %v2750 = vsel %vm887, %v2551, 0
        %v2753 = vsel %vm887, %v2553, 0
        %v2756 = vsel %vm887, %v2555, 0
        %2758 = vmatprep.subr.bf16.mxu0 0
        %2759 = vmatpush1.bf16.msra.mxu0 %v1423
        %2760 = vmatprep.subr.bf16.mxu0 0
        %2761 = vmatpush1.bf16.msra.mxu0 %v1424
        %2762 = vmatprep.subr.bf16.mxu0 0
        %2763 = vmatpush1.bf16.msra.mxu0 %v1425
        %2764 = vmatprep.subr.bf16.mxu0 0
        %2765 = vmatpush1.bf16.msra.mxu0 %v1426
        %2766 = vmatprep.subr.bf16.mxu0 0
        %2767 = vmatpush1.bf16.msra.mxu0 %v1427
        %2768 = vmatprep.subr.bf16.mxu0 0
        %2769 = vmatpush1.bf16.msra.mxu0 %v1428
        %2770 = vmatprep.subr.bf16.mxu0 0
        %2771 = vmatpush1.bf16.msra.mxu0 %v1429
        %2772 = vmatprep.subr.bf16.mxu0 0
        %2773 = vmatpush1.bf16.msra.mxu0 %v1430
        %2774 = vmatprep.subr.bf16.mxu0 0
        %2775 = vmatpush1.bf16.msra.mxu0 %v1431
        %2776 = vmatprep.subr.bf16.mxu0 0
        %2777 = vmatpush1.bf16.msra.mxu0 %v1432
        %2778 = vmatprep.subr.bf16.mxu0 0
        %2779 = vmatpush1.bf16.msra.mxu0 %v1433
        %2780 = vmatprep.subr.bf16.mxu0 0
        %2781 = vmatpush1.bf16.msra.mxu0 %v1434
        %2782 = vmatprep.subr.bf16.mxu0 0
        %2783 = vmatpush1.bf16.msra.mxu0 0
        %2784 = vmatprep.subr.bf16.mxu0 0
        %2785 = vmatpush1.bf16.msra.mxu0 0
        %2786 = vmatprep.subr.bf16.mxu0 0
        %2787 = vmatpush1.bf16.msra.mxu0 0
        %2788 = vmatprep.subr.bf16.mxu0 0
        %2789 = vmatpush1.bf16.msra.mxu0 0
        %2790 = vmatprep.mubr.bf16.mxu0 %v2747
        %2791 = vmatmul.mubr.bf16.gmra.mrb[0].mxu0 %v2548
        %v2792 = vpop.f32.mrb[0].mxu0
        %v2793 = vadd.f32 %v2716, %v2792
        %v2794 = vpop.f32.mrb[0].mxu0
        %v2795 = vpop.f32.mrb[0].mxu0
        %v2796 = vadd.f32 %v2719, %v2795
        %v2797 = vpop.f32.mrb[0].mxu0
        %2798 = vmatprep.mubr.bf16.mxu0 %v2750
        %2799 = vmatmul.mubr.bf16.gmra.mrb[0].mxu0 %v2550
        %v2800 = vpop.f32.mrb[0].mxu0
        %v2801 = vadd.f32 %v2724, %v2800
        %v2802 = vpop.f32.mrb[0].mxu0
        %v2803 = vpop.f32.mrb[0].mxu0
        %v2804 = vadd.f32 %v2727, %v2803
        %v2805 = vpop.f32.mrb[0].mxu0
        %2806 = vmatprep.mubr.bf16.mxu0 %v2753
        %2807 = vmatmul.mubr.bf16.gmra.mrb[0].mxu0 %v2552
        %v2808 = vpop.f32.mrb[0].mxu0
        %v2809 = vadd.f32 %v2732, %v2808
        %v2810 = vpop.f32.mrb[0].mxu0
        %v2811 = vpop.f32.mrb[0].mxu0
        %v2812 = vadd.f32 %v2735, %v2811
        %v2813 = vpop.f32.mrb[0].mxu0
        %2814 = vmatprep.mubr.bf16.mxu0 %v2756
        %2815 = vmatmul.mubr.bf16.gmra.mrb[0].mxu0 %v2554
        %v2816 = vpop.f32.mrb[0].mxu0
        %v2817 = vadd.f32 %v2740, %v2816
        %v2818 = vpop.f32.mrb[0].mxu0
        %v2819 = vpop.f32.mrb[0].mxu0
        %v2820 = vadd.f32 %v2743, %v2819
        %v2821 = vpop.f32.mrb[0].mxu0
        %2822 = vdwg.mxu0
        %s2823 = scalar_lea.vmem [#allocation2], 240
        %v2824 = vld [vmem:[%s2823] sm:$0xff]
        %v2825 = vld [vmem:[%s2823 + $0x8] sm:$0xff]
        %v2826 = vld [vmem:[%s2823 + $0x10] sm:$0x3]
        %v2827 = vld [vmem:[%s2823 + $0x18] sm:$0xff]
        %v2828 = vld [vmem:[%s2823 + $0x20] sm:$0xff]
        %v2829 = vld [vmem:[%s2823 + $0x28] sm:$0x3]
        %v2830 = vld [vmem:[%s2823 + $0x30] sm:$0xff]
        %v2831 = vld [vmem:[%s2823 + $0x38] sm:$0xff]
        %v2832 = vld [vmem:[%s2823 + $0x40] sm:$0x3]
        %v2833 = vld [vmem:[%s2823 + $0x48] sm:$0xff]
        %v2834 = vld [vmem:[%s2823 + $0x50] sm:$0xff]
        %v2835 = vld [vmem:[%s2823 + $0x58] sm:$0x3]
        %v2848 = vrot.slane %v2824, 1
        %v2849 = vrot.slane %v2825, 1
        %v2850 = vsel %vm976, %v2848, %v2849
        %v2851 = vrot.slane %v2826, 1
        %v2852 = vsel %vm976, %v2849, %v2851
        %v2853 = vrot.slane %v2827, 1
        %v2854 = vrot.slane %v2828, 1
        %v2855 = vsel %vm976, %v2853, %v2854
        %v2856 = vrot.slane %v2829, 1
        %v2857 = vsel %vm976, %v2854, %v2856
        %v2858 = vrot.slane %v2830, 1
        %v2859 = vrot.slane %v2831, 1
        %v2860 = vsel %vm976, %v2858, %v2859
        %v2861 = vrot.slane %v2832, 1
        %v2862 = vsel %vm976, %v2859, %v2861
        %v2863 = vrot.slane %v2833, 1
        %v2864 = vrot.slane %v2834, 1
        %v2865 = vsel %vm976, %v2863, %v2864
        %v2866 = vrot.slane %v2835, 1
        %v2867 = vsel %vm976, %v2864, %v2866
        %2868 = vrot.lane.b32.xlu0 %v2850, 64
        %v2869 = vpop.permute.xlu0 %2868
        %2870 = vrot.lane.b32.xlu0 %v2852, 64
        %v2871 = vpop.permute.xlu0 %2870
        %2872 = vrot.lane.b32.xlu0 %v2855, 64
        %v2873 = vpop.permute.xlu0 %2872
        %2874 = vrot.lane.b32.xlu0 %v2857, 64
        %v2875 = vpop.permute.xlu0 %2874
        %2876 = vrot.lane.b32.xlu0 %v2860, 64
        %v2877 = vpop.permute.xlu0 %2876
        %2878 = vrot.lane.b32.xlu0 %v2862, 64
        %v2879 = vpop.permute.xlu0 %2878
        %2880 = vrot.lane.b32.xlu0 %v2865, 64
        %v2881 = vpop.permute.xlu0 %2880
        %2882 = vrot.lane.b32.xlu0 %v2867, 64
        %v2883 = vpop.permute.xlu0 %2882
        %v2892 = vrot.slane %v2824, 2
        %v2893 = vrot.slane %v2825, 2
        %v2894 = vsel %vm462, %v2892, %v2893
        %v2895 = vrot.slane %v2826, 2
        %v2896 = vsel %vm462, %v2893, %v2895
        %v2897 = vrot.slane %v2827, 2
        %v2898 = vrot.slane %v2828, 2
        %v2899 = vsel %vm462, %v2897, %v2898
        %v2900 = vrot.slane %v2829, 2
        %v2901 = vsel %vm462, %v2898, %v2900
        %v2902 = vrot.slane %v2830, 2
        %v2903 = vrot.slane %v2831, 2
        %v2904 = vsel %vm462, %v2902, %v2903
        %v2905 = vrot.slane %v2832, 2
        %v2906 = vsel %vm462, %v2903, %v2905
        %v2907 = vrot.slane %v2833, 2
        %v2908 = vrot.slane %v2834, 2
        %v2909 = vsel %vm462, %v2907, %v2908
        %v2910 = vrot.slane %v2835, 2
        %v2911 = vsel %vm462, %v2908, %v2910
        %v2920 = vsel %vm887, %v2824, %v2869
        %v2921 = vsel %vm887, %v2825, %v2871
        %v2922 = vsel %vm887, %v2827, %v2873
        %v2923 = vsel %vm887, %v2828, %v2875
        %v2924 = vsel %vm887, %v2830, %v2877
        %v2925 = vsel %vm887, %v2831, %v2879
        %v2926 = vsel %vm887, %v2833, %v2881
        %v2927 = vsel %vm887, %v2834, %v2883
        %v2928 = vpack.c.bf16 %v2921, %v2920
        %v2929 = vpack.c.bf16 %v2896, %v2894
        %v2930 = vpack.c.bf16 %v2923, %v2922
        %v2931 = vpack.c.bf16 %v2901, %v2899
        %v2932 = vpack.c.bf16 %v2925, %v2924
        %v2933 = vpack.c.bf16 %v2906, %v2904
        %v2934 = vpack.c.bf16 %v2927, %v2926
        %v2935 = vpack.c.bf16 %v2911, %v2909
        %v2937 = vsel %vm887, %v2929, 0
        %v2940 = vsel %vm887, %v2931, 0
        %v2943 = vsel %vm887, %v2933, 0
        %v2946 = vsel %vm887, %v2935, 0
        %2948 = vmatprep.subr.bf16.mxu0 0
        %2949 = vmatpush1.bf16.msra.mxu0 %v1709
        %2950 = vmatprep.subr.bf16.mxu0 0
        %2951 = vmatpush1.bf16.msra.mxu0 %v1710
        %2952 = vmatprep.subr.bf16.mxu0 0
        %2953 = vmatpush1.bf16.msra.mxu0 %v1711
        %2954 = vmatprep.subr.bf16.mxu0 0
        %2955 = vmatpush1.bf16.msra.mxu0 %v1712
        %2956 = vmatprep.subr.bf16.mxu0 0
        %2957 = vmatpush1.bf16.msra.mxu0 %v1713
        %2958 = vmatprep.subr.bf16.mxu0 0
        %2959 = vmatpush1.bf16.msra.mxu0 %v1714
        %2960 = vmatprep.subr.bf16.mxu0 0
        %2961 = vmatpush1.bf16.msra.mxu0 %v1715
        %2962 = vmatprep.subr.bf16.mxu0 0
        %2963 = vmatpush1.bf16.msra.mxu0 %v1716
        %2964 = vmatprep.subr.bf16.mxu0 0
        %2965 = vmatpush1.bf16.msra.mxu0 %v1717
        %2966 = vmatprep.subr.bf16.mxu0 0
        %2967 = vmatpush1.bf16.msra.mxu0 %v1718
        %2968 = vmatprep.subr.bf16.mxu0 0
        %2969 = vmatpush1.bf16.msra.mxu0 %v1719
        %2970 = vmatprep.subr.bf16.mxu0 0
        %2971 = vmatpush1.bf16.msra.mxu0 %v1720
        %2972 = vmatprep.subr.bf16.mxu0 0
        %2973 = vmatpush1.bf16.msra.mxu0 0
        %2974 = vmatprep.subr.bf16.mxu0 0
        %2975 = vmatpush1.bf16.msra.mxu0 0
        %2976 = vmatprep.subr.bf16.mxu0 0
        %2977 = vmatpush1.bf16.msra.mxu0 0
        %2978 = vmatprep.subr.bf16.mxu0 0
        %2979 = vmatpush1.bf16.msra.mxu0 0
        %2980 = vmatprep.mubr.bf16.mxu0 %v2937
        %2981 = vmatmul.mubr.bf16.gmra.mrb[0].mxu0 %v2928
        %v2982 = vpop.f32.mrb[0].mxu0
        %v2983 = vadd.f32 0.0, %v2982
        %v2984 = vpop.f32.mrb[0].mxu0
        %v2985 = vpop.f32.mrb[0].mxu0
        %v2986 = vadd.f32 0.0, %v2985
        %v2987 = vpop.f32.mrb[0].mxu0
        %2988 = vmatprep.mubr.bf16.mxu0 %v2940
        %2989 = vmatmul.mubr.bf16.gmra.mrb[0].mxu0 %v2930
        %v2990 = vpop.f32.mrb[0].mxu0
        %v2991 = vadd.f32 0.0, %v2990
        %v2992 = vpop.f32.mrb[0].mxu0
        %v2993 = vpop.f32.mrb[0].mxu0
        %v2994 = vadd.f32 0.0, %v2993
        %v2995 = vpop.f32.mrb[0].mxu0
        %2996 = vmatprep.mubr.bf16.mxu0 %v2943
        %2997 = vmatmul.mubr.bf16.gmra.mrb[0].mxu0 %v2932
        %v2998 = vpop.f32.mrb[0].mxu0
        %v2999 = vadd.f32 0.0, %v2998
        %v3000 = vpop.f32.mrb[0].mxu0
        %v3001 = vpop.f32.mrb[0].mxu0
        %v3002 = vadd.f32 0.0, %v3001
        %v3003 = vpop.f32.mrb[0].mxu0
        %3004 = vmatprep.mubr.bf16.mxu0 %v2946
        %3005 = vmatmul.mubr.bf16.gmra.mrb[0].mxu0 %v2934
        %v3006 = vpop.f32.mrb[0].mxu0
        %v3007 = vadd.f32 0.0, %v3006
        %v3008 = vpop.f32.mrb[0].mxu0
        %v3009 = vpop.f32.mrb[0].mxu0
        %v3010 = vadd.f32 0.0, %v3009
        %v3011 = vpop.f32.mrb[0].mxu0
        %3012 = vdwg.mxu0
        %v3013 = vadd.f32 %v2793, %v2983
        %v3014 = vadd.f32 %v2796, %v2986
        %v3015 = vadd.f32 %v2801, %v2991
        %v3016 = vadd.f32 %v2804, %v2994
        %v3017 = vadd.f32 %v2809, %v2999
        %v3018 = vadd.f32 %v2812, %v3002
        %v3019 = vadd.f32 %v2817, %v3007
        %v3020 = vadd.f32 %v2820, %v3010
        %v3021 = vadd.f32 %v3013, %v1823
        %v3022 = vadd.f32 %v3014, %v1823
        %v3023 = vadd.f32 %v3015, %v1823
        %v3024 = vadd.f32 %v3016, %v1823
        %v3025 = vadd.f32 %v3017, %v1823
        %v3026 = vadd.f32 %v3018, %v1823
        %v3027 = vadd.f32 %v3019, %v1823
        %v3028 = vadd.f32 %v3020, %v1823
        %v3029 = vmax.f32 %v3021, 0.0
        %v3030 = vmax.f32 %v3022, 0.0
        %v3031 = vmax.f32 %v3023, 0.0
        %v3032 = vmax.f32 %v3024, 0.0
        %v3033 = vmax.f32 %v3025, 0.0
        %v3034 = vmax.f32 %v3026, 0.0
        %v3035 = vmax.f32 %v3027, 0.0
        %v3036 = vmax.f32 %v3028, 0.0
        %v3037 = vmax.f32 %v3029, %v3031
        %v3038 = vmax.f32 %v3030, %v3032
        %v3039 = vmax.f32 %v3033, %v3035
        %v3040 = vmax.f32 %v3034, %v3036
        %s3041 = scalar_lea.vmem [#allocation2], 288
        %v3042 = vld [vmem:[%s3041] sm:$0xff]
        %v3043 = vld [vmem:[%s3041 + $0x8] sm:$0xff]
        %v3044 = vld [vmem:[%s3041 + $0x10] sm:$0x3]
        %v3045 = vld [vmem:[%s3041 + $0x18] sm:$0xff]
        %v3046 = vld [vmem:[%s3041 + $0x20] sm:$0xff]
        %v3047 = vld [vmem:[%s3041 + $0x28] sm:$0x3]
        %v3048 = vld [vmem:[%s3041 + $0x30] sm:$0xff]
        %v3049 = vld [vmem:[%s3041 + $0x38] sm:$0xff]
        %v3050 = vld [vmem:[%s3041 + $0x40] sm:$0x3]
        %v3051 = vld [vmem:[%s3041 + $0x48] sm:$0xff]
        %v3052 = vld [vmem:[%s3041 + $0x50] sm:$0xff]
        %v3053 = vld [vmem:[%s3041 + $0x58] sm:$0x3]
        %v3066 = vrot.slane %v3042, 1
        %v3067 = vrot.slane %v3043, 1
        %v3068 = vsel %vm976, %v3066, %v3067
        %v3069 = vrot.slane %v3044, 1
        %v3070 = vsel %vm976, %v3067, %v3069
        %v3071 = vrot.slane %v3045, 1
        %v3072 = vrot.slane %v3046, 1
        %v3073 = vsel %vm976, %v3071, %v3072
        %v3074 = vrot.slane %v3047, 1
        %v3075 = vsel %vm976, %v3072, %v3074
        %v3076 = vrot.slane %v3048, 1
        %v3077 = vrot.slane %v3049, 1
        %v3078 = vsel %vm976, %v3076, %v3077
        %v3079 = vrot.slane %v3050, 1
        %v3080 = vsel %vm976, %v3077, %v3079
        %v3081 = vrot.slane %v3051, 1
        %v3082 = vrot.slane %v3052, 1
        %v3083 = vsel %vm976, %v3081, %v3082
        %v3084 = vrot.slane %v3053, 1
        %v3085 = vsel %vm976, %v3082, %v3084
        %3086 = vrot.lane.b32.xlu0 %v3068, 64
        %v3087 = vpop.permute.xlu0 %3086
        %3088 = vrot.lane.b32.xlu0 %v3070, 64
        %v3089 = vpop.permute.xlu0 %3088
        %3090 = vrot.lane.b32.xlu0 %v3073, 64
        %v3091 = vpop.permute.xlu0 %3090
        %3092 = vrot.lane.b32.xlu0 %v3075, 64
        %v3093 = vpop.permute.xlu0 %3092
        %3094 = vrot.lane.b32.xlu0 %v3078, 64
        %v3095 = vpop.permute.xlu0 %3094
        %3096 = vrot.lane.b32.xlu0 %v3080, 64
        %v3097 = vpop.permute.xlu0 %3096
        %3098 = vrot.lane.b32.xlu0 %v3083, 64
        %v3099 = vpop.permute.xlu0 %3098
        %3100 = vrot.lane.b32.xlu0 %v3085, 64
        %v3101 = vpop.permute.xlu0 %3100
        %v3110 = vrot.slane %v3042, 2
        %v3111 = vrot.slane %v3043, 2
        %v3112 = vsel %vm462, %v3110, %v3111
        %v3113 = vrot.slane %v3044, 2
        %v3114 = vsel %vm462, %v3111, %v3113
        %v3115 = vrot.slane %v3045, 2
        %v3116 = vrot.slane %v3046, 2
        %v3117 = vsel %vm462, %v3115, %v3116
        %v3118 = vrot.slane %v3047, 2
        %v3119 = vsel %vm462, %v3116, %v3118
        %v3120 = vrot.slane %v3048, 2
        %v3121 = vrot.slane %v3049, 2
        %v3122 = vsel %vm462, %v3120, %v3121
        %v3123 = vrot.slane %v3050, 2
        %v3124 = vsel %vm462, %v3121, %v3123
        %v3125 = vrot.slane %v3051, 2
        %v3126 = vrot.slane %v3052, 2
        %v3127 = vsel %vm462, %v3125, %v3126
        %v3128 = vrot.slane %v3053, 2
        %v3129 = vsel %vm462, %v3126, %v3128
        %v3138 = vsel %vm887, %v3042, %v3087
        %v3139 = vsel %vm887, %v3043, %v3089
        %v3140 = vsel %vm887, %v3045, %v3091
        %v3141 = vsel %vm887, %v3046, %v3093
        %v3142 = vsel %vm887, %v3048, %v3095
        %v3143 = vsel %vm887, %v3049, %v3097
        %v3144 = vsel %vm887, %v3051, %v3099
        %v3145 = vsel %vm887, %v3052, %v3101
        %v3146 = vpack.c.bf16 %v3139, %v3138
        %v3147 = vpack.c.bf16 %v3114, %v3112
        %v3148 = vpack.c.bf16 %v3141, %v3140
        %v3149 = vpack.c.bf16 %v3119, %v3117
        %v3150 = vpack.c.bf16 %v3143, %v3142
        %v3151 = vpack.c.bf16 %v3124, %v3122
        %v3152 = vpack.c.bf16 %v3145, %v3144
        %v3153 = vpack.c.bf16 %v3129, %v3127
        %s3154 = scalar_lea.vmem [#allocation2], 312
        %v3155 = vld [vmem:[%s3154] sm:$0xff]
        %v3156 = vld [vmem:[%s3154 + $0x8] sm:$0xff]
        %v3157 = vld [vmem:[%s3154 + $0x10] sm:$0x3]
        %v3158 = vld [vmem:[%s3154 + $0x18] sm:$0xff]
        %v3159 = vld [vmem:[%s3154 + $0x20] sm:$0xff]
        %v3160 = vld [vmem:[%s3154 + $0x28] sm:$0x3]
        %v3161 = vld [vmem:[%s3154 + $0x30] sm:$0xff]
        %v3162 = vld [vmem:[%s3154 + $0x38] sm:$0xff]
        %v3163 = vld [vmem:[%s3154 + $0x40] sm:$0x3]
        %v3164 = vld [vmem:[%s3154 + $0x48] sm:$0xff]
        %v3165 = vld [vmem:[%s3154 + $0x50] sm:$0xff]
        %v3166 = vld [vmem:[%s3154 + $0x58] sm:$0x3]
        %v3179 = vrot.slane %v3155, 1
        %v3180 = vrot.slane %v3156, 1
        %v3181 = vsel %vm976, %v3179, %v3180
        %v3182 = vrot.slane %v3157, 1
        %v3183 = vsel %vm976, %v3180, %v3182
        %v3184 = vrot.slane %v3158, 1
        %v3185 = vrot.slane %v3159, 1
        %v3186 = vsel %vm976, %v3184, %v3185
        %v3187 = vrot.slane %v3160, 1
        %v3188 = vsel %vm976, %v3185, %v3187
        %v3189 = vrot.slane %v3161, 1
        %v3190 = vrot.slane %v3162, 1
        %v3191 = vsel %vm976, %v3189, %v3190
        %v3192 = vrot.slane %v3163, 1
        %v3193 = vsel %vm976, %v3190, %v3192
        %v3194 = vrot.slane %v3164, 1
        %v3195 = vrot.slane %v3165, 1
        %v3196 = vsel %vm976, %v3194, %v3195
        %v3197 = vrot.slane %v3166, 1
        %v3198 = vsel %vm976, %v3195, %v3197
        %3199 = vrot.lane.b32.xlu0 %v3181, 64
        %v3200 = vpop.permute.xlu0 %3199
        %3201 = vrot.lane.b32.xlu0 %v3183, 64
        %v3202 = vpop.permute.xlu0 %3201
        %3203 = vrot.lane.b32.xlu0 %v3186, 64
        %v3204 = vpop.permute.xlu0 %3203
        %3205 = vrot.lane.b32.xlu0 %v3188, 64
        %v3206 = vpop.permute.xlu0 %3205
        %3207 = vrot.lane.b32.xlu0 %v3191, 64
        %v3208 = vpop.permute.xlu0 %3207
        %3209 = vrot.lane.b32.xlu0 %v3193, 64
        %v3210 = vpop.permute.xlu0 %3209
        %3211 = vrot.lane.b32.xlu0 %v3196, 64
        %v3212 = vpop.permute.xlu0 %3211
        %3213 = vrot.lane.b32.xlu0 %v3198, 64
        %v3214 = vpop.permute.xlu0 %3213
        %v3223 = vrot.slane %v3155, 2
        %v3224 = vrot.slane %v3156, 2
        %v3225 = vsel %vm462, %v3223, %v3224
        %v3226 = vrot.slane %v3157, 2
        %v3227 = vsel %vm462, %v3224, %v3226
        %v3228 = vrot.slane %v3158, 2
        %v3229 = vrot.slane %v3159, 2
        %v3230 = vsel %vm462, %v3228, %v3229
        %v3231 = vrot.slane %v3160, 2
        %v3232 = vsel %vm462, %v3229, %v3231
        %v3233 = vrot.slane %v3161, 2
        %v3234 = vrot.slane %v3162, 2
        %v3235 = vsel %vm462, %v3233, %v3234
        %v3236 = vrot.slane %v3163, 2
        %v3237 = vsel %vm462, %v3234, %v3236
        %v3238 = vrot.slane %v3164, 2
        %v3239 = vrot.slane %v3165, 2
        %v3240 = vsel %vm462, %v3238, %v3239
        %v3241 = vrot.slane %v3166, 2
        %v3242 = vsel %vm462, %v3239, %v3241
        %v3251 = vsel %vm887, %v3155, %v3200
        %v3252 = vsel %vm887, %v3156, %v3202
        %v3253 = vsel %vm887, %v3158, %v3204
        %v3254 = vsel %vm887, %v3159, %v3206
        %v3255 = vsel %vm887, %v3161, %v3208
        %v3256 = vsel %vm887, %v3162, %v3210
        %v3257 = vsel %vm887, %v3164, %v3212
        %v3258 = vsel %vm887, %v3165, %v3214
        %v3259 = vpack.c.bf16 %v3252, %v3251
        %v3260 = vpack.c.bf16 %v3227, %v3225
        %v3261 = vpack.c.bf16 %v3254, %v3253
        %v3262 = vpack.c.bf16 %v3232, %v3230
        %v3263 = vpack.c.bf16 %v3256, %v3255
        %v3264 = vpack.c.bf16 %v3237, %v3235
        %v3265 = vpack.c.bf16 %v3258, %v3257
        %v3266 = vpack.c.bf16 %v3242, %v3240
        %v3268 = vsel %vm887, %v3260, 0
        %v3271 = vsel %vm887, %v3262, 0
        %v3274 = vsel %vm887, %v3264, 0
        %v3277 = vsel %vm887, %v3266, 0
        %3279 = vmatprep.subr.bf16.mxu0 0
        %3280 = vmatpush1.bf16.msra.mxu0 %v1274
        %3281 = vmatprep.subr.bf16.mxu0 0
        %3282 = vmatpush1.bf16.msra.mxu0 %v1275
        %3283 = vmatprep.subr.bf16.mxu0 0
        %3284 = vmatpush1.bf16.msra.mxu0 %v1276
        %3285 = vmatprep.subr.bf16.mxu0 0
        %3286 = vmatpush1.bf16.msra.mxu0 %v1277
        %3287 = vmatprep.subr.bf16.mxu0 0
        %3288 = vmatpush1.bf16.msra.mxu0 %v1278
        %3289 = vmatprep.subr.bf16.mxu0 0
        %3290 = vmatpush1.bf16.msra.mxu0 %v1279
        %3291 = vmatprep.subr.bf16.mxu0 0
        %3292 = vmatpush1.bf16.msra.mxu0 %v1280
        %3293 = vmatprep.subr.bf16.mxu0 0
        %3294 = vmatpush1.bf16.msra.mxu0 %v1281
        %3295 = vmatprep.subr.bf16.mxu0 0
        %3296 = vmatpush1.bf16.msra.mxu0 %v1282
        %3297 = vmatprep.subr.bf16.mxu0 0
        %3298 = vmatpush1.bf16.msra.mxu0 %v1283
        %3299 = vmatprep.subr.bf16.mxu0 0
        %3300 = vmatpush1.bf16.msra.mxu0 %v1284
        %3301 = vmatprep.subr.bf16.mxu0 0
        %3302 = vmatpush1.bf16.msra.mxu0 %v1285
        %3303 = vmatprep.subr.bf16.mxu0 0
        %3304 = vmatpush1.bf16.msra.mxu0 0
        %3305 = vmatprep.subr.bf16.mxu0 0
        %3306 = vmatpush1.bf16.msra.mxu0 0
        %3307 = vmatprep.subr.bf16.mxu0 0
        %3308 = vmatpush1.bf16.msra.mxu0 0
        %3309 = vmatprep.subr.bf16.mxu0 0
        %3310 = vmatpush1.bf16.msra.mxu0 0
        %3311 = vmatprep.mubr.bf16.mxu0 %v3268
        %3312 = vmatmul.mubr.bf16.gmra.mrb[0].mxu0 %v3259
        %v3313 = vpop.f32.mrb[0].mxu0
        %v3314 = vadd.f32 0.0, %v3313
        %v3315 = vpop.f32.mrb[0].mxu0
        %v3316 = vpop.f32.mrb[0].mxu0
        %v3317 = vadd.f32 0.0, %v3316
        %v3318 = vpop.f32.mrb[0].mxu0
        %3319 = vmatprep.mubr.bf16.mxu0 %v3271
        %3320 = vmatmul.mubr.bf16.gmra.mrb[0].mxu0 %v3261
        %v3321 = vpop.f32.mrb[0].mxu0
        %v3322 = vadd.f32 0.0, %v3321
        %v3323 = vpop.f32.mrb[0].mxu0
        %v3324 = vpop.f32.mrb[0].mxu0
        %v3325 = vadd.f32 0.0, %v3324
        %v3326 = vpop.f32.mrb[0].mxu0
        %3327 = vmatprep.mubr.bf16.mxu0 %v3274
        %3328 = vmatmul.mubr.bf16.gmra.mrb[0].mxu0 %v3263
        %v3329 = vpop.f32.mrb[0].mxu0
        %v3330 = vadd.f32 0.0, %v3329
        %v3331 = vpop.f32.mrb[0].mxu0
        %v3332 = vpop.f32.mrb[0].mxu0
        %v3333 = vadd.f32 0.0, %v3332
        %v3334 = vpop.f32.mrb[0].mxu0
        %3335 = vmatprep.mubr.bf16.mxu0 %v3277
        %3336 = vmatmul.mubr.bf16.gmra.mrb[0].mxu0 %v3265
        %v3337 = vpop.f32.mrb[0].mxu0
        %v3338 = vadd.f32 0.0, %v3337
        %v3339 = vpop.f32.mrb[0].mxu0
        %v3340 = vpop.f32.mrb[0].mxu0
        %v3341 = vadd.f32 0.0, %v3340
        %v3342 = vpop.f32.mrb[0].mxu0
        %3343 = vdwg.mxu0
        %v3345 = vsel %vm887, %v3147, 0
        %v3348 = vsel %vm887, %v3149, 0
        %v3351 = vsel %vm887, %v3151, 0
        %v3354 = vsel %vm887, %v3153, 0
        %3356 = vmatprep.subr.bf16.mxu0 0
        %3357 = vmatpush1.bf16.msra.mxu0 %v1423
        %3358 = vmatprep.subr.bf16.mxu0 0
        %3359 = vmatpush1.bf16.msra.mxu0 %v1424
        %3360 = vmatprep.subr.bf16.mxu0 0
        %3361 = vmatpush1.bf16.msra.mxu0 %v1425
        %3362 = vmatprep.subr.bf16.mxu0 0
        %3363 = vmatpush1.bf16.msra.mxu0 %v1426
        %3364 = vmatprep.subr.bf16.mxu0 0
        %3365 = vmatpush1.bf16.msra.mxu0 %v1427
        %3366 = vmatprep.subr.bf16.mxu0 0
        %3367 = vmatpush1.bf16.msra.mxu0 %v1428
        %3368 = vmatprep.subr.bf16.mxu0 0
        %3369 = vmatpush1.bf16.msra.mxu0 %v1429
        %3370 = vmatprep.subr.bf16.mxu0 0
        %3371 = vmatpush1.bf16.msra.mxu0 %v1430
        %3372 = vmatprep.subr.bf16.mxu0 0
        %3373 = vmatpush1.bf16.msra.mxu0 %v1431
        %3374 = vmatprep.subr.bf16.mxu0 0
        %3375 = vmatpush1.bf16.msra.mxu0 %v1432
        %3376 = vmatprep.subr.bf16.mxu0 0
        %3377 = vmatpush1.bf16.msra.mxu0 %v1433
        %3378 = vmatprep.subr.bf16.mxu0 0
        %3379 = vmatpush1.bf16.msra.mxu0 %v1434
        %3380 = vmatprep.subr.bf16.mxu0 0
        %3381 = vmatpush1.bf16.msra.mxu0 0
        %3382 = vmatprep.subr.bf16.mxu0 0
        %3383 = vmatpush1.bf16.msra.mxu0 0
        %3384 = vmatprep.subr.bf16.mxu0 0
        %3385 = vmatpush1.bf16.msra.mxu0 0
        %3386 = vmatprep.subr.bf16.mxu0 0
        %3387 = vmatpush1.bf16.msra.mxu0 0
        %3388 = vmatprep.mubr.bf16.mxu0 %v3345
        %3389 = vmatmul.mubr.bf16.gmra.mrb[0].mxu0 %v3146
        %v3390 = vpop.f32.mrb[0].mxu0
        %v3391 = vadd.f32 %v3314, %v3390
        %v3392 = vpop.f32.mrb[0].mxu0
        %v3393 = vpop.f32.mrb[0].mxu0
        %v3394 = vadd.f32 %v3317, %v3393
        %v3395 = vpop.f32.mrb[0].mxu0
        %3396 = vmatprep.mubr.bf16.mxu0 %v3348
        %3397 = vmatmul.mubr.bf16.gmra.mrb[0].mxu0 %v3148
        %v3398 = vpop.f32.mrb[0].mxu0
        %v3399 = vadd.f32 %v3322, %v3398
        %v3400 = vpop.f32.mrb[0].mxu0
        %v3401 = vpop.f32.mrb[0].mxu0
        %v3402 = vadd.f32 %v3325, %v3401
        %v3403 = vpop.f32.mrb[0].mxu0
        %3404 = vmatprep.mubr.bf16.mxu0 %v3351
        %3405 = vmatmul.mubr.bf16.gmra.mrb[0].mxu0 %v3150
        %v3406 = vpop.f32.mrb[0].mxu0
        %v3407 = vadd.f32 %v3330, %v3406
        %v3408 = vpop.f32.mrb[0].mxu0
        %v3409 = vpop.f32.mrb[0].mxu0
        %v3410 = vadd.f32 %v3333, %v3409
        %v3411 = vpop.f32.mrb[0].mxu0
        %3412 = vmatprep.mubr.bf16.mxu0 %v3354
        %3413 = vmatmul.mubr.bf16.gmra.mrb[0].mxu0 %v3152
        %v3414 = vpop.f32.mrb[0].mxu0
        %v3415 = vadd.f32 %v3338, %v3414
        %v3416 = vpop.f32.mrb[0].mxu0
        %v3417 = vpop.f32.mrb[0].mxu0
        %v3418 = vadd.f32 %v3341, %v3417
        %v3419 = vpop.f32.mrb[0].mxu0
        %3420 = vdwg.mxu0
        %s3421 = scalar_lea.vmem [#allocation2], 336
        %v3422 = vld [vmem:[%s3421] sm:$0xff]
        %v3423 = vld [vmem:[%s3421 + $0x8] sm:$0xff]
        %v3424 = vld [vmem:[%s3421 + $0x10] sm:$0x3]
        %v3425 = vld [vmem:[%s3421 + $0x18] sm:$0xff]
        %v3426 = vld [vmem:[%s3421 + $0x20] sm:$0xff]
        %v3427 = vld [vmem:[%s3421 + $0x28] sm:$0x3]
        %v3428 = vld [vmem:[%s3421 + $0x30] sm:$0xff]
        %v3429 = vld [vmem:[%s3421 + $0x38] sm:$0xff]
        %v3430 = vld [vmem:[%s3421 + $0x40] sm:$0x3]
        %v3431 = vld [vmem:[%s3421 + $0x48] sm:$0xff]
        %v3432 = vld [vmem:[%s3421 + $0x50] sm:$0xff]
        %v3433 = vld [vmem:[%s3421 + $0x58] sm:$0x3]
        %v3446 = vrot.slane %v3422, 1
        %v3447 = vrot.slane %v3423, 1
        %v3448 = vsel %vm976, %v3446, %v3447
        %v3449 = vrot.slane %v3424, 1
        %v3450 = vsel %vm976, %v3447, %v3449
        %v3451 = vrot.slane %v3425, 1
        %v3452 = vrot.slane %v3426, 1
        %v3453 = vsel %vm976, %v3451, %v3452
        %v3454 = vrot.slane %v3427, 1
        %v3455 = vsel %vm976, %v3452, %v3454
        %v3456 = vrot.slane %v3428, 1
        %v3457 = vrot.slane %v3429, 1
        %v3458 = vsel %vm976, %v3456, %v3457
        %v3459 = vrot.slane %v3430, 1
        %v3460 = vsel %vm976, %v3457, %v3459
        %v3461 = vrot.slane %v3431, 1
        %v3462 = vrot.slane %v3432, 1
        %v3463 = vsel %vm976, %v3461, %v3462
        %v3464 = vrot.slane %v3433, 1
        %v3465 = vsel %vm976, %v3462, %v3464
        %3466 = vrot.lane.b32.xlu0 %v3448, 64
        %v3467 = vpop.permute.xlu0 %3466
        %3468 = vrot.lane.b32.xlu0 %v3450, 64
        %v3469 = vpop.permute.xlu0 %3468
        %3470 = vrot.lane.b32.xlu0 %v3453, 64
        %v3471 = vpop.permute.xlu0 %3470
        %3472 = vrot.lane.b32.xlu0 %v3455, 64
        %v3473 = vpop.permute.xlu0 %3472
        %3474 = vrot.lane.b32.xlu0 %v3458, 64
        %v3475 = vpop.permute.xlu0 %3474
        %3476 = vrot.lane.b32.xlu0 %v3460, 64
        %v3477 = vpop.permute.xlu0 %3476
        %3478 = vrot.lane.b32.xlu0 %v3463, 64
        %v3479 = vpop.permute.xlu0 %3478
        %3480 = vrot.lane.b32.xlu0 %v3465, 64
        %v3481 = vpop.permute.xlu0 %3480
        %v3490 = vrot.slane %v3422, 2
        %v3491 = vrot.slane %v3423, 2
        %v3492 = vsel %vm462, %v3490, %v3491
        %v3493 = vrot.slane %v3424, 2
        %v3494 = vsel %vm462, %v3491, %v3493
        %v3495 = vrot.slane %v3425, 2
        %v3496 = vrot.slane %v3426, 2
        %v3497 = vsel %vm462, %v3495, %v3496
        %v3498 = vrot.slane %v3427, 2
        %v3499 = vsel %vm462, %v3496, %v3498
        %v3500 = vrot.slane %v3428, 2
        %v3501 = vrot.slane %v3429, 2
        %v3502 = vsel %vm462, %v3500, %v3501
        %v3503 = vrot.slane %v3430, 2
        %v3504 = vsel %vm462, %v3501, %v3503
        %v3505 = vrot.slane %v3431, 2
        %v3506 = vrot.slane %v3432, 2
        %v3507 = vsel %vm462, %v3505, %v3506
        %v3508 = vrot.slane %v3433, 2
        %v3509 = vsel %vm462, %v3506, %v3508
        %v3518 = vsel %vm887, %v3422, %v3467
        %v3519 = vsel %vm887, %v3423, %v3469
        %v3520 = vsel %vm887, %v3425, %v3471
        %v3521 = vsel %vm887, %v3426, %v3473
        %v3522 = vsel %vm887, %v3428, %v3475
        %v3523 = vsel %vm887, %v3429, %v3477
        %v3524 = vsel %vm887, %v3431, %v3479
        %v3525 = vsel %vm887, %v3432, %v3481
        %v3526 = vpack.c.bf16 %v3519, %v3518
        %v3527 = vpack.c.bf16 %v3494, %v3492
        %v3528 = vpack.c.bf16 %v3521, %v3520
        %v3529 = vpack.c.bf16 %v3499, %v3497
        %v3530 = vpack.c.bf16 %v3523, %v3522
        %v3531 = vpack.c.bf16 %v3504, %v3502
        %v3532 = vpack.c.bf16 %v3525, %v3524
        %v3533 = vpack.c.bf16 %v3509, %v3507
        %v3535 = vsel %vm887, %v3527, 0
        %v3538 = vsel %vm887, %v3529, 0
        %v3541 = vsel %vm887, %v3531, 0
        %v3544 = vsel %vm887, %v3533, 0
        %3546 = vmatprep.subr.bf16.mxu0 0
        %3547 = vmatpush1.bf16.msra.mxu0 %v1709
        %3548 = vmatprep.subr.bf16.mxu0 0
        %3549 = vmatpush1.bf16.msra.mxu0 %v1710
        %3550 = vmatprep.subr.bf16.mxu0 0
        %3551 = vmatpush1.bf16.msra.mxu0 %v1711
        %3552 = vmatprep.subr.bf16.mxu0 0
        %3553 = vmatpush1.bf16.msra.mxu0 %v1712
        %3554 = vmatprep.subr.bf16.mxu0 0
        %3555 = vmatpush1.bf16.msra.mxu0 %v1713
        %3556 = vmatprep.subr.bf16.mxu0 0
        %3557 = vmatpush1.bf16.msra.mxu0 %v1714
        %3558 = vmatprep.subr.bf16.mxu0 0
        %3559 = vmatpush1.bf16.msra.mxu0 %v1715
        %3560 = vmatprep.subr.bf16.mxu0 0
        %3561 = vmatpush1.bf16.msra.mxu0 %v1716
        %3562 = vmatprep.subr.bf16.mxu0 0
        %3563 = vmatpush1.bf16.msra.mxu0 %v1717
        %3564 = vmatprep.subr.bf16.mxu0 0
        %3565 = vmatpush1.bf16.msra.mxu0 %v1718
        %3566 = vmatprep.subr.bf16.mxu0 0
        %3567 = vmatpush1.bf16.msra.mxu0 %v1719
        %3568 = vmatprep.subr.bf16.mxu0 0
        %3569 = vmatpush1.bf16.msra.mxu0 %v1720
        %3570 = vmatprep.subr.bf16.mxu0 0
        %3571 = vmatpush1.bf16.msra.mxu0 0
        %3572 = vmatprep.subr.bf16.mxu0 0
        %3573 = vmatpush1.bf16.msra.mxu0 0
        %3574 = vmatprep.subr.bf16.mxu0 0
        %3575 = vmatpush1.bf16.msra.mxu0 0
        %3576 = vmatprep.subr.bf16.mxu0 0
        %3577 = vmatpush1.bf16.msra.mxu0 0
        %3578 = vmatprep.mubr.bf16.mxu0 %v3535
        %3579 = vmatmul.mubr.bf16.gmra.mrb[0].mxu0 %v3526
        %v3580 = vpop.f32.mrb[0].mxu0
        %v3581 = vadd.f32 0.0, %v3580
        %v3582 = vpop.f32.mrb[0].mxu0
        %v3583 = vpop.f32.mrb[0].mxu0
        %v3584 = vadd.f32 0.0, %v3583
        %v3585 = vpop.f32.mrb[0].mxu0
        %3586 = vmatprep.mubr.bf16.mxu0 %v3538
        %3587 = vmatmul.mubr.bf16.gmra.mrb[0].mxu0 %v3528
        %v3588 = vpop.f32.mrb[0].mxu0
        %v3589 = vadd.f32 0.0, %v3588
        %v3590 = vpop.f32.mrb[0].mxu0
        %v3591 = vpop.f32.mrb[0].mxu0
        %v3592 = vadd.f32 0.0, %v3591
        %v3593 = vpop.f32.mrb[0].mxu0
        %3594 = vmatprep.mubr.bf16.mxu0 %v3541
        %3595 = vmatmul.mubr.bf16.gmra.mrb[0].mxu0 %v3530
        %v3596 = vpop.f32.mrb[0].mxu0
        %v3597 = vadd.f32 0.0, %v3596
        %v3598 = vpop.f32.mrb[0].mxu0
        %v3599 = vpop.f32.mrb[0].mxu0
        %v3600 = vadd.f32 0.0, %v3599
        %v3601 = vpop.f32.mrb[0].mxu0
        %3602 = vmatprep.mubr.bf16.mxu0 %v3544
        %3603 = vmatmul.mubr.bf16.gmra.mrb[0].mxu0 %v3532
        %v3604 = vpop.f32.mrb[0].mxu0
        %v3605 = vadd.f32 0.0, %v3604
        %v3606 = vpop.f32.mrb[0].mxu0
        %v3607 = vpop.f32.mrb[0].mxu0
        %v3608 = vadd.f32 0.0, %v3607
        %v3609 = vpop.f32.mrb[0].mxu0
        %3610 = vdwg.mxu0
        %v3611 = vadd.f32 %v3391, %v3581
        %v3612 = vadd.f32 %v3394, %v3584
        %v3613 = vadd.f32 %v3399, %v3589
        %v3614 = vadd.f32 %v3402, %v3592
        %v3615 = vadd.f32 %v3407, %v3597
        %v3616 = vadd.f32 %v3410, %v3600
        %v3617 = vadd.f32 %v3415, %v3605
        %v3618 = vadd.f32 %v3418, %v3608
        %v3619 = vadd.f32 %v3611, %v1823
        %v3620 = vadd.f32 %v3612, %v1823
        %v3621 = vadd.f32 %v3613, %v1823
        %v3622 = vadd.f32 %v3614, %v1823
        %v3623 = vadd.f32 %v3615, %v1823
        %v3624 = vadd.f32 %v3616, %v1823
        %v3625 = vadd.f32 %v3617, %v1823
        %v3626 = vadd.f32 %v3618, %v1823
        %v3627 = vmax.f32 %v3619, 0.0
        %v3628 = vmax.f32 %v3620, 0.0
        %v3629 = vmax.f32 %v3621, 0.0
        %v3630 = vmax.f32 %v3622, 0.0
        %v3631 = vmax.f32 %v3623, 0.0
        %v3632 = vmax.f32 %v3624, 0.0
        %v3633 = vmax.f32 %v3625, 0.0
        %v3634 = vmax.f32 %v3626, 0.0
        %v3635 = vmax.f32 %v3627, %v3629
        %v3636 = vmax.f32 %v3628, %v3630
        %v3637 = vmax.f32 %v3631, %v3633
        %v3638 = vmax.f32 %v3632, %v3634
        %v3647 = vrot.slane %v1841, 1
        %v3648 = vrot.slane %v1843, 1
        %v3649 = vrot.slane %v2439, 1
        %v3650 = vrot.slane %v2441, 1
        %v3651 = vrot.slane %v3037, 1
        %v3652 = vrot.slane %v3039, 1
        %v3653 = vrot.slane %v3635, 1
        %v3654 = vrot.slane %v3637, 1
        %v3663 = vrot.slane %v1841, 2
        %v3664 = vrot.slane %v1843, 2
        %v3665 = vrot.slane %v2439, 2
        %v3666 = vrot.slane %v2441, 2
        %v3667 = vrot.slane %v3037, 2
        %v3668 = vrot.slane %v3039, 2
        %v3669 = vrot.slane %v3635, 2
        %v3670 = vrot.slane %v3637, 2
        %v3679 = vrot.slane %v1841, 3
        %v3680 = vrot.slane %v1843, 3
        %v3681 = vrot.slane %v2439, 3
        %v3682 = vrot.slane %v2441, 3
        %v3683 = vrot.slane %v3037, 3
        %v3684 = vrot.slane %v3039, 3
        %v3685 = vrot.slane %v3635, 3
        %v3686 = vrot.slane %v3637, 3
        %v3703 = vrot.slane %v1842, 4
        %v3704 = vrot.slane %v1844, 4
        %v3705 = vrot.slane %v2440, 4
        %v3706 = vrot.slane %v2442, 4
        %v3707 = vrot.slane %v3038, 4
        %v3708 = vrot.slane %v3040, 4
        %v3709 = vrot.slane %v3636, 4
        %v3710 = vrot.slane %v3638, 4
        %v3719 = vrot.slane %v1842, 5
        %v3720 = vrot.slane %v1844, 5
        %v3721 = vrot.slane %v2440, 5
        %v3722 = vrot.slane %v2442, 5
        %v3723 = vrot.slane %v3038, 5
        %v3724 = vrot.slane %v3040, 5
        %v3725 = vrot.slane %v3636, 5
        %v3726 = vrot.slane %v3638, 5
        %v3735 = vrot.slane %v1842, 6
        %v3736 = vrot.slane %v1844, 6
        %v3737 = vrot.slane %v2440, 6
        %v3738 = vrot.slane %v2442, 6
        %v3739 = vrot.slane %v3038, 6
        %v3740 = vrot.slane %v3040, 6
        %v3741 = vrot.slane %v3636, 6
        %v3742 = vrot.slane %v3638, 6
        %v3751 = vrot.slane %v1842, 7
        %v3752 = vrot.slane %v1844, 7
        %v3753 = vrot.slane %v2440, 7
        %v3754 = vrot.slane %v2442, 7
        %v3755 = vrot.slane %v3038, 7
        %v3756 = vrot.slane %v3040, 7
        %v3757 = vrot.slane %v3636, 7
        %v3758 = vrot.slane %v3638, 7
        %v3767 = vsel %vm725, %v1841, %v3647
        %v3768 = vsel %vm725, %v1843, %v3648
        %v3769 = vsel %vm725, %v2439, %v3649
        %v3770 = vsel %vm725, %v2441, %v3650
        %v3771 = vsel %vm725, %v3037, %v3651
        %v3772 = vsel %vm725, %v3039, %v3652
        %v3773 = vsel %vm725, %v3635, %v3653
        %v3774 = vsel %vm725, %v3637, %v3654
        %vm3775 = vcmask 1041408
        %v3776 = vsel %vm3775, %v3767, %v3663
        %v3777 = vsel %vm3775, %v3768, %v3664
        %v3778 = vsel %vm3775, %v3769, %v3665
        %v3779 = vsel %vm3775, %v3770, %v3666
        %v3780 = vsel %vm3775, %v3771, %v3667
        %v3781 = vsel %vm3775, %v3772, %v3668
        %v3782 = vsel %vm3775, %v3773, %v3669
        %v3783 = vsel %vm3775, %v3774, %v3670
        %vm3784 = vcmask 1042432
        %v3785 = vsel %vm3784, %v3776, %v3679
        %v3786 = vsel %vm3784, %v3777, %v3680
        %v3787 = vsel %vm3784, %v3778, %v3681
        %v3788 = vsel %vm3784, %v3779, %v3682
        %v3789 = vsel %vm3784, %v3780, %v3683
        %v3790 = vsel %vm3784, %v3781, %v3684
        %v3791 = vsel %vm3784, %v3782, %v3685
        %v3792 = vsel %vm3784, %v3783, %v3686
        %vm3793 = vcmask 1043456
        %v3794 = vsel %vm3793, %v3785, %v3703
        %v3795 = vsel %vm3793, %v3786, %v3704
        %v3796 = vsel %vm3793, %v3787, %v3705
        %v3797 = vsel %vm3793, %v3788, %v3706
        %v3798 = vsel %vm3793, %v3789, %v3707
        %v3799 = vsel %vm3793, %v3790, %v3708
        %v3800 = vsel %vm3793, %v3791, %v3709
        %v3801 = vsel %vm3793, %v3792, %v3710
        %v3802 = vsel %vm461, %v3794, %v3719
        %v3803 = vsel %vm461, %v3795, %v3720
        %v3804 = vsel %vm461, %v3796, %v3721
        %v3805 = vsel %vm461, %v3797, %v3722
        %v3806 = vsel %vm461, %v3798, %v3723
        %v3807 = vsel %vm461, %v3799, %v3724
        %v3808 = vsel %vm461, %v3800, %v3725
        %v3809 = vsel %vm461, %v3801, %v3726
        %v3810 = vsel %vm462, %v3802, %v3735
        %v3811 = vsel %vm462, %v3803, %v3736
        %v3812 = vsel %vm462, %v3804, %v3737
        %v3813 = vsel %vm462, %v3805, %v3738
        %v3814 = vsel %vm462, %v3806, %v3739
        %v3815 = vsel %vm462, %v3807, %v3740
        %v3816 = vsel %vm462, %v3808, %v3741
        %v3817 = vsel %vm462, %v3809, %v3742
        %v3818 = vsel %vm976, %v3810, %v3751
        %v3819 = vsel %vm976, %v3811, %v3752
        %v3820 = vsel %vm976, %v3812, %v3753
        %v3821 = vsel %vm976, %v3813, %v3754
        %v3822 = vsel %vm976, %v3814, %v3755
        %v3823 = vsel %vm976, %v3815, %v3756
        %v3824 = vsel %vm976, %v3816, %v3757
        %v3825 = vsel %vm976, %v3817, %v3758
        %v3826 = vrot.slane %v1841, 4
        %v3827 = vrot.slane %v1843, 4
        %v3828 = vrot.slane %v2439, 4
        %v3829 = vrot.slane %v2441, 4
        %v3830 = vrot.slane %v3037, 4
        %v3831 = vrot.slane %v3039, 4
        %v3832 = vrot.slane %v3635, 4
        %v3833 = vrot.slane %v3637, 4
        %v3842 = vsel %vm725, %v3647, %v3663
        %v3843 = vsel %vm725, %v3648, %v3664
        %v3844 = vsel %vm725, %v3649, %v3665
        %v3845 = vsel %vm725, %v3650, %v3666
        %v3846 = vsel %vm725, %v3651, %v3667
        %v3847 = vsel %vm725, %v3652, %v3668
        %v3848 = vsel %vm725, %v3653, %v3669
        %v3849 = vsel %vm725, %v3654, %v3670
        %v3850 = vsel %vm3775, %v3842, %v3679
        %v3851 = vsel %vm3775, %v3843, %v3680
        %v3852 = vsel %vm3775, %v3844, %v3681
        %v3853 = vsel %vm3775, %v3845, %v3682
        %v3854 = vsel %vm3775, %v3846, %v3683
        %v3855 = vsel %vm3775, %v3847, %v3684
        %v3856 = vsel %vm3775, %v3848, %v3685
        %v3857 = vsel %vm3775, %v3849, %v3686
        %v3858 = vsel %vm3784, %v3850, %v3826
        %v3859 = vsel %vm3784, %v3851, %v3827
        %v3860 = vsel %vm3784, %v3852, %v3828
        %v3861 = vsel %vm3784, %v3853, %v3829
        %v3862 = vsel %vm3784, %v3854, %v3830
        %v3863 = vsel %vm3784, %v3855, %v3831
        %v3864 = vsel %vm3784, %v3856, %v3832
        %v3865 = vsel %vm3784, %v3857, %v3833
        %v3866 = vsel %vm3793, %v3858, %v3719
        %v3867 = vsel %vm3793, %v3859, %v3720
        %v3868 = vsel %vm3793, %v3860, %v3721
        %v3869 = vsel %vm3793, %v3861, %v3722
        %v3870 = vsel %vm3793, %v3862, %v3723
        %v3871 = vsel %vm3793, %v3863, %v3724
        %v3872 = vsel %vm3793, %v3864, %v3725
        %v3873 = vsel %vm3793, %v3865, %v3726
        %v3874 = vsel %vm461, %v3866, %v3735
        %v3875 = vsel %vm461, %v3867, %v3736
        %v3876 = vsel %vm461, %v3868, %v3737
        %v3877 = vsel %vm461, %v3869, %v3738
        %v3878 = vsel %vm461, %v3870, %v3739
        %v3879 = vsel %vm461, %v3871, %v3740
        %v3880 = vsel %vm461, %v3872, %v3741
        %v3881 = vsel %vm461, %v3873, %v3742
        %v3882 = vsel %vm462, %v3874, %v3751
        %v3883 = vsel %vm462, %v3875, %v3752
        %v3884 = vsel %vm462, %v3876, %v3753
        %v3885 = vsel %vm462, %v3877, %v3754
        %v3886 = vsel %vm462, %v3878, %v3755
        %v3887 = vsel %vm462, %v3879, %v3756
        %v3888 = vsel %vm462, %v3880, %v3757
        %v3889 = vsel %vm462, %v3881, %v3758
        %v3890 = vsel %vm976, %v3882, %v1842
        %v3891 = vsel %vm976, %v3883, %v1844
        %v3892 = vsel %vm976, %v3884, %v2440
        %v3893 = vsel %vm976, %v3885, %v2442
        %v3894 = vsel %vm976, %v3886, %v3038
        %v3895 = vsel %vm976, %v3887, %v3040
        %v3896 = vsel %vm976, %v3888, %v3636
        %v3897 = vsel %vm976, %v3889, %v3638
        %v3898 = vmax.f32 %v3818, %v3890
        %v3899 = vmax.f32 %v3819, %v3891
        %v3900 = vmax.f32 %v3820, %v3892
        %v3901 = vmax.f32 %v3821, %v3893
        %v3902 = vmax.f32 %v3822, %v3894
        %v3903 = vmax.f32 %v3823, %v3895
        %v3904 = vmax.f32 %v3824, %v3896
        %v3905 = vmax.f32 %v3825, %v3897
        %v3914 = vrot.slane %v3898, 1
        %v3915 = vrot.slane %v3899, 1
        %v3916 = vrot.slane %v3900, 1
        %v3917 = vrot.slane %v3901, 1
        %v3918 = vrot.slane %v3902, 1
        %v3919 = vrot.slane %v3903, 1
        %v3920 = vrot.slane %v3904, 1
        %v3921 = vrot.slane %v3905, 1
        %v3930 = vrot.slane %v3898, 7
        %v3931 = vrot.slane %v3899, 7
        %v3932 = vrot.slane %v3900, 7
        %v3933 = vrot.slane %v3901, 7
        %v3934 = vrot.slane %v3902, 7
        %v3935 = vrot.slane %v3903, 7
        %v3936 = vrot.slane %v3904, 7
        %v3937 = vrot.slane %v3905, 7
        %v3946 = vrot.slane %v3898, 5
        %v3947 = vrot.slane %v3899, 5
        %v3948 = vrot.slane %v3900, 5
        %v3949 = vrot.slane %v3901, 5
        %v3950 = vrot.slane %v3902, 5
        %v3951 = vrot.slane %v3903, 5
        %v3952 = vrot.slane %v3904, 5
        %v3953 = vrot.slane %v3905, 5
        %v3962 = vsel %vm725, %v3914, %v3930
        %v3963 = vsel %vm725, %v3915, %v3931
        %v3964 = vsel %vm725, %v3916, %v3932
        %v3965 = vsel %vm725, %v3917, %v3933
        %v3966 = vsel %vm725, %v3918, %v3934
        %v3967 = vsel %vm725, %v3919, %v3935
        %v3968 = vsel %vm725, %v3920, %v3936
        %v3969 = vsel %vm725, %v3921, %v3937
        %v3970 = vsel %vm725, %v3930, %v3946
        %v3971 = vsel %vm725, %v3931, %v3947
        %v3972 = vsel %vm725, %v3932, %v3948
        %v3973 = vsel %vm725, %v3933, %v3949
        %v3974 = vsel %vm725, %v3934, %v3950
        %v3975 = vsel %vm725, %v3935, %v3951
        %v3976 = vsel %vm725, %v3936, %v3952
        %v3977 = vsel %vm725, %v3937, %v3953
        %s3978 = scalar_lea.vmem [#allocation3], 16
        %3979 = vst.msk [vmem:[%s3978] sm:$0xff] %vm887, %v3962
        %3980 = vst.msk [vmem:[%s3978 + $0x8] sm:$0x3] %vm890, %v3970
        %3981 = vst.msk [vmem:[%s3978 + $0x10] sm:$0xff] %vm887, %v3963
        %3982 = vst.msk [vmem:[%s3978 + $0x18] sm:$0x3] %vm890, %v3971
        %3983 = vst.msk [vmem:[%s3978 + $0x20] sm:$0xff] %vm887, %v3964
        %3984 = vst.msk [vmem:[%s3978 + $0x28] sm:$0x3] %vm890, %v3972
        %3985 = vst.msk [vmem:[%s3978 + $0x30] sm:$0xff] %vm887, %v3965
        %3986 = vst.msk [vmem:[%s3978 + $0x38] sm:$0x3] %vm890, %v3973
        %3987 = vst.msk [vmem:[%s3978 + $0x40] sm:$0xff] %vm887, %v3966
        %3988 = vst.msk [vmem:[%s3978 + $0x48] sm:$0x3] %vm890, %v3974
        %3989 = vst.msk [vmem:[%s3978 + $0x50] sm:$0xff] %vm887, %v3967
        %3990 = vst.msk [vmem:[%s3978 + $0x58] sm:$0x3] %vm890, %v3975
        %3991 = vst.msk [vmem:[%s3978 + $0x60] sm:$0xff] %vm887, %v3968
        %3992 = vst.msk [vmem:[%s3978 + $0x68] sm:$0x3] %vm890, %v3976
        %3993 = vst.msk [vmem:[%s3978 + $0x70] sm:$0xff] %vm887, %v3969
        %3994 = vst.msk [vmem:[%s3978 + $0x78] sm:$0x3] %vm890, %v3977
        %s3995 = scalar_lea.vmem [#allocation3], 32
        %v3996 = vld [vmem:[%s3995] sm:$0xff]
        %v3997 = vld [vmem:[%s3995 + $0x8] sm:$0x3]
        %3998 = vst.msk [vmem:[#allocation3] sm:$0xff] %vm887, %v3996
        %3999 = vst.msk [vmem:[#allocation3 + $0x8] sm:$0x3] %vm890, %v3997
        %s4000 = scalar_lea.vmem [#allocation3], 112
        %v4001 = vld [vmem:[%s4000] sm:$0xff]
        %v4002 = vld [vmem:[%s4000 + $0x8] sm:$0x3]
        %s4003 = scalar_lea.vmem [#allocation3], 144
        %4004 = vst.msk [vmem:[%s4003] sm:$0xff] %vm887, %v4001
        %4005 = vst.msk [vmem:[%s4003 + $0x8] sm:$0x3] %vm890, %v4002
        %v4006 = vld [vmem:[#allocation3] sm:$0xff]
        %v4007 = vld [vmem:[#allocation3 + $0x8] sm:$0x3]
        %v4008 = vld [vmem:[#allocation3 + $0x10] sm:$0xff]
        %v4009 = vld [vmem:[#allocation3 + $0x18] sm:$0x3]
        %v4010 = vld [vmem:[#allocation3 + $0x20] sm:$0xff]
        %v4011 = vld [vmem:[#allocation3 + $0x28] sm:$0x3]
        %v4012 = vld [vmem:[#allocation3 + $0x30] sm:$0xff]
        %v4013 = vld [vmem:[#allocation3 + $0x38] sm:$0x3]
        %v4014 = vld [vmem:[#allocation3 + $0x40] sm:$0xff]
        %v4015 = vld [vmem:[#allocation3 + $0x48] sm:$0x3]
        %v4016 = vld [vmem:[#allocation3 + $0x50] sm:$0xff]
        %v4017 = vld [vmem:[#allocation3 + $0x58] sm:$0x3]
        %v4018 = vld [vmem:[#allocation3 + $0x60] sm:$0xff]
        %v4019 = vld [vmem:[#allocation3 + $0x68] sm:$0x3]
        %v4020 = vld [vmem:[#allocation3 + $0x70] sm:$0xff]
        %v4021 = vld [vmem:[#allocation3 + $0x78] sm:$0x3]
        %v4038 = vrot.slane %v4006, 1
        %v4039 = vrot.slane %v4007, 1
        %v4040 = vsel %vm976, %v4038, %v4039
        %v4041 = vrot.slane %v4008, 1
        %v4042 = vrot.slane %v4009, 1
        %v4043 = vsel %vm976, %v4041, %v4042
        %v4044 = vrot.slane %v4010, 1
        %v4045 = vrot.slane %v4011, 1
        %v4046 = vsel %vm976, %v4044, %v4045
        %v4047 = vrot.slane %v4012, 1
        %v4048 = vrot.slane %v4013, 1
        %v4049 = vsel %vm976, %v4047, %v4048
        %v4050 = vrot.slane %v4014, 1
        %v4051 = vrot.slane %v4015, 1
        %v4052 = vsel %vm976, %v4050, %v4051
        %v4053 = vrot.slane %v4016, 1
        %v4054 = vrot.slane %v4017, 1
        %v4055 = vsel %vm976, %v4053, %v4054
        %v4056 = vrot.slane %v4018, 1
        %v4057 = vrot.slane %v4019, 1
        %v4058 = vsel %vm976, %v4056, %v4057
        %v4059 = vrot.slane %v4020, 1
        %v4060 = vrot.slane %v4021, 1
        %v4061 = vsel %vm976, %v4059, %v4060
        %4062 = vrot.lane.b32.xlu0 %v4040, 64
        %v4063 = vpop.permute.xlu0 %4062
        %4064 = vrot.lane.b32.xlu0 %v4043, 64
        %v4065 = vpop.permute.xlu0 %4064
        %4066 = vrot.lane.b32.xlu0 %v4046, 64
        %v4067 = vpop.permute.xlu0 %4066
        %4068 = vrot.lane.b32.xlu0 %v4049, 64
        %v4069 = vpop.permute.xlu0 %4068
        %4070 = vrot.lane.b32.xlu0 %v4052, 64
        %v4071 = vpop.permute.xlu0 %4070
        %4072 = vrot.lane.b32.xlu0 %v4055, 64
        %v4073 = vpop.permute.xlu0 %4072
        %4074 = vrot.lane.b32.xlu0 %v4058, 64
        %v4075 = vpop.permute.xlu0 %4074
        %4076 = vrot.lane.b32.xlu0 %v4061, 64
        %v4077 = vpop.permute.xlu0 %4076
        %v4086 = vrot.slane %v4006, 2
        %v4087 = vrot.slane %v4007, 2
        %v4088 = vsel %vm462, %v4086, %v4087
        %v4089 = vrot.slane %v4008, 2
        %v4090 = vrot.slane %v4009, 2
        %v4091 = vsel %vm462, %v4089, %v4090
        %v4092 = vrot.slane %v4010, 2
        %v4093 = vrot.slane %v4011, 2
        %v4094 = vsel %vm462, %v4092, %v4093
        %v4095 = vrot.slane %v4012, 2
        %v4096 = vrot.slane %v4013, 2
        %v4097 = vsel %vm462, %v4095, %v4096
        %v4098 = vrot.slane %v4014, 2
        %v4099 = vrot.slane %v4015, 2
        %v4100 = vsel %vm462, %v4098, %v4099
        %v4101 = vrot.slane %v4016, 2
        %v4102 = vrot.slane %v4017, 2
        %v4103 = vsel %vm462, %v4101, %v4102
        %v4104 = vrot.slane %v4018, 2
        %v4105 = vrot.slane %v4019, 2
        %v4106 = vsel %vm462, %v4104, %v4105
        %v4107 = vrot.slane %v4020, 2
        %v4108 = vrot.slane %v4021, 2
        %v4109 = vsel %vm462, %v4107, %v4108
        %v4118 = vsel %vm887, %v4006, %v4063
        %v4119 = vsel %vm887, %v4008, %v4065
        %v4120 = vsel %vm887, %v4010, %v4067
        %v4121 = vsel %vm887, %v4012, %v4069
        %v4122 = vsel %vm887, %v4014, %v4071
        %v4123 = vsel %vm887, %v4016, %v4073
        %v4124 = vsel %vm887, %v4018, %v4075
        %v4125 = vsel %vm887, %v4020, %v4077
        %v4126 = vpack.c.bf16 %v4119, %v4118
        %v4127 = vpack.c.bf16 %v4091, %v4088
        %v4128 = vpack.c.bf16 %v4121, %v4120
        %v4129 = vpack.c.bf16 %v4097, %v4094
        %v4130 = vpack.c.bf16 %v4123, %v4122
        %v4131 = vpack.c.bf16 %v4103, %v4100
        %v4132 = vpack.c.bf16 %v4125, %v4124
        %v4133 = vpack.c.bf16 %v4109, %v4106
        %v4134 = vld [vmem:[%s5] sm:$0xf]
        %v4135 = vld [vmem:[%s5 + $0x4] sm:$0xf]
        %v4136 = vld [vmem:[%s5 + $0x8] sm:$0xf]
        %v4137 = vld [vmem:[%s5 + $0xc] sm:$0xf]
        %v4138 = vld [vmem:[%s5 + $0x10] sm:$0xf]
        %v4139 = vld [vmem:[%s5 + $0x14] sm:$0xf]
        %v4140 = vld [vmem:[%s5 + $0x18] sm:$0xf]
        %v4141 = vld [vmem:[%s5 + $0x1c] sm:$0xf]
        %v4142 = vld [vmem:[%s5 + $0x20] sm:$0xf]
        %v4143 = vld [vmem:[%s5 + $0x24] sm:$0xf]
        %v4144 = vld [vmem:[%s5 + $0x28] sm:$0xf]
        %v4145 = vld [vmem:[%s5 + $0x2c] sm:$0xf]
        %v4146 = vld [vmem:[%s5 + $0x30] sm:$0xf]
        %v4147 = vld [vmem:[%s5 + $0x34] sm:$0xf]
        %v4148 = vld [vmem:[%s5 + $0x38] sm:$0xf]
        %v4149 = vld [vmem:[%s5 + $0x3c] sm:$0xf]
        %v4150 = vld [vmem:[%s5 + $0x40] sm:$0xf]
        %v4151 = vld [vmem:[%s5 + $0x44] sm:$0xf]
        %v4152 = vld [vmem:[%s5 + $0x48] sm:$0xf]
        %v4153 = vld [vmem:[%s5 + $0x4c] sm:$0xf]
        %v4154 = vld [vmem:[%s5 + $0x50] sm:$0xf]
        %v4155 = vld [vmem:[%s5 + $0x54] sm:$0xf]
        %v4156 = vld [vmem:[%s5 + $0x58] sm:$0xf]
        %v4157 = vld [vmem:[%s5 + $0x5c] sm:$0xf]
        %v4158 = vld [vmem:[%s3978] sm:$0xff]
        %v4159 = vld [vmem:[%s3978 + $0x8] sm:$0x3]
        %v4160 = vld [vmem:[%s3978 + $0x10] sm:$0xff]
        %v4161 = vld [vmem:[%s3978 + $0x18] sm:$0x3]
        %v4162 = vld [vmem:[%s3978 + $0x20] sm:$0xff]
        %v4163 = vld [vmem:[%s3978 + $0x28] sm:$0x3]
        %v4164 = vld [vmem:[%s3978 + $0x30] sm:$0xff]
        %v4165 = vld [vmem:[%s3978 + $0x38] sm:$0x3]
        %v4166 = vld [vmem:[%s3978 + $0x40] sm:$0xff]
        %v4167 = vld [vmem:[%s3978 + $0x48] sm:$0x3]
        %v4168 = vld [vmem:[%s3978 + $0x50] sm:$0xff]
        %v4169 = vld [vmem:[%s3978 + $0x58] sm:$0x3]
        %v4170 = vld [vmem:[%s3978 + $0x60] sm:$0xff]
        %v4171 = vld [vmem:[%s3978 + $0x68] sm:$0x3]
        %v4172 = vld [vmem:[%s3978 + $0x70] sm:$0xff]
        %v4173 = vld [vmem:[%s3978 + $0x78] sm:$0x3]
        %v4190 = vrot.slane %v4158, 1
        %v4191 = vrot.slane %v4159, 1
        %v4192 = vsel %vm976, %v4190, %v4191
        %v4193 = vrot.slane %v4160, 1
        %v4194 = vrot.slane %v4161, 1
        %v4195 = vsel %vm976, %v4193, %v4194
        %v4196 = vrot.slane %v4162, 1
        %v4197 = vrot.slane %v4163, 1
        %v4198 = vsel %vm976, %v4196, %v4197
        %v4199 = vrot.slane %v4164, 1
        %v4200 = vrot.slane %v4165, 1
        %v4201 = vsel %vm976, %v4199, %v4200
        %v4202 = vrot.slane %v4166, 1
        %v4203 = vrot.slane %v4167, 1
        %v4204 = vsel %vm976, %v4202, %v4203
        %v4205 = vrot.slane %v4168, 1
        %v4206 = vrot.slane %v4169, 1
        %v4207 = vsel %vm976, %v4205, %v4206
        %v4208 = vrot.slane %v4170, 1
        %v4209 = vrot.slane %v4171, 1
        %v4210 = vsel %vm976, %v4208, %v4209
        %v4211 = vrot.slane %v4172, 1
        %v4212 = vrot.slane %v4173, 1
        %v4213 = vsel %vm976, %v4211, %v4212
        %4214 = vrot.lane.b32.xlu0 %v4192, 64
        %v4215 = vpop.permute.xlu0 %4214
        %4216 = vrot.lane.b32.xlu0 %v4195, 64
        %v4217 = vpop.permute.xlu0 %4216
        %4218 = vrot.lane.b32.xlu0 %v4198, 64
        %v4219 = vpop.permute.xlu0 %4218
        %4220 = vrot.lane.b32.xlu0 %v4201, 64
        %v4221 = vpop.permute.xlu0 %4220
        %4222 = vrot.lane.b32.xlu0 %v4204, 64
        %v4223 = vpop.permute.xlu0 %4222
        %4224 = vrot.lane.b32.xlu0 %v4207, 64
        %v4225 = vpop.permute.xlu0 %4224
        %4226 = vrot.lane.b32.xlu0 %v4210, 64
        %v4227 = vpop.permute.xlu0 %4226
        %4228 = vrot.lane.b32.xlu0 %v4213, 64
        %v4229 = vpop.permute.xlu0 %4228
        %v4238 = vrot.slane %v4158, 2
        %v4239 = vrot.slane %v4159, 2
        %v4240 = vsel %vm462, %v4238, %v4239
        %v4241 = vrot.slane %v4160, 2
        %v4242 = vrot.slane %v4161, 2
        %v4243 = vsel %vm462, %v4241, %v4242
        %v4244 = vrot.slane %v4162, 2
        %v4245 = vrot.slane %v4163, 2
        %v4246 = vsel %vm462, %v4244, %v4245
        %v4247 = vrot.slane %v4164, 2
        %v4248 = vrot.slane %v4165, 2
        %v4249 = vsel %vm462, %v4247, %v4248
        %v4250 = vrot.slane %v4166, 2
        %v4251 = vrot.slane %v4167, 2
        %v4252 = vsel %vm462, %v4250, %v4251
        %v4253 = vrot.slane %v4168, 2
        %v4254 = vrot.slane %v4169, 2
        %v4255 = vsel %vm462, %v4253, %v4254
        %v4256 = vrot.slane %v4170, 2
        %v4257 = vrot.slane %v4171, 2
        %v4258 = vsel %vm462, %v4256, %v4257
        %v4259 = vrot.slane %v4172, 2
        %v4260 = vrot.slane %v4173, 2
        %v4261 = vsel %vm462, %v4259, %v4260
        %v4270 = vsel %vm887, %v4158, %v4215
        %v4271 = vsel %vm887, %v4160, %v4217
        %v4272 = vsel %vm887, %v4162, %v4219
        %v4273 = vsel %vm887, %v4164, %v4221
        %v4274 = vsel %vm887, %v4166, %v4223
        %v4275 = vsel %vm887, %v4168, %v4225
        %v4276 = vsel %vm887, %v4170, %v4227
        %v4277 = vsel %vm887, %v4172, %v4229
        %v4278 = vpack.c.bf16 %v4271, %v4270
        %v4279 = vpack.c.bf16 %v4243, %v4240
        %v4280 = vpack.c.bf16 %v4273, %v4272
        %v4281 = vpack.c.bf16 %v4249, %v4246
        %v4282 = vpack.c.bf16 %v4275, %v4274
        %v4283 = vpack.c.bf16 %v4255, %v4252
        %v4284 = vpack.c.bf16 %v4277, %v4276
        %v4285 = vpack.c.bf16 %v4261, %v4258
        %s4286 = scalar_lea.vmem %s5, 96
        %v4287 = vld [vmem:[%s4286] sm:$0xf]
        %v4288 = vld [vmem:[%s4286 + $0x4] sm:$0xf]
        %v4289 = vld [vmem:[%s4286 + $0x8] sm:$0xf]
        %v4290 = vld [vmem:[%s4286 + $0xc] sm:$0xf]
        %v4291 = vld [vmem:[%s4286 + $0x10] sm:$0xf]
        %v4292 = vld [vmem:[%s4286 + $0x14] sm:$0xf]
        %v4293 = vld [vmem:[%s4286 + $0x18] sm:$0xf]
        %v4294 = vld [vmem:[%s4286 + $0x1c] sm:$0xf]
        %v4295 = vld [vmem:[%s4286 + $0x20] sm:$0xf]
        %v4296 = vld [vmem:[%s4286 + $0x24] sm:$0xf]
        %v4297 = vld [vmem:[%s4286 + $0x28] sm:$0xf]
        %v4298 = vld [vmem:[%s4286 + $0x2c] sm:$0xf]
        %v4299 = vld [vmem:[%s4286 + $0x30] sm:$0xf]
        %v4300 = vld [vmem:[%s4286 + $0x34] sm:$0xf]
        %v4301 = vld [vmem:[%s4286 + $0x38] sm:$0xf]
        %v4302 = vld [vmem:[%s4286 + $0x3c] sm:$0xf]
        %v4303 = vld [vmem:[%s4286 + $0x40] sm:$0xf]
        %v4304 = vld [vmem:[%s4286 + $0x44] sm:$0xf]
        %v4305 = vld [vmem:[%s4286 + $0x48] sm:$0xf]
        %v4306 = vld [vmem:[%s4286 + $0x4c] sm:$0xf]
        %v4307 = vld [vmem:[%s4286 + $0x50] sm:$0xf]
        %v4308 = vld [vmem:[%s4286 + $0x54] sm:$0xf]
        %v4309 = vld [vmem:[%s4286 + $0x58] sm:$0xf]
        %v4310 = vld [vmem:[%s4286 + $0x5c] sm:$0xf]
        %v4335 = vunpack.c.l.b16 %v4287
        %v4336 = vunpack.c.l.b16 %v4288
        %v4337 = vunpack.c.l.b16 %v4289
        %v4338 = vunpack.c.l.b16 %v4290
        %v4339 = vunpack.c.l.b16 %v4291
        %v4340 = vunpack.c.l.b16 %v4292
        %v4341 = vunpack.c.l.b16 %v4293
        %v4342 = vunpack.c.l.b16 %v4294
        %v4343 = vunpack.c.l.b16 %v4295
        %v4344 = vunpack.c.l.b16 %v4296
        %v4345 = vunpack.c.l.b16 %v4297
        %v4346 = vunpack.c.l.b16 %v4298
        %v4347 = vunpack.c.l.b16 %v4299
        %v4348 = vunpack.c.l.b16 %v4300
        %v4349 = vunpack.c.l.b16 %v4301
        %v4350 = vunpack.c.l.b16 %v4302
        %v4351 = vunpack.c.l.b16 %v4303
        %v4352 = vunpack.c.l.b16 %v4304
        %v4353 = vunpack.c.l.b16 %v4305
        %v4354 = vunpack.c.l.b16 %v4306
        %v4355 = vunpack.c.l.b16 %v4307
        %v4356 = vunpack.c.l.b16 %v4308
        %v4357 = vunpack.c.l.b16 %v4309
        %v4358 = vunpack.c.l.b16 %v4310
        %v4359 = vpack.c.b16 %v4336, %v4335
        %v4360 = vpack.c.b16 %v4338, %v4337
        %v4361 = vpack.c.b16 %v4340, %v4339
        %v4362 = vpack.c.b16 %v4342, %v4341
        %v4363 = vpack.c.b16 %v4344, %v4343
        %v4364 = vpack.c.b16 %v4346, %v4345
        %v4365 = vpack.c.b16 %v4348, %v4347
        %v4366 = vpack.c.b16 %v4350, %v4349
        %v4367 = vpack.c.b16 %v4352, %v4351
        %v4368 = vpack.c.b16 %v4354, %v4353
        %v4369 = vpack.c.b16 %v4356, %v4355
        %v4370 = vpack.c.b16 %v4358, %v4357
        %v4384 = vsel %vm887, %v4279, 0
        %v4387 = vsel %vm887, %v4281, 0
        %v4390 = vsel %vm887, %v4283, 0
        %v4393 = vsel %vm887, %v4285, 0
        %4395 = vmatprep.subr.bf16.mxu0 0
        %4396 = vmatpush1.bf16.msra.mxu0 %v4359
        %4397 = vmatprep.subr.bf16.mxu0 0
        %4398 = vmatpush1.bf16.msra.mxu0 %v4360
        %4399 = vmatprep.subr.bf16.mxu0 0
        %4400 = vmatpush1.bf16.msra.mxu0 %v4361
        %4401 = vmatprep.subr.bf16.mxu0 0
        %4402 = vmatpush1.bf16.msra.mxu0 %v4362
        %4403 = vmatprep.subr.bf16.mxu0 0
        %4404 = vmatpush1.bf16.msra.mxu0 %v4363
        %4405 = vmatprep.subr.bf16.mxu0 0
        %4406 = vmatpush1.bf16.msra.mxu0 %v4364
        %4407 = vmatprep.subr.bf16.mxu0 0
        %4408 = vmatpush1.bf16.msra.mxu0 %v4365
        %4409 = vmatprep.subr.bf16.mxu0 0
        %4410 = vmatpush1.bf16.msra.mxu0 %v4366
        %4411 = vmatprep.subr.bf16.mxu0 0
        %4412 = vmatpush1.bf16.msra.mxu0 %v4367
        %4413 = vmatprep.subr.bf16.mxu0 0
        %4414 = vmatpush1.bf16.msra.mxu0 %v4368
        %4415 = vmatprep.subr.bf16.mxu0 0
        %4416 = vmatpush1.bf16.msra.mxu0 %v4369
        %4417 = vmatprep.subr.bf16.mxu0 0
        %4418 = vmatpush1.bf16.msra.mxu0 %v4370
        %4419 = vmatprep.subr.bf16.mxu0 0
        %4420 = vmatpush1.bf16.msra.mxu0 0
        %4421 = vmatprep.subr.bf16.mxu0 0
        %4422 = vmatpush1.bf16.msra.mxu0 0
        %4423 = vmatprep.subr.bf16.mxu0 0
        %4424 = vmatpush1.bf16.msra.mxu0 0
        %4425 = vmatprep.subr.bf16.mxu0 0
        %4426 = vmatpush1.bf16.msra.mxu0 0
        %4427 = vmatprep.mubr.bf16.mxu0 %v4384
        %4428 = vmatmul.mubr.bf16.gmra.mrb[0].mxu0 %v4278
        %v4429 = vpop.f32.mrb[0].mxu0
        %v4430 = vadd.f32 0.0, %v4429
        %v4431 = vpop.f32.mrb[0].mxu0
        %v4432 = vpop.f32.mrb[0].mxu0
        %v4433 = vadd.f32 0.0, %v4432
        %v4434 = vpop.f32.mrb[0].mxu0
        %4435 = vmatprep.mubr.bf16.mxu0 %v4387
        %4436 = vmatmul.mubr.bf16.gmra.mrb[0].mxu0 %v4280
        %v4437 = vpop.f32.mrb[0].mxu0
        %v4438 = vadd.f32 0.0, %v4437
        %v4439 = vpop.f32.mrb[0].mxu0
        %v4440 = vpop.f32.mrb[0].mxu0
        %v4441 = vadd.f32 0.0, %v4440
        %v4442 = vpop.f32.mrb[0].mxu0
        %4443 = vmatprep.mubr.bf16.mxu0 %v4390
        %4444 = vmatmul.mubr.bf16.gmra.mrb[0].mxu0 %v4282
        %v4445 = vpop.f32.mrb[0].mxu0
        %v4446 = vadd.f32 0.0, %v4445
        %v4447 = vpop.f32.mrb[0].mxu0
        %v4448 = vpop.f32.mrb[0].mxu0
        %v4449 = vadd.f32 0.0, %v4448
        %v4450 = vpop.f32.mrb[0].mxu0
        %4451 = vmatprep.mubr.bf16.mxu0 %v4393
        %4452 = vmatmul.mubr.bf16.gmra.mrb[0].mxu0 %v4284
        %v4453 = vpop.f32.mrb[0].mxu0
        %v4454 = vadd.f32 0.0, %v4453
        %v4455 = vpop.f32.mrb[0].mxu0
        %v4456 = vpop.f32.mrb[0].mxu0
        %v4457 = vadd.f32 0.0, %v4456
        %v4458 = vpop.f32.mrb[0].mxu0
        %4459 = vdwg.mxu0
        %v4484 = vunpack.c.l.b16 %v4134
        %v4485 = vunpack.c.l.b16 %v4135
        %v4486 = vunpack.c.l.b16 %v4136
        %v4487 = vunpack.c.l.b16 %v4137
        %v4488 = vunpack.c.l.b16 %v4138
        %v4489 = vunpack.c.l.b16 %v4139
        %v4490 = vunpack.c.l.b16 %v4140
        %v4491 = vunpack.c.l.b16 %v4141
        %v4492 = vunpack.c.l.b16 %v4142
        %v4493 = vunpack.c.l.b16 %v4143
        %v4494 = vunpack.c.l.b16 %v4144
        %v4495 = vunpack.c.l.b16 %v4145
        %v4496 = vunpack.c.l.b16 %v4146
        %v4497 = vunpack.c.l.b16 %v4147
        %v4498 = vunpack.c.l.b16 %v4148
        %v4499 = vunpack.c.l.b16 %v4149
        %v4500 = vunpack.c.l.b16 %v4150
        %v4501 = vunpack.c.l.b16 %v4151
        %v4502 = vunpack.c.l.b16 %v4152
        %v4503 = vunpack.c.l.b16 %v4153
        %v4504 = vunpack.c.l.b16 %v4154
        %v4505 = vunpack.c.l.b16 %v4155
        %v4506 = vunpack.c.l.b16 %v4156
        %v4507 = vunpack.c.l.b16 %v4157
        %v4508 = vpack.c.b16 %v4485, %v4484
        %v4509 = vpack.c.b16 %v4487, %v4486
        %v4510 = vpack.c.b16 %v4489, %v4488
        %v4511 = vpack.c.b16 %v4491, %v4490
        %v4512 = vpack.c.b16 %v4493, %v4492
        %v4513 = vpack.c.b16 %v4495, %v4494
        %v4514 = vpack.c.b16 %v4497, %v4496
        %v4515 = vpack.c.b16 %v4499, %v4498
        %v4516 = vpack.c.b16 %v4501, %v4500
        %v4517 = vpack.c.b16 %v4503, %v4502
        %v4518 = vpack.c.b16 %v4505, %v4504
        %v4519 = vpack.c.b16 %v4507, %v4506
        %v4533 = vsel %vm887, %v4127, 0
        %v4536 = vsel %vm887, %v4129, 0
        %v4539 = vsel %vm887, %v4131, 0
        %v4542 = vsel %vm887, %v4133, 0
        %4544 = vmatprep.subr.bf16.mxu0 0
        %4545 = vmatpush1.bf16.msra.mxu0 %v4508
        %4546 = vmatprep.subr.bf16.mxu0 0
        %4547 = vmatpush1.bf16.msra.mxu0 %v4509
        %4548 = vmatprep.subr.bf16.mxu0 0
        %4549 = vmatpush1.bf16.msra.mxu0 %v4510
        %4550 = vmatprep.subr.bf16.mxu0 0
        %4551 = vmatpush1.bf16.msra.mxu0 %v4511
        %4552 = vmatprep.subr.bf16.mxu0 0
        %4553 = vmatpush1.bf16.msra.mxu0 %v4512
        %4554 = vmatprep.subr.bf16.mxu0 0
        %4555 = vmatpush1.bf16.msra.mxu0 %v4513
        %4556 = vmatprep.subr.bf16.mxu0 0
        %4557 = vmatpush1.bf16.msra.mxu0 %v4514
        %4558 = vmatprep.subr.bf16.mxu0 0
        %4559 = vmatpush1.bf16.msra.mxu0 %v4515
        %4560 = vmatprep.subr.bf16.mxu0 0
        %4561 = vmatpush1.bf16.msra.mxu0 %v4516
        %4562 = vmatprep.subr.bf16.mxu0 0
        %4563 = vmatpush1.bf16.msra.mxu0 %v4517
        %4564 = vmatprep.subr.bf16.mxu0 0
        %4565 = vmatpush1.bf16.msra.mxu0 %v4518
        %4566 = vmatprep.subr.bf16.mxu0 0
        %4567 = vmatpush1.bf16.msra.mxu0 %v4519
        %4568 = vmatprep.subr.bf16.mxu0 0
        %4569 = vmatpush1.bf16.msra.mxu0 0
        %4570 = vmatprep.subr.bf16.mxu0 0
        %4571 = vmatpush1.bf16.msra.mxu0 0
        %4572 = vmatprep.subr.bf16.mxu0 0
        %4573 = vmatpush1.bf16.msra.mxu0 0
        %4574 = vmatprep.subr.bf16.mxu0 0
        %4575 = vmatpush1.bf16.msra.mxu0 0
        %4576 = vmatprep.mubr.bf16.mxu0 %v4533
        %4577 = vmatmul.mubr.bf16.gmra.mrb[0].mxu0 %v4126
        %v4578 = vpop.f32.mrb[0].mxu0
        %v4579 = vadd.f32 %v4430, %v4578
        %v4580 = vpop.f32.mrb[0].mxu0
        %v4581 = vpop.f32.mrb[0].mxu0
        %v4582 = vadd.f32 %v4433, %v4581
        %v4583 = vpop.f32.mrb[0].mxu0
        %4584 = vmatprep.mubr.bf16.mxu0 %v4536
        %4585 = vmatmul.mubr.bf16.gmra.mrb[0].mxu0 %v4128
        %v4586 = vpop.f32.mrb[0].mxu0
        %v4587 = vadd.f32 %v4438, %v4586
        %v4588 = vpop.f32.mrb[0].mxu0
        %v4589 = vpop.f32.mrb[0].mxu0
        %v4590 = vadd.f32 %v4441, %v4589
        %v4591 = vpop.f32.mrb[0].mxu0
        %4592 = vmatprep.mubr.bf16.mxu0 %v4539
        %4593 = vmatmul.mubr.bf16.gmra.mrb[0].mxu0 %v4130
        %v4594 = vpop.f32.mrb[0].mxu0
        %v4595 = vadd.f32 %v4446, %v4594
        %v4596 = vpop.f32.mrb[0].mxu0
        %v4597 = vpop.f32.mrb[0].mxu0
        %v4598 = vadd.f32 %v4449, %v4597
        %v4599 = vpop.f32.mrb[0].mxu0
        %4600 = vmatprep.mubr.bf16.mxu0 %v4542
        %4601 = vmatmul.mubr.bf16.gmra.mrb[0].mxu0 %v4132
        %v4602 = vpop.f32.mrb[0].mxu0
        %v4603 = vadd.f32 %v4454, %v4602
        %v4604 = vpop.f32.mrb[0].mxu0
        %v4605 = vpop.f32.mrb[0].mxu0
        %v4606 = vadd.f32 %v4457, %v4605
        %v4607 = vpop.f32.mrb[0].mxu0
        %4608 = vdwg.mxu0
        %v4609 = vld [vmem:[%s3995] sm:$0xff]
        %v4610 = vld [vmem:[%s3995 + $0x8] sm:$0x3]
        %v4611 = vld [vmem:[%s3995 + $0x10] sm:$0xff]
        %v4612 = vld [vmem:[%s3995 + $0x18] sm:$0x3]
        %v4613 = vld [vmem:[%s3995 + $0x20] sm:$0xff]
        %v4614 = vld [vmem:[%s3995 + $0x28] sm:$0x3]
        %v4615 = vld [vmem:[%s3995 + $0x30] sm:$0xff]
        %v4616 = vld [vmem:[%s3995 + $0x38] sm:$0x3]
        %v4617 = vld [vmem:[%s3995 + $0x40] sm:$0xff]
        %v4618 = vld [vmem:[%s3995 + $0x48] sm:$0x3]
        %v4619 = vld [vmem:[%s3995 + $0x50] sm:$0xff]
        %v4620 = vld [vmem:[%s3995 + $0x58] sm:$0x3]
        %v4621 = vld [vmem:[%s3995 + $0x60] sm:$0xff]
        %v4622 = vld [vmem:[%s3995 + $0x68] sm:$0x3]
        %v4623 = vld [vmem:[%s3995 + $0x70] sm:$0xff]
        %v4624 = vld [vmem:[%s3995 + $0x78] sm:$0x3]
        %v4641 = vrot.slane %v4609, 1
        %v4642 = vrot.slane %v4610, 1
        %v4643 = vsel %vm976, %v4641, %v4642
        %v4644 = vrot.slane %v4611, 1
        %v4645 = vrot.slane %v4612, 1
        %v4646 = vsel %vm976, %v4644, %v4645
        %v4647 = vrot.slane %v4613, 1
        %v4648 = vrot.slane %v4614, 1
        %v4649 = vsel %vm976, %v4647, %v4648
        %v4650 = vrot.slane %v4615, 1
        %v4651 = vrot.slane %v4616, 1
        %v4652 = vsel %vm976, %v4650, %v4651
        %v4653 = vrot.slane %v4617, 1
        %v4654 = vrot.slane %v4618, 1
        %v4655 = vsel %vm976, %v4653, %v4654
        %v4656 = vrot.slane %v4619, 1
        %v4657 = vrot.slane %v4620, 1
        %v4658 = vsel %vm976, %v4656, %v4657
        %v4659 = vrot.slane %v4621, 1
        %v4660 = vrot.slane %v4622, 1
        %v4661 = vsel %vm976, %v4659, %v4660
        %v4662 = vrot.slane %v4623, 1
        %v4663 = vrot.slane %v4624, 1
        %v4664 = vsel %vm976, %v4662, %v4663
        %4665 = vrot.lane.b32.xlu0 %v4643, 64
        %v4666 = vpop.permute.xlu0 %4665
        %4667 = vrot.lane.b32.xlu0 %v4646, 64
        %v4668 = vpop.permute.xlu0 %4667
        %4669 = vrot.lane.b32.xlu0 %v4649, 64
        %v4670 = vpop.permute.xlu0 %4669
        %4671 = vrot.lane.b32.xlu0 %v4652, 64
        %v4672 = vpop.permute.xlu0 %4671
        %4673 = vrot.lane.b32.xlu0 %v4655, 64
        %v4674 = vpop.permute.xlu0 %4673
        %4675 = vrot.lane.b32.xlu0 %v4658, 64
        %v4676 = vpop.permute.xlu0 %4675
        %4677 = vrot.lane.b32.xlu0 %v4661, 64
        %v4678 = vpop.permute.xlu0 %4677
        %4679 = vrot.lane.b32.xlu0 %v4664, 64
        %v4680 = vpop.permute.xlu0 %4679
        %v4689 = vrot.slane %v4609, 2
        %v4690 = vrot.slane %v4610, 2
        %v4691 = vsel %vm462, %v4689, %v4690
        %v4692 = vrot.slane %v4611, 2
        %v4693 = vrot.slane %v4612, 2
        %v4694 = vsel %vm462, %v4692, %v4693
        %v4695 = vrot.slane %v4613, 2
        %v4696 = vrot.slane %v4614, 2
        %v4697 = vsel %vm462, %v4695, %v4696
        %v4698 = vrot.slane %v4615, 2
        %v4699 = vrot.slane %v4616, 2
        %v4700 = vsel %vm462, %v4698, %v4699
        %v4701 = vrot.slane %v4617, 2
        %v4702 = vrot.slane %v4618, 2
        %v4703 = vsel %vm462, %v4701, %v4702
        %v4704 = vrot.slane %v4619, 2
        %v4705 = vrot.slane %v4620, 2
        %v4706 = vsel %vm462, %v4704, %v4705
        %v4707 = vrot.slane %v4621, 2
        %v4708 = vrot.slane %v4622, 2
        %v4709 = vsel %vm462, %v4707, %v4708
        %v4710 = vrot.slane %v4623, 2
        %v4711 = vrot.slane %v4624, 2
        %v4712 = vsel %vm462, %v4710, %v4711
        %v4721 = vsel %vm887, %v4609, %v4666
        %v4722 = vsel %vm887, %v4611, %v4668
        %v4723 = vsel %vm887, %v4613, %v4670
        %v4724 = vsel %vm887, %v4615, %v4672
        %v4725 = vsel %vm887, %v4617, %v4674
        %v4726 = vsel %vm887, %v4619, %v4676
        %v4727 = vsel %vm887, %v4621, %v4678
        %v4728 = vsel %vm887, %v4623, %v4680
        %v4729 = vpack.c.bf16 %v4722, %v4721
        %v4730 = vpack.c.bf16 %v4694, %v4691
        %v4731 = vpack.c.bf16 %v4724, %v4723
        %v4732 = vpack.c.bf16 %v4700, %v4697
        %v4733 = vpack.c.bf16 %v4726, %v4725
        %v4734 = vpack.c.bf16 %v4706, %v4703
        %v4735 = vpack.c.bf16 %v4728, %v4727
        %v4736 = vpack.c.bf16 %v4712, %v4709
        %s4737 = scalar_lea.vmem %s5, 192
        %v4738 = vld [vmem:[%s4737] sm:$0xf]
        %v4739 = vld [vmem:[%s4737 + $0x4] sm:$0xf]
        %v4740 = vld [vmem:[%s4737 + $0x8] sm:$0xf]
        %v4741 = vld [vmem:[%s4737 + $0xc] sm:$0xf]
        %v4742 = vld [vmem:[%s4737 + $0x10] sm:$0xf]
        %v4743 = vld [vmem:[%s4737 + $0x14] sm:$0xf]
        %v4744 = vld [vmem:[%s4737 + $0x18] sm:$0xf]
        %v4745 = vld [vmem:[%s4737 + $0x1c] sm:$0xf]
        %v4746 = vld [vmem:[%s4737 + $0x20] sm:$0xf]
        %v4747 = vld [vmem:[%s4737 + $0x24] sm:$0xf]
        %v4748 = vld [vmem:[%s4737 + $0x28] sm:$0xf]
        %v4749 = vld [vmem:[%s4737 + $0x2c] sm:$0xf]
        %v4750 = vld [vmem:[%s4737 + $0x30] sm:$0xf]
        %v4751 = vld [vmem:[%s4737 + $0x34] sm:$0xf]
        %v4752 = vld [vmem:[%s4737 + $0x38] sm:$0xf]
        %v4753 = vld [vmem:[%s4737 + $0x3c] sm:$0xf]
        %v4754 = vld [vmem:[%s4737 + $0x40] sm:$0xf]
        %v4755 = vld [vmem:[%s4737 + $0x44] sm:$0xf]
        %v4756 = vld [vmem:[%s4737 + $0x48] sm:$0xf]
        %v4757 = vld [vmem:[%s4737 + $0x4c] sm:$0xf]
        %v4758 = vld [vmem:[%s4737 + $0x50] sm:$0xf]
        %v4759 = vld [vmem:[%s4737 + $0x54] sm:$0xf]
        %v4760 = vld [vmem:[%s4737 + $0x58] sm:$0xf]
        %v4761 = vld [vmem:[%s4737 + $0x5c] sm:$0xf]
        %v4786 = vunpack.c.l.b16 %v4738
        %v4787 = vunpack.c.l.b16 %v4739
        %v4788 = vunpack.c.l.b16 %v4740
        %v4789 = vunpack.c.l.b16 %v4741
        %v4790 = vunpack.c.l.b16 %v4742
        %v4791 = vunpack.c.l.b16 %v4743
        %v4792 = vunpack.c.l.b16 %v4744
        %v4793 = vunpack.c.l.b16 %v4745
        %v4794 = vunpack.c.l.b16 %v4746
        %v4795 = vunpack.c.l.b16 %v4747
        %v4796 = vunpack.c.l.b16 %v4748
        %v4797 = vunpack.c.l.b16 %v4749
        %v4798 = vunpack.c.l.b16 %v4750
        %v4799 = vunpack.c.l.b16 %v4751
        %v4800 = vunpack.c.l.b16 %v4752
        %v4801 = vunpack.c.l.b16 %v4753
        %v4802 = vunpack.c.l.b16 %v4754
        %v4803 = vunpack.c.l.b16 %v4755
        %v4804 = vunpack.c.l.b16 %v4756
        %v4805 = vunpack.c.l.b16 %v4757
        %v4806 = vunpack.c.l.b16 %v4758
        %v4807 = vunpack.c.l.b16 %v4759
        %v4808 = vunpack.c.l.b16 %v4760
        %v4809 = vunpack.c.l.b16 %v4761
        %v4810 = vpack.c.b16 %v4787, %v4786
        %v4811 = vpack.c.b16 %v4789, %v4788
        %v4812 = vpack.c.b16 %v4791, %v4790
        %v4813 = vpack.c.b16 %v4793, %v4792
        %v4814 = vpack.c.b16 %v4795, %v4794
        %v4815 = vpack.c.b16 %v4797, %v4796
        %v4816 = vpack.c.b16 %v4799, %v4798
        %v4817 = vpack.c.b16 %v4801, %v4800
        %v4818 = vpack.c.b16 %v4803, %v4802
        %v4819 = vpack.c.b16 %v4805, %v4804
        %v4820 = vpack.c.b16 %v4807, %v4806
        %v4821 = vpack.c.b16 %v4809, %v4808
        %v4835 = vsel %vm887, %v4730, 0
        %v4838 = vsel %vm887, %v4732, 0
        %v4841 = vsel %vm887, %v4734, 0
        %v4844 = vsel %vm887, %v4736, 0
        %4846 = vmatprep.subr.bf16.mxu0 0
        %4847 = vmatpush1.bf16.msra.mxu0 %v4810
        %4848 = vmatprep.subr.bf16.mxu0 0
        %4849 = vmatpush1.bf16.msra.mxu0 %v4811
        %4850 = vmatprep.subr.bf16.mxu0 0
        %4851 = vmatpush1.bf16.msra.mxu0 %v4812
        %4852 = vmatprep.subr.bf16.mxu0 0
        %4853 = vmatpush1.bf16.msra.mxu0 %v4813
        %4854 = vmatprep.subr.bf16.mxu0 0
        %4855 = vmatpush1.bf16.msra.mxu0 %v4814
        %4856 = vmatprep.subr.bf16.mxu0 0
        %4857 = vmatpush1.bf16.msra.mxu0 %v4815
        %4858 = vmatprep.subr.bf16.mxu0 0
        %4859 = vmatpush1.bf16.msra.mxu0 %v4816
        %4860 = vmatprep.subr.bf16.mxu0 0
        %4861 = vmatpush1.bf16.msra.mxu0 %v4817
        %4862 = vmatprep.subr.bf16.mxu0 0
        %4863 = vmatpush1.bf16.msra.mxu0 %v4818
        %4864 = vmatprep.subr.bf16.mxu0 0
        %4865 = vmatpush1.bf16.msra.mxu0 %v4819
        %4866 = vmatprep.subr.bf16.mxu0 0
        %4867 = vmatpush1.bf16.msra.mxu0 %v4820
        %4868 = vmatprep.subr.bf16.mxu0 0
        %4869 = vmatpush1.bf16.msra.mxu0 %v4821
        %4870 = vmatprep.subr.bf16.mxu0 0
        %4871 = vmatpush1.bf16.msra.mxu0 0
        %4872 = vmatprep.subr.bf16.mxu0 0
        %4873 = vmatpush1.bf16.msra.mxu0 0
        %4874 = vmatprep.subr.bf16.mxu0 0
        %4875 = vmatpush1.bf16.msra.mxu0 0
        %4876 = vmatprep.subr.bf16.mxu0 0
        %4877 = vmatpush1.bf16.msra.mxu0 0
        %4878 = vmatprep.mubr.bf16.mxu0 %v4835
        %4879 = vmatmul.mubr.bf16.gmra.mrb[0].mxu0 %v4729
        %v4880 = vpop.f32.mrb[0].mxu0
        %v4881 = vadd.f32 0.0, %v4880
        %v4882 = vpop.f32.mrb[0].mxu0
        %v4883 = vpop.f32.mrb[0].mxu0
        %v4884 = vadd.f32 0.0, %v4883
        %v4885 = vpop.f32.mrb[0].mxu0
        %4886 = vmatprep.mubr.bf16.mxu0 %v4838
        %4887 = vmatmul.mubr.bf16.gmra.mrb[0].mxu0 %v4731
        %v4888 = vpop.f32.mrb[0].mxu0
        %v4889 = vadd.f32 0.0, %v4888
        %v4890 = vpop.f32.mrb[0].mxu0
        %v4891 = vpop.f32.mrb[0].mxu0
        %v4892 = vadd.f32 0.0, %v4891
        %v4893 = vpop.f32.mrb[0].mxu0
        %4894 = vmatprep.mubr.bf16.mxu0 %v4841
        %4895 = vmatmul.mubr.bf16.gmra.mrb[0].mxu0 %v4733
        %v4896 = vpop.f32.mrb[0].mxu0
        %v4897 = vadd.f32 0.0, %v4896
        %v4898 = vpop.f32.mrb[0].mxu0
        %v4899 = vpop.f32.mrb[0].mxu0
        %v4900 = vadd.f32 0.0, %v4899
        %v4901 = vpop.f32.mrb[0].mxu0
        %4902 = vmatprep.mubr.bf16.mxu0 %v4844
        %4903 = vmatmul.mubr.bf16.gmra.mrb[0].mxu0 %v4735
        %v4904 = vpop.f32.mrb[0].mxu0
        %v4905 = vadd.f32 0.0, %v4904
        %v4906 = vpop.f32.mrb[0].mxu0
        %v4907 = vpop.f32.mrb[0].mxu0
        %v4908 = vadd.f32 0.0, %v4907
        %v4909 = vpop.f32.mrb[0].mxu0
        %4910 = vdwg.mxu0
        %v4911 = vadd.f32 %v4579, %v4881
        %v4912 = vadd.f32 %v4582, %v4884
        %v4913 = vadd.f32 %v4587, %v4889
        %v4914 = vadd.f32 %v4590, %v4892
        %v4915 = vadd.f32 %v4595, %v4897
        %v4916 = vadd.f32 %v4598, %v4900
        %v4917 = vadd.f32 %v4603, %v4905
        %v4918 = vadd.f32 %v4606, %v4908
        %v4919 = vld [vmem:[%s6] sm:$0x1]
        %v4921 = vlaneseq
        %v4922 = vshrl.u32 %v4921, 7
        %v4923 = vsub.s32 0, %v4922
        %v4924 = vrot.slane %v4919, %v4923
        %v4926 = vadd.f32 %v4911, %v4924
        %v4927 = vadd.f32 %v4912, %v4924
        %v4928 = vadd.f32 %v4913, %v4924
        %v4929 = vadd.f32 %v4914, %v4924
        %v4930 = vadd.f32 %v4915, %v4924
        %v4931 = vadd.f32 %v4916, %v4924
        %v4932 = vadd.f32 %v4917, %v4924
        %v4933 = vadd.f32 %v4918, %v4924
        %v4934 = vmax.f32 %v4926, 0.0
        %v4935 = vmax.f32 %v4927, 0.0
        %v4936 = vmax.f32 %v4928, 0.0
        %v4937 = vmax.f32 %v4929, 0.0
        %v4938 = vmax.f32 %v4930, 0.0
        %v4939 = vmax.f32 %v4931, 0.0
        %v4940 = vmax.f32 %v4932, 0.0
        %v4941 = vmax.f32 %v4933, 0.0
        %4942 = vst [vmem:[%s271] sm:$0xff] %v4934
        %4943 = vst [vmem:[%s271 + $0x8] sm:$0xff] %v4935
        %4944 = vst [vmem:[%s271 + $0x10] sm:$0xff] %v4936
        %4945 = vst [vmem:[%s271 + $0x18] sm:$0xff] %v4937
        %4946 = vst [vmem:[%s271 + $0x20] sm:$0xff] %v4938
        %4947 = vst [vmem:[%s271 + $0x28] sm:$0xff] %v4939
        %4948 = vst [vmem:[%s271 + $0x30] sm:$0xff] %v4940
        %4949 = vst [vmem:[%s271 + $0x38] sm:$0xff] %v4941
        %s4950 = sand.u32 %s181, 1
        %s4951 = scalar_lea.sflag [#allocation5], %s4950
        %s4952 = sand.u32 %s181, 1
        %s4953 = smul.addr %s4952, 64
        %s4954 = scalar_lea.vmem [#allocation4], %s4953
        // Predicated region
        $region49: #{tpu_custom_call.1} parent=47 // pred_check
          %p4955 = pneg %p191
        $region50: #{tpu_custom_call.1} parent=47 // pred_check_branch
          %4957 = sbr.rel (%p4955) target = $region52
        $region51: #{tpu_custom_call.1} parent=47 // pred_region
          %s4959 = ssub.s32 1024, 1024
          %4960 = vsyncadd %s4951, %s4959
          %s4961 = smul.addr %s21, 8
          %s4962 = smul.addr %s4961, 128
          %s4963 = scalar_lea.hbm %s7, %s4962
          %s4964 = sshll.u32 %s4954, 4
          %s4965 = int_to_ptr.vmem [resolvable:$true] %s4964
          %4970 = dma.vmem_to_hbm [thread:$0]  %s4965, 1024, %s4963, %s4951, 128, 128, 8
        $region52: #{tpu_custom_call.1} parent=47 // pred_fallthru
          _
      $region48: #{tpu_custom_call.1} parent=5 // pred_fallthru
        _
      %p4971 = scmp.le.s32.totalorder 2, %s16
      // Predicated region
      $region53: #{tpu_custom_call.1} parent=5 // pred_check
        %p4972 = pneg %p4971
      $region54: #{tpu_custom_call.1} parent=5 // pred_check_branch
        %4974 = sbr.rel (%p4972) target = $region56
      $region55: #{tpu_custom_call.1} parent=5 // pred_region
        %s4975 = ssub.s32 %s16, 2
        // Predicated region
        $region57: #{tpu_custom_call.1} parent=55 // pred_check
          %p4976 = pneg %p197
        $region58: #{tpu_custom_call.1} parent=55 // pred_check_branch
          %4978 = sbr.rel (%p4976) target = $region60
        $region59: #{tpu_custom_call.1} parent=55 // pred_region
          %s4979 = sand.u32 %s182, 1
          %s4980 = scalar_lea.sflag [#allocation5], %s4979
          %s4981 = sand.u32 %s182, 1
          %s4982 = smul.addr %s4981, 64
          %s4983 = scalar_lea.vmem [#allocation4], %s4982
          %4984 = dma.done %s4980, 1024
        $region60: #{tpu_custom_call.1} parent=55 // pred_fallthru
          _
      $region56: #{tpu_custom_call.1} parent=5 // pred_fallthru
        _
    $region6: #{tpu_custom_call.1} parent=1 // loop_footer
      %s20 = sadd.s32 1, %s16
    $region7: #{tpu_custom_call.1} parent=1 // loop_footer_branch
      %15 = sbr.rel target = $region3
    $region8: #{tpu_custom_call.1} parent=1 // loop_exit
      _
    %4985 = vsyncpa [#allocation5], 1
    %s4986 = scalar_lea.sflag [#allocation5], 1
    %4987 = vsyncpa %s4986, 1

</llo_original>
